<compile_context>
chip_gen: v5e
topology: v5e:2x2
jax: 0.10.0
libtpu: 0.0.40
codegen_flags: <defaults>
</compile_context>

<pallas_src>
import functools

import jax
import jax.numpy as jnp
from jax import lax
from jax.experimental import pallas as pl
from jax.experimental.pallas import tpu as pltpu

# ---------------- small-config "ViT-B/16" ----------------
IMG = 32            # (real: 224)
P = 16              # patch size (matches vit_b_16)
C = 3               # RGB
D = 128             # hidden dim       (real: 768)
HEADS = 4           # attention heads  (real: 12)
DH = D // HEADS
MLP = 256           # MLP hidden dim   (real: 3072)
DEPTH = 2           # encoder layers   (real: 12)
CLASSES = 102       # out_heads default in BasicViT
CLASSES_PAD = 128   # padded head width for lane-dense stores
B = 2               # batch
NPATCH = (IMG // P) * (IMG // P)
N = NPATCH + 1      # tokens incl. class token
CPP = C * P * P
LN_EPS = 1e-6       # torchvision ViT uses LayerNorm(eps=1e-6)

ACT_DT = jnp.bfloat16  # activation / weight dtype (f32 accumulation everywhere)

_PAR = pltpu.CompilerParams(dimension_semantics=("parallel",))


# ---------------- in-kernel helpers (f32 math) ----------------
def _gelu_f32(y):
    # TODO(synk): torchvision uses exact erf-GELU; tanh approximation used here.
    return 0.5 * y * (1.0 + jnp.tanh(0.7978845608028654 * (y + 0.044715 * y * y * y)))


def _layernorm_f32(x_f32, g_ref, b_ref, eps):
    mean = jnp.mean(x_f32, axis=-1, keepdims=True)
    cen = x_f32 - mean
    var = jnp.mean(cen * cen, axis=-1, keepdims=True)
    return cen * lax.rsqrt(var + eps) * g_ref[...] + b_ref[...]


# ---------------- Pallas kernels ----------------
def _patch_embed_kernel(p_ref, w_ref, b_ref, pos_ref, o_ref):
    # per batch: (NPATCH, CPP) @ (CPP, D) + bias + positional embedding (patch rows)
    y = jnp.dot(p_ref[0], w_ref[...], preferred_element_type=jnp.float32)
    o_ref[0] = (y + b_ref[...] + pos_ref[...]).astype(o_ref.dtype)


def _ln_qkv_kernel(x_ref, g_ref, b_ref, w_ref, bias_ref, o_ref, *, eps):
    # LayerNorm (f32 stats) fused with the concatenated QKV projection.
    x = x_ref[0].astype(jnp.float32)
    h = _layernorm_f32(x, g_ref, b_ref, eps).astype(w_ref.dtype)
    y = jnp.dot(h, w_ref[...], preferred_element_type=jnp.float32) + bias_ref[...]
    o_ref[0] = y.astype(o_ref.dtype)


def _attn_kernel(qkv_ref, x_ref, wo_ref, bo_ref, o_ref):
    # One batch per grid step.  Heads are split by static lane slices of the fused
    # (N, 3D) qkv slab; the output projection is accumulated per head
    # (concat(o_h) @ Wo == sum_h o_h @ Wo[h]), fused with bias + residual add.
    qkv = qkv_ref[0]                                        # (N, 3D) bf16, q pre-scaled
    acc = x_ref[0].astype(jnp.float32) + bo_ref[...]        # residual + out-proj bias
    for h in range(HEADS):
        q = qkv[:, h * DH:(h + 1) * DH]
        k = qkv[:, D + h * DH:D + (h + 1) * DH]
        v = qkv[:, 2 * D + h * DH:2 * D + (h + 1) * DH]
        s = lax.dot_general(q, k, (((1,), (1,)), ((), ())),
                            preferred_element_type=jnp.float32)       # (N, N)
        s = s - jnp.max(s, axis=-1, keepdims=True)
        p = jnp.exp(s)
        p = p * pl.reciprocal(jnp.sum(p, axis=-1, keepdims=True), approx=True)
        o_h = jnp.dot(p.astype(v.dtype), v, preferred_element_type=jnp.float32)
        acc = acc + jnp.dot(o_h.astype(wo_ref.dtype),
                            wo_ref[h * DH:(h + 1) * DH, :],
                            preferred_element_type=jnp.float32)
    o_ref[0] = acc.astype(o_ref.dtype)


def _ln_mlp_kernel(x_ref, g_ref, b_ref, w1_ref, b1_ref, w2_ref, b2_ref, o_ref, *, eps):
    # LayerNorm + MLP (fc1 -> GELU -> fc2) + residual, all in one kernel.
    x = x_ref[0].astype(jnp.float32)
    h = _layernorm_f32(x, g_ref, b_ref, eps).astype(w1_ref.dtype)
    u = jnp.dot(h, w1_ref[...], preferred_element_type=jnp.float32) + b1_ref[...]
    u = _gelu_f32(u).astype(w2_ref.dtype)
    y = jnp.dot(u, w2_ref[...], preferred_element_type=jnp.float32) + b2_ref[...]
    o_ref[0] = (x + y).astype(o_ref.dtype)


def _head_kernel(x_ref, g_ref, b_ref, w_ref, bias_ref, o_ref, *, eps):
    # final LayerNorm + (padded-to-128) classification head on the class tokens
    x = x_ref[...].astype(jnp.float32)
    h = _layernorm_f32(x, g_ref, b_ref, eps).astype(w_ref.dtype)
    o_ref[...] = jnp.dot(h, w_ref[...], preferred_element_type=jnp.float32) + bias_ref[...]


# ---------------- pallas_call wrappers ----------------
def patch_embed(patches, wp, bp, pos_patch):
    return pl.pallas_call(
        _patch_embed_kernel,
        out_shape=jax.ShapeDtypeStruct((B, NPATCH, D), ACT_DT),
        grid=(B,),
        in_specs=[pl.BlockSpec((1, NPATCH, CPP), lambda b: (b, 0, 0)),
                  pl.BlockSpec((CPP, D), lambda b: (0, 0)),
                  pl.BlockSpec((1, D), lambda b: (0, 0)),
                  pl.BlockSpec((NPATCH, D), lambda b: (0, 0))],
        out_specs=pl.BlockSpec((1, NPATCH, D), lambda b: (b, 0, 0)),
        compiler_params=_PAR,
    )(patches, wp, bp, pos_patch)


def ln_qkv(x, g, b, wqkv, bqkv):
    return pl.pallas_call(
        functools.partial(_ln_qkv_kernel, eps=LN_EPS),
        out_shape=jax.ShapeDtypeStruct((B, N, 3 * D), ACT_DT),
        grid=(B,),
        in_specs=[pl.BlockSpec((1, N, D), lambda i: (i, 0, 0)),
                  pl.BlockSpec((1, D), lambda i: (0, 0)),
                  pl.BlockSpec((1, D), lambda i: (0, 0)),
                  pl.BlockSpec((D, 3 * D), lambda i: (0, 0)),
                  pl.BlockSpec((1, 3 * D), lambda i: (0, 0))],
        out_specs=pl.BlockSpec((1, N, 3 * D), lambda i: (i, 0, 0)),
        compiler_params=_PAR,
    )(x, g, b, wqkv, bqkv)


def attention_block(qkv, x, wo, bo):
    return pl.pallas_call(
        _attn_kernel,
        out_shape=jax.ShapeDtypeStruct((B, N, D), ACT_DT),
        grid=(B,),
        in_specs=[pl.BlockSpec((1, N, 3 * D), lambda i: (i, 0, 0)),
                  pl.BlockSpec((1, N, D), lambda i: (i, 0, 0)),
                  pl.BlockSpec((D, D), lambda i: (0, 0)),
                  pl.BlockSpec((1, D), lambda i: (0, 0))],
        out_specs=pl.BlockSpec((1, N, D), lambda i: (i, 0, 0)),
        compiler_params=_PAR,
    )(qkv, x, wo, bo)


def ln_mlp(x, g, b, w1, b1, w2, b2):
    return pl.pallas_call(
        functools.partial(_ln_mlp_kernel, eps=LN_EPS),
        out_shape=jax.ShapeDtypeStruct((B, N, D), ACT_DT),
        grid=(B,),
        in_specs=[pl.BlockSpec((1, N, D), lambda i: (i, 0, 0)),
                  pl.BlockSpec((1, D), lambda i: (0, 0)),
                  pl.BlockSpec((1, D), lambda i: (0, 0)),
                  pl.BlockSpec((D, MLP), lambda i: (0, 0)),
                  pl.BlockSpec((1, MLP), lambda i: (0, 0)),
                  pl.BlockSpec((MLP, D), lambda i: (0, 0)),
                  pl.BlockSpec((1, D), lambda i: (0, 0))],
        out_specs=pl.BlockSpec((1, N, D), lambda i: (i, 0, 0)),
        compiler_params=_PAR,
    )(x, g, b, w1, b1, w2, b2)


def head(cls_tok, g, b, w, bias):
    return pl.pallas_call(
        functools.partial(_head_kernel, eps=LN_EPS),
        out_shape=jax.ShapeDtypeStruct((B, CLASSES_PAD), jnp.float32),
        grid=(1,),
        in_specs=[pl.BlockSpec((B, D), lambda i: (0, 0)),
                  pl.BlockSpec((1, D), lambda i: (0, 0)),
                  pl.BlockSpec((1, D), lambda i: (0, 0)),
                  pl.BlockSpec((D, CLASSES_PAD), lambda i: (0, 0)),
                  pl.BlockSpec((1, CLASSES_PAD), lambda i: (0, 0))],
        out_specs=pl.BlockSpec((B, CLASSES_PAD), lambda i: (0, 0)),
    )(cls_tok, g, b, w, bias)


# ---------------- parameter init (deterministic, synthetic) ----------------
def init_params(key):
    def dense(k, fan_in, fan_out):
        w = jax.random.normal(k, (fan_in, fan_out), jnp.float32) * 0.02
        return w, jnp.zeros((fan_out,), jnp.float32)

    keys = iter(jax.random.split(key, 8 + DEPTH * 8))
    params = {}
    # conv_proj: Conv2d(C, D, kernel=P, stride=P) == linear over flattened patches
    conv_w = jax.random.normal(next(keys), (D, C, P, P), jnp.float32) * 0.02
    params["patch_w"] = conv_w.reshape(D, CPP).T.astype(ACT_DT)          # (CPP, D)
    params["patch_b"] = jnp.zeros((1, D), jnp.float32)
    params["cls"] = jax.random.normal(next(keys), (1, 1, D), jnp.float32) * 0.02
    params["pos"] = jax.random.normal(next(keys), (1, N, D), jnp.float32) * 0.02

    scale = 1.0 / (DH ** 0.5)
    blocks = []
    for _ in range(DEPTH):
        blk = {}
        blk["ln1_g"] = jnp.ones((1, D), jnp.float32)
        blk["ln1_b"] = jnp.zeros((1, D), jnp.float32)
        wq, bq = dense(next(keys), D, D)
        wk, bk = dense(next(keys), D, D)
        wv, bv = dense(next(keys), D, D)
        # fold 1/sqrt(dh) into the query projection; fuse Q|K|V into one (D, 3D) weight
        blk["wqkv"] = jnp.concatenate([wq * scale, wk, wv], axis=1).astype(ACT_DT)
        blk["bqkv"] = jnp.concatenate([bq * scale, bk, bv], axis=0).reshape(1, 3 * D)
        wo, bo = dense(next(keys), D, D)
        blk["wo"] = wo.astype(ACT_DT)
        blk["bo"] = bo.reshape(1, D)
        blk["ln2_g"] = jnp.ones((1, D), jnp.float32)
        blk["ln2_b"] = jnp.zeros((1, D), jnp.float32)
        w1, b1 = dense(next(keys), D, MLP)
        blk["w1"] = w1.astype(ACT_DT)
        blk["b1"] = b1.reshape(1, MLP)
        w2, b2 = dense(next(keys), MLP, D)
        blk["w2"] = w2.astype(ACT_DT)
        blk["b2"] = b2.reshape(1, D)
        blocks.append(blk)
    params["blocks"] = blocks

    params["lnf_g"] = jnp.ones((1, D), jnp.float32)
    params["lnf_b"] = jnp.zeros((1, D), jnp.float32)
    hw, hb = dense(next(keys), D, CLASSES)
    # zero-pad the 102-way head to 128 output lanes (sliced back in the wrapper)
    params["head_w"] = jnp.pad(hw, ((0, 0), (0, CLASSES_PAD - CLASSES))).astype(ACT_DT)
    params["head_b"] = jnp.pad(hb, (0, CLASSES_PAD - CLASSES)).reshape(1, CLASSES_PAD)
    return params


# ---------------- forward pass ----------------
def vit_forward(x, params):
    # x: (B, C, IMG, IMG)  NCHW, like PyTorch
    Bb = x.shape[0]
    nph = IMG // P
    npw = IMG // P
    # unfold into non-overlapping patches, flatten in (C, P, P) order to match conv_proj
    patches = (x.reshape(Bb, C, nph, P, npw, P)
                 .transpose(0, 2, 4, 1, 3, 5)
                 .reshape(Bb, NPATCH, CPP)
                 .astype(ACT_DT))

    pos = params["pos"][0]                                          # (N, D) f32
    tok = patch_embed(patches, params["patch_w"], params["patch_b"], pos[1:])  # (B, NPATCH, D)

    cls = (params["cls"][0] + pos[0:1]).astype(ACT_DT)              # (1, D)
    cls = jnp.broadcast_to(cls[None], (Bb, 1, D))
    seq = jnp.concatenate([cls, tok], axis=1)                       # (B, N, D) bf16

    for blk in params["blocks"]:
        qkv = ln_qkv(seq, blk["ln1_g"], blk["ln1_b"], blk["wqkv"], blk["bqkv"])
        seq = attention_block(qkv, seq, blk["wo"], blk["bo"])       # MHSA + Wo + residual
        seq = ln_mlp(seq, blk["ln2_g"], blk["ln2_b"],
                     blk["w1"], blk["b1"], blk["w2"], blk["b2"])    # LN + MLP + residual

    cls_tok = seq[:, 0, :]                                          # (B, D) class tokens
    logits = head(cls_tok, params["lnf_g"], params["lnf_b"],
                  params["head_w"], params["head_b"])               # (B, 128) f32
    return logits[:, :CLASSES]


if __name__ == "__main__":
    key = jax.random.PRNGKey(0)
    pkey, xkey = jax.random.split(key)
    params = init_params(pkey)
    x = jax.random.normal(xkey, (B, C, IMG, IMG), jnp.float32)

    fwd = jax.jit(vit_forward)
    out = fwd(x, params)
    jax.block_until_ready(out)
    assert out.shape == (B, CLASSES) and out.dtype == jnp.float32
    print("KERNEL_OK")
</pallas_src>

<mosaic_0001>
module attributes {stable_mosaic.version = 11 : i64} {
  func.func @_patch_embed_kernel(%arg0: i32, %arg1: memref<1x4x768xbf16, #tpu.memory_space<vmem>>, %arg2: memref<768x128xbf16, #tpu.memory_space<vmem>>, %arg3: memref<1x128xf32, #tpu.memory_space<vmem>>, %arg4: memref<4x128xf32, #tpu.memory_space<vmem>>, %arg5: memref<1x4x128xbf16, #tpu.memory_space<vmem>>) attributes {dimension_semantics = [#tpu.dimension_semantics<parallel>], iteration_bounds = array<i64: 2>, scalar_prefetch = 0 : i64, scratch_operands = 0 : i64, tpu.core_type = #tpu.core_type<tc>, window_params = [{transform_indices = @transform_0, window_bounds = array<i64: 1, 4, 768>}, {pipeline_mode = #tpu.pipeline_mode<synchronous>, transform_indices = @transform_1, window_bounds = array<i64: 768, 128>}, {pipeline_mode = #tpu.pipeline_mode<synchronous>, transform_indices = @transform_2, window_bounds = array<i64: 1, 128>}, {pipeline_mode = #tpu.pipeline_mode<synchronous>, transform_indices = @transform_3, window_bounds = array<i64: 4, 128>}, {transform_indices = @transform_4, window_bounds = array<i64: 1, 4, 128>}]} {
    %c0 = arith.constant 0 : index
    %c0_0 = arith.constant 0 : index
    %c0_1 = arith.constant 0 : index
    %0 = vector.load %arg1[%c0, %c0_0, %c0_1] : memref<1x4x768xbf16, #tpu.memory_space<vmem>>, vector<1x4x768xbf16>
    %1 = vector.shape_cast %0 : vector<1x4x768xbf16> to vector<4x768xbf16>
    %c0_2 = arith.constant 0 : index
    %c0_3 = arith.constant 0 : index
    %2 = vector.load %arg2[%c0_2, %c0_3] : memref<768x128xbf16, #tpu.memory_space<vmem>>, vector<768x128xbf16>
    %cst = arith.constant dense<0.000000e+00> : vector<4x128xf32>
    %3 = tpu.matmul %1, %2, %cst {dimension_numbers = #tpu.dot_dimension_numbers<[1], [0], [0], [1], [0, 0, 1, 1], [], []>} : vector<4x768xbf16>, vector<768x128xbf16>, vector<4x128xf32> -> vector<4x128xf32>
    %c0_4 = arith.constant 0 : index
    %c0_5 = arith.constant 0 : index
    %4 = vector.load %arg3[%c0_4, %c0_5] : memref<1x128xf32, #tpu.memory_space<vmem>>, vector<1x128xf32>
    %5 = vector.broadcast %4 : vector<1x128xf32> to vector<4x128xf32>
    %6 = arith.addf %3, %5 : vector<4x128xf32>
    %c0_6 = arith.constant 0 : index
    %c0_7 = arith.constant 0 : index
    %7 = vector.load %arg4[%c0_6, %c0_7] : memref<4x128xf32, #tpu.memory_space<vmem>>, vector<4x128xf32>
    %8 = arith.addf %6, %7 : vector<4x128xf32>
    %9 = arith.truncf %8 : vector<4x128xf32> to vector<4x128xbf16>
    %c0_8 = arith.constant 0 : index
    %c0_9 = arith.constant 0 : index
    %c0_10 = arith.constant 0 : index
    %10 = vector.load %arg5[%c0_8, %c0_9, %c0_10] : memref<1x4x128xbf16, #tpu.memory_space<vmem>>, vector<1x4x128xbf16>
    %11 = vector.shape_cast %10 : vector<1x4x128xbf16> to vector<4x128xbf16>
    %12 = vector.shape_cast %9 : vector<4x128xbf16> to vector<1x4x128xbf16>
    tpu.vector_store %arg5[%c0_8, %c0_9, %c0_10], %12 {strides = array<i32>} : memref<1x4x128xbf16, #tpu.memory_space<vmem>>, vector<1x4x128xbf16>,
    return
  }
  func.func @transform_0(%arg0: i32) -> (i32, i32, i32) {
    %c0_i32 = arith.constant 0 : i32
    %c0_i32_0 = arith.constant 0 : i32
    %c0_i32_1 = arith.constant 0 : i32
    return %arg0, %c0_i32, %c0_i32_0 : i32, i32, i32
  }
  func.func @transform_1(%arg0: i32) -> (i32, i32) {
    %c0_i32 = arith.constant 0 : i32
    %c0_i32_0 = arith.constant 0 : i32
    %c0_i32_1 = arith.constant 0 : i32
    return %c0_i32, %c0_i32_0 : i32, i32
  }
  func.func @transform_2(%arg0: i32) -> (i32, i32) {
    %c0_i32 = arith.constant 0 : i32
    %c0_i32_0 = arith.constant 0 : i32
    %c0_i32_1 = arith.constant 0 : i32
    return %c0_i32, %c0_i32_0 : i32, i32
  }
  func.func @transform_3(%arg0: i32) -> (i32, i32) {
    %c0_i32 = arith.constant 0 : i32
    %c0_i32_0 = arith.constant 0 : i32
    %c0_i32_1 = arith.constant 0 : i32
    return %c0_i32, %c0_i32_0 : i32, i32
  }
  func.func @transform_4(%arg0: i32) -> (i32, i32, i32) {
    %c0_i32 = arith.constant 0 : i32
    %c0_i32_0 = arith.constant 0 : i32
    %c0_i32_1 = arith.constant 0 : i32
    return %arg0, %c0_i32, %c0_i32_0 : i32, i32, i32
  }
}

module attributes {stable_mosaic.version = 11 : i64} {
  func.func @_attn_kernel(%arg0: i32, %arg1: memref<1x5x384xbf16, #tpu.memory_space<vmem>>, %arg2: memref<1x5x128xbf16, #tpu.memory_space<vmem>>, %arg3: memref<128x128xbf16, #tpu.memory_space<vmem>>, %arg4: memref<1x128xf32, #tpu.memory_space<vmem>>, %arg5: memref<1x5x128xbf16, #tpu.memory_space<vmem>>) attributes {dimension_semantics = [#tpu.dimension_semantics<parallel>], iteration_bounds = array<i64: 2>, scalar_prefetch = 0 : i64, scratch_operands = 0 : i64, tpu.core_type = #tpu.core_type<tc>, window_params = [{transform_indices = @transform_0, window_bounds = array<i64: 1, 5, 384>}, {transform_indices = @transform_1, window_bounds = array<i64: 1, 5, 128>}, {pipeline_mode = #tpu.pipeline_mode<synchronous>, transform_indices = @transform_2, window_bounds = array<i64: 128, 128>}, {pipeline_mode = #tpu.pipeline_mode<synchronous>, transform_indices = @transform_3, window_bounds = array<i64: 1, 128>}, {transform_indices = @transform_4, window_bounds = array<i64: 1, 5, 128>}]} {
    %c0 = arith.constant 0 : index
    %c0_0 = arith.constant 0 : index
    %c0_1 = arith.constant 0 : index
    %0 = vector.load %arg1[%c0, %c0_0, %c0_1] : memref<1x5x384xbf16, #tpu.memory_space<vmem>>, vector<1x5x384xbf16>
    %1 = vector.shape_cast %0 : vector<1x5x384xbf16> to vector<5x384xbf16>
    %c0_2 = arith.constant 0 : index
    %c0_3 = arith.constant 0 : index
    %c0_4 = arith.constant 0 : index
    %2 = vector.load %arg2[%c0_2, %c0_3, %c0_4] : memref<1x5x128xbf16, #tpu.memory_space<vmem>>, vector<1x5x128xbf16>
    %3 = vector.shape_cast %2 : vector<1x5x128xbf16> to vector<5x128xbf16>
    %4 = arith.extf %3 : vector<5x128xbf16> to vector<5x128xf32>
    %c0_5 = arith.constant 0 : index
    %c0_6 = arith.constant 0 : index
    %5 = vector.load %arg4[%c0_5, %c0_6] : memref<1x128xf32, #tpu.memory_space<vmem>>, vector<1x128xf32>
    %6 = vector.broadcast %5 : vector<1x128xf32> to vector<5x128xf32>
    %7 = arith.addf %4, %6 : vector<5x128xf32>
    %8 = vector.extract_strided_slice %1 {offsets = [0, 0], sizes = [5, 32], strides = [1, 1]} : vector<5x384xbf16> to vector<5x32xbf16>
    %9 = vector.extract_strided_slice %1 {offsets = [0, 128], sizes = [5, 32], strides = [1, 1]} : vector<5x384xbf16> to vector<5x32xbf16>
    %10 = vector.extract_strided_slice %1 {offsets = [0, 256], sizes = [5, 32], strides = [1, 1]} : vector<5x384xbf16> to vector<5x32xbf16>
    %cst = arith.constant dense<0.000000e+00> : vector<5x5xf32>
    %11 = tpu.matmul %8, %9, %cst {dimension_numbers = #tpu.dot_dimension_numbers<[1], [1], [0], [0], [0, 0, 1, 0], [], []>} : vector<5x32xbf16>, vector<5x32xbf16>, vector<5x5xf32> -> vector<5x5xf32>
    %cst_7 = arith.constant dense<0xFF800000> : vector<5xf32>
    %12 = vector.multi_reduction <maximumf>, %11, %cst_7 [1] : vector<5x5xf32> to vector<5xf32>
    %13 = vector.shape_cast %12 : vector<5xf32> to vector<5x1xf32>
    %14 = vector.broadcast %13 : vector<5x1xf32> to vector<5x5xf32>
    %15 = arith.subf %11, %14 : vector<5x5xf32>
    %16 = math.exp %15 : vector<5x5xf32>
    %cst_8 = arith.constant dense<0.000000e+00> : vector<5xf32>
    %17 = vector.multi_reduction <add>, %16, %cst_8 [1] : vector<5x5xf32> to vector<5xf32>
    %18 = vector.shape_cast %17 : vector<5xf32> to vector<5x1xf32>
    %19 = tpu.reciprocal %18 {approx = true} : vector<5x1xf32> -> vector<5x1xf32>
    %20 = vector.broadcast %19 : vector<5x1xf32> to vector<5x5xf32>
    %21 = arith.mulf %16, %20 : vector<5x5xf32>
    %22 = arith.truncf %21 : vector<5x5xf32> to vector<5x5xbf16>
    %cst_9 = arith.constant dense<0.000000e+00> : vector<5x32xf32>
    %23 = tpu.matmul %22, %10, %cst_9 {dimension_numbers = #tpu.dot_dimension_numbers<[1], [0], [0], [1], [0, 0, 1, 1], [], []>} : vector<5x5xbf16>, vector<5x32xbf16>, vector<5x32xf32> -> vector<5x32xf32>
    %24 = arith.truncf %23 : vector<5x32xf32> to vector<5x32xbf16>
    %c0_10 = arith.constant 0 : index
    %c0_11 = arith.constant 0 : index
    %25 = vector.load %arg3[%c0_10, %c0_11] : memref<128x128xbf16, #tpu.memory_space<vmem>>, vector<32x128xbf16>
    %cst_12 = arith.constant dense<0.000000e+00> : vector<5x128xf32>
    %26 = tpu.matmul %24, %25, %cst_12 {dimension_numbers = #tpu.dot_dimension_numbers<[1], [0], [0], [1], [0, 0, 1, 1], [], []>} : vector<5x32xbf16>, vector<32x128xbf16>, vector<5x128xf32> -> vector<5x128xf32>
    %27 = arith.addf %7, %26 : vector<5x128xf32>
    %28 = vector.extract_strided_slice %1 {offsets = [0, 32], sizes = [5, 32], strides = [1, 1]} : vector<5x384xbf16> to vector<5x32xbf16>
    %29 = vector.extract_strided_slice %1 {offsets = [0, 160], sizes = [5, 32], strides = [1, 1]} : vector<5x384xbf16> to vector<5x32xbf16>
    %30 = vector.extract_strided_slice %1 {offsets = [0, 288], sizes = [5, 32], strides = [1, 1]} : vector<5x384xbf16> to vector<5x32xbf16>
    %cst_13 = arith.constant dense<0.000000e+00> : vector<5x5xf32>
    %31 = tpu.matmul %28, %29, %cst_13 {dimension_numbers = #tpu.dot_dimension_numbers<[1], [1], [0], [0], [0, 0, 1, 0], [], []>} : vector<5x32xbf16>, vector<5x32xbf16>, vector<5x5xf32> -> vector<5x5xf32>
    %cst_14 = arith.constant dense<0xFF800000> : vector<5xf32>
    %32 = vector.multi_reduction <maximumf>, %31, %cst_14 [1] : vector<5x5xf32> to vector<5xf32>
    %33 = vector.shape_cast %32 : vector<5xf32> to vector<5x1xf32>
    %34 = vector.broadcast %33 : vector<5x1xf32> to vector<5x5xf32>
    %35 = arith.subf %31, %34 : vector<5x5xf32>
    %36 = math.exp %35 : vector<5x5xf32>
    %cst_15 = arith.constant dense<0.000000e+00> : vector<5xf32>
    %37 = vector.multi_reduction <add>, %36, %cst_15 [1] : vector<5x5xf32> to vector<5xf32>
    %38 = vector.shape_cast %37 : vector<5xf32> to vector<5x1xf32>
    %39 = tpu.reciprocal %38 {approx = true} : vector<5x1xf32> -> vector<5x1xf32>
    %40 = vector.broadcast %39 : vector<5x1xf32> to vector<5x5xf32>
    %41 = arith.mulf %36, %40 : vector<5x5xf32>
    %42 = arith.truncf %41 : vector<5x5xf32> to vector<5x5xbf16>
    %cst_16 = arith.constant dense<0.000000e+00> : vector<5x32xf32>
    %43 = tpu.matmul %42, %30, %cst_16 {dimension_numbers = #tpu.dot_dimension_numbers<[1], [0], [0], [1], [0, 0, 1, 1], [], []>} : vector<5x5xbf16>, vector<5x32xbf16>, vector<5x32xf32> -> vector<5x32xf32>
    %44 = arith.truncf %43 : vector<5x32xf32> to vector<5x32xbf16>
    %c32 = arith.constant 32 : index
    %c0_17 = arith.constant 0 : index
    %45 = vector.load %arg3[%c32, %c0_17] : memref<128x128xbf16, #tpu.memory_space<vmem>>, vector<32x128xbf16>
    %cst_18 = arith.constant dense<0.000000e+00> : vector<5x128xf32>
    %46 = tpu.matmul %44, %45, %cst_18 {dimension_numbers = #tpu.dot_dimension_numbers<[1], [0], [0], [1], [0, 0, 1, 1], [], []>} : vector<5x32xbf16>, vector<32x128xbf16>, vector<5x128xf32> -> vector<5x128xf32>
    %47 = arith.addf %27, %46 : vector<5x128xf32>
    %48 = vector.extract_strided_slice %1 {offsets = [0, 64], sizes = [5, 32], strides = [1, 1]} : vector<5x384xbf16> to vector<5x32xbf16>
    %49 = vector.extract_strided_slice %1 {offsets = [0, 192], sizes = [5, 32], strides = [1, 1]} : vector<5x384xbf16> to vector<5x32xbf16>
    %50 = vector.extract_strided_slice %1 {offsets = [0, 320], sizes = [5, 32], strides = [1, 1]} : vector<5x384xbf16> to vector<5x32xbf16>
    %cst_19 = arith.constant dense<0.000000e+00> : vector<5x5xf32>
    %51 = tpu.matmul %48, %49, %cst_19 {dimension_numbers = #tpu.dot_dimension_numbers<[1], [1], [0], [0], [0, 0, 1, 0], [], []>} : vector<5x32xbf16>, vector<5x32xbf16>, vector<5x5xf32> -> vector<5x5xf32>
    %cst_20 = arith.constant dense<0xFF800000> : vector<5xf32>
    %52 = vector.multi_reduction <maximumf>, %51, %cst_20 [1] : vector<5x5xf32> to vector<5xf32>
    %53 = vector.shape_cast %52 : vector<5xf32> to vector<5x1xf32>
    %54 = vector.broadcast %53 : vector<5x1xf32> to vector<5x5xf32>
    %55 = arith.subf %51, %54 : vector<5x5xf32>
    %56 = math.exp %55 : vector<5x5xf32>
    %cst_21 = arith.constant dense<0.000000e+00> : vector<5xf32>
    %57 = vector.multi_reduction <add>, %56, %cst_21 [1] : vector<5x5xf32> to vector<5xf32>
    %58 = vector.shape_cast %57 : vector<5xf32> to vector<5x1xf32>
    %59 = tpu.reciprocal %58 {approx = true} : vector<5x1xf32> -> vector<5x1xf32>
    %60 = vector.broadcast %59 : vector<5x1xf32> to vector<5x5xf32>
    %61 = arith.mulf %56, %60 : vector<5x5xf32>
    %62 = arith.truncf %61 : vector<5x5xf32> to vector<5x5xbf16>
    %cst_22 = arith.constant dense<0.000000e+00> : vector<5x32xf32>
    %63 = tpu.matmul %62, %50, %cst_22 {dimension_numbers = #tpu.dot_dimension_numbers<[1], [0], [0], [1], [0, 0, 1, 1], [], []>} : vector<5x5xbf16>, vector<5x32xbf16>, vector<5x32xf32> -> vector<5x32xf32>
    %64 = arith.truncf %63 : vector<5x32xf32> to vector<5x32xbf16>
    %c64 = arith.constant 64 : index
    %c0_23 = arith.constant 0 : index
    %65 = vector.load %arg3[%c64, %c0_23] : memref<128x128xbf16, #tpu.memory_space<vmem>>, vector<32x128xbf16>
    %cst_24 = arith.constant dense<0.000000e+00> : vector<5x128xf32>
    %66 = tpu.matmul %64, %65, %cst_24 {dimension_numbers = #tpu.dot_dimension_numbers<[1], [0], [0], [1], [0, 0, 1, 1], [], []>} : vector<5x32xbf16>, vector<32x128xbf16>, vector<5x128xf32> -> vector<5x128xf32>
    %67 = arith.addf %47, %66 : vector<5x128xf32>
    %68 = vector.extract_strided_slice %1 {offsets = [0, 96], sizes = [5, 32], strides = [1, 1]} : vector<5x384xbf16> to vector<5x32xbf16>
    %69 = vector.extract_strided_slice %1 {offsets = [0, 224], sizes = [5, 32], strides = [1, 1]} : vector<5x384xbf16> to vector<5x32xbf16>
    %70 = vector.extract_strided_slice %1 {offsets = [0, 352], sizes = [5, 32], strides = [1, 1]} : vector<5x384xbf16> to vector<5x32xbf16>
    %cst_25 = arith.constant dense<0.000000e+00> : vector<5x5xf32>
    %71 = tpu.matmul %68, %69, %cst_25 {dimension_numbers = #tpu.dot_dimension_numbers<[1], [1], [0], [0], [0, 0, 1, 0], [], []>} : vector<5x32xbf16>, vector<5x32xbf16>, vector<5x5xf32> -> vector<5x5xf32>
    %cst_26 = arith.constant dense<0xFF800000> : vector<5xf32>
    %72 = vector.multi_reduction <maximumf>, %71, %cst_26 [1] : vector<5x5xf32> to vector<5xf32>
    %73 = vector.shape_cast %72 : vector<5xf32> to vector<5x1xf32>
    %74 = vector.broadcast %73 : vector<5x1xf32> to vector<5x5xf32>
    %75 = arith.subf %71, %74 : vector<5x5xf32>
    %76 = math.exp %75 : vector<5x5xf32>
    %cst_27 = arith.constant dense<0.000000e+00> : vector<5xf32>
    %77 = vector.multi_reduction <add>, %76, %cst_27 [1] : vector<5x5xf32> to vector<5xf32>
    %78 = vector.shape_cast %77 : vector<5xf32> to vector<5x1xf32>
    %79 = tpu.reciprocal %78 {approx = true} : vector<5x1xf32> -> vector<5x1xf32>
    %80 = vector.broadcast %79 : vector<5x1xf32> to vector<5x5xf32>
    %81 = arith.mulf %76, %80 : vector<5x5xf32>
    %82 = arith.truncf %81 : vector<5x5xf32> to vector<5x5xbf16>
    %cst_28 = arith.constant dense<0.000000e+00> : vector<5x32xf32>
    %83 = tpu.matmul %82, %70, %cst_28 {dimension_numbers = #tpu.dot_dimension_numbers<[1], [0], [0], [1], [0, 0, 1, 1], [], []>} : vector<5x5xbf16>, vector<5x32xbf16>, vector<5x32xf32> -> vector<5x32xf32>
    %84 = arith.truncf %83 : vector<5x32xf32> to vector<5x32xbf16>
    %c96 = arith.constant 96 : index
    %c0_29 = arith.constant 0 : index
    %85 = vector.load %arg3[%c96, %c0_29] : memref<128x128xbf16, #tpu.memory_space<vmem>>, vector<32x128xbf16>
    %cst_30 = arith.constant dense<0.000000e+00> : vector<5x128xf32>
    %86 = tpu.matmul %84, %85, %cst_30 {dimension_numbers = #tpu.dot_dimension_numbers<[1], [0], [0], [1], [0, 0, 1, 1], [], []>} : vector<5x32xbf16>, vector<32x128xbf16>, vector<5x128xf32> -> vector<5x128xf32>
    %87 = arith.addf %67, %86 : vector<5x128xf32>
    %88 = arith.truncf %87 : vector<5x128xf32> to vector<5x128xbf16>
    %c0_31 = arith.constant 0 : index
    %c0_32 = arith.constant 0 : index
    %c0_33 = arith.constant 0 : index
    %89 = vector.load %arg5[%c0_31, %c0_32, %c0_33] : memref<1x5x128xbf16, #tpu.memory_space<vmem>>, vector<1x5x128xbf16>
    %90 = vector.shape_cast %89 : vector<1x5x128xbf16> to vector<5x128xbf16>
    %91 = vector.shape_cast %88 : vector<5x128xbf16> to vector<1x5x128xbf16>
    tpu.vector_store %arg5[%c0_31, %c0_32, %c0_33], %91 {strides = array<i32>} : memref<1x5x128xbf16, #tpu.memory_space<vmem>>, vector<1x5x128xbf16>,
    return
  }
  func.func @transform_0(%arg0: i32) -> (i32, i32, i32) {
    %c0_i32 = arith.constant 0 : i32
    %c0_i32_0 = arith.constant 0 : i32
    %c0_i32_1 = arith.constant 0 : i32
    return %arg0, %c0_i32, %c0_i32_0 : i32, i32, i32
  }
  func.func @transform_1(%arg0: i32) -> (i32, i32, i32) {
    %c0_i32 = arith.constant 0 : i32
    %c0_i32_0 = arith.constant 0 : i32
    %c0_i32_1 = arith.constant 0 : i32
    return %arg0, %c0_i32, %c0_i32_0 : i32, i32, i32
  }
  func.func @transform_2(%arg0: i32) -> (i32, i32) {
    %c0_i32 = arith.constant 0 : i32
    %c0_i32_0 = arith.constant 0 : i32
    %c0_i32_1 = arith.constant 0 : i32
    return %c0_i32, %c0_i32_0 : i32, i32
  }
  func.func @transform_3(%arg0: i32) -> (i32, i32) {
    %c0_i32 = arith.constant 0 : i32
    %c0_i32_0 = arith.constant 0 : i32
    %c0_i32_1 = arith.constant 0 : i32
    return %c0_i32, %c0_i32_0 : i32, i32
  }
  func.func @transform_4(%arg0: i32) -> (i32, i32, i32) {
    %c0_i32 = arith.constant 0 : i32
    %c0_i32_0 = arith.constant 0 : i32
    %c0_i32_1 = arith.constant 0 : i32
    return %arg0, %c0_i32, %c0_i32_0 : i32, i32, i32
  }
}

module attributes {stable_mosaic.version = 11 : i64} {
  func.func @_ln_qkv_kernel(%arg0: i32, %arg1: memref<1x5x128xbf16, #tpu.memory_space<vmem>>, %arg2: memref<1x128xf32, #tpu.memory_space<vmem>>, %arg3: memref<1x128xf32, #tpu.memory_space<vmem>>, %arg4: memref<128x384xbf16, #tpu.memory_space<vmem>>, %arg5: memref<1x384xf32, #tpu.memory_space<vmem>>, %arg6: memref<1x5x384xbf16, #tpu.memory_space<vmem>>) attributes {dimension_semantics = [#tpu.dimension_semantics<parallel>], iteration_bounds = array<i64: 2>, scalar_prefetch = 0 : i64, scratch_operands = 0 : i64, tpu.core_type = #tpu.core_type<tc>, window_params = [{transform_indices = @transform_0, window_bounds = array<i64: 1, 5, 128>}, {pipeline_mode = #tpu.pipeline_mode<synchronous>, transform_indices = @transform_1, window_bounds = array<i64: 1, 128>}, {pipeline_mode = #tpu.pipeline_mode<synchronous>, transform_indices = @transform_2, window_bounds = array<i64: 1, 128>}, {pipeline_mode = #tpu.pipeline_mode<synchronous>, transform_indices = @transform_3, window_bounds = array<i64: 128, 384>}, {pipeline_mode = #tpu.pipeline_mode<synchronous>, transform_indices = @transform_4, window_bounds = array<i64: 1, 384>}, {transform_indices = @transform_5, window_bounds = array<i64: 1, 5, 384>}]} {
    %c0 = arith.constant 0 : index
    %c0_0 = arith.constant 0 : index
    %c0_1 = arith.constant 0 : index
    %0 = vector.load %arg1[%c0, %c0_0, %c0_1] : memref<1x5x128xbf16, #tpu.memory_space<vmem>>, vector<1x5x128xbf16>
    %1 = vector.shape_cast %0 : vector<1x5x128xbf16> to vector<5x128xbf16>
    %2 = arith.extf %1 : vector<5x128xbf16> to vector<5x128xf32>
    %cst = arith.constant dense<0.000000e+00> : vector<5xf32>
    %3 = vector.multi_reduction <add>, %2, %cst [1] : vector<5x128xf32> to vector<5xf32>
    %4 = vector.shape_cast %3 : vector<5xf32> to vector<5x1xf32>
    %cst_2 = arith.constant 1.280000e+02 : f32
    %5 = vector.broadcast %cst_2 : f32 to vector<5x1xf32>
    %6 = arith.divf %4, %5 : vector<5x1xf32>
    %7 = vector.broadcast %6 : vector<5x1xf32> to vector<5x128xf32>
    %8 = arith.subf %2, %7 : vector<5x128xf32>
    %9 = arith.mulf %8, %8 : vector<5x128xf32>
    %cst_3 = arith.constant dense<0.000000e+00> : vector<5xf32>
    %10 = vector.multi_reduction <add>, %9, %cst_3 [1] : vector<5x128xf32> to vector<5xf32>
    %11 = vector.shape_cast %10 : vector<5xf32> to vector<5x1xf32>
    %cst_4 = arith.constant 1.280000e+02 : f32
    %12 = vector.broadcast %cst_4 : f32 to vector<5x1xf32>
    %13 = arith.divf %11, %12 : vector<5x1xf32>
    %cst_5 = arith.constant 9.99999997E-7 : f32
    %14 = vector.broadcast %cst_5 : f32 to vector<5x1xf32>
    %15 = arith.addf %13, %14 : vector<5x1xf32>
    %16 = math.rsqrt %15 : vector<5x1xf32>
    %17 = vector.broadcast %16 : vector<5x1xf32> to vector<5x128xf32>
    %18 = arith.mulf %8, %17 : vector<5x128xf32>
    %c0_6 = arith.constant 0 : index
    %c0_7 = arith.constant 0 : index
    %19 = vector.load %arg2[%c0_6, %c0_7] : memref<1x128xf32, #tpu.memory_space<vmem>>, vector<1x128xf32>
    %20 = vector.broadcast %19 : vector<1x128xf32> to vector<5x128xf32>
    %21 = arith.mulf %18, %20 : vector<5x128xf32>
    %c0_8 = arith.constant 0 : index
    %c0_9 = arith.constant 0 : index
    %22 = vector.load %arg3[%c0_8, %c0_9] : memref<1x128xf32, #tpu.memory_space<vmem>>, vector<1x128xf32>
    %23 = vector.broadcast %22 : vector<1x128xf32> to vector<5x128xf32>
    %24 = arith.addf %21, %23 : vector<5x128xf32>
    %25 = arith.truncf %24 : vector<5x128xf32> to vector<5x128xbf16>
    %c0_10 = arith.constant 0 : index
    %c0_11 = arith.constant 0 : index
    %26 = vector.load %arg4[%c0_10, %c0_11] : memref<128x384xbf16, #tpu.memory_space<vmem>>, vector<128x384xbf16>
    %cst_12 = arith.constant dense<0.000000e+00> : vector<5x384xf32>
    %27 = tpu.matmul %25, %26, %cst_12 {dimension_numbers = #tpu.dot_dimension_numbers<[1], [0], [0], [1], [0, 0, 1, 1], [], []>} : vector<5x128xbf16>, vector<128x384xbf16>, vector<5x384xf32> -> vector<5x384xf32>
    %c0_13 = arith.constant 0 : index
    %c0_14 = arith.constant 0 : index
    %28 = vector.load %arg5[%c0_13, %c0_14] : memref<1x384xf32, #tpu.memory_space<vmem>>, vector<1x384xf32>
    %29 = vector.broadcast %28 : vector<1x384xf32> to vector<5x384xf32>
    %30 = arith.addf %27, %29 : vector<5x384xf32>
    %31 = arith.truncf %30 : vector<5x384xf32> to vector<5x384xbf16>
    %c0_15 = arith.constant 0 : index
    %c0_16 = arith.constant 0 : index
    %c0_17 = arith.constant 0 : index
    %32 = vector.load %arg6[%c0_15, %c0_16, %c0_17] : memref<1x5x384xbf16, #tpu.memory_space<vmem>>, vector<1x5x384xbf16>
    %33 = vector.shape_cast %32 : vector<1x5x384xbf16> to vector<5x384xbf16>
    %34 = vector.shape_cast %31 : vector<5x384xbf16> to vector<1x5x384xbf16>
    tpu.vector_store %arg6[%c0_15, %c0_16, %c0_17], %34 {strides = array<i32>} : memref<1x5x384xbf16, #tpu.memory_space<vmem>>, vector<1x5x384xbf16>,
    return
  }
  func.func @transform_0(%arg0: i32) -> (i32, i32, i32) {
    %c0_i32 = arith.constant 0 : i32
    %c0_i32_0 = arith.constant 0 : i32
    %c0_i32_1 = arith.constant 0 : i32
    return %arg0, %c0_i32, %c0_i32_0 : i32, i32, i32
  }
  func.func @transform_1(%arg0: i32) -> (i32, i32) {
    %c0_i32 = arith.constant 0 : i32
    %c0_i32_0 = arith.constant 0 : i32
    %c0_i32_1 = arith.constant 0 : i32
    return %c0_i32, %c0_i32_0 : i32, i32
  }
  func.func @transform_2(%arg0: i32) -> (i32, i32) {
    %c0_i32 = arith.constant 0 : i32
    %c0_i32_0 = arith.constant 0 : i32
    %c0_i32_1 = arith.constant 0 : i32
    return %c0_i32, %c0_i32_0 : i32, i32
  }
  func.func @transform_3(%arg0: i32) -> (i32, i32) {
    %c0_i32 = arith.constant 0 : i32
    %c0_i32_0 = arith.constant 0 : i32
    %c0_i32_1 = arith.constant 0 : i32
    return %c0_i32, %c0_i32_0 : i32, i32
  }
  func.func @transform_4(%arg0: i32) -> (i32, i32) {
    %c0_i32 = arith.constant 0 : i32
    %c0_i32_0 = arith.constant 0 : i32
    %c0_i32_1 = arith.constant 0 : i32
    return %c0_i32, %c0_i32_0 : i32, i32
  }
  func.func @transform_5(%arg0: i32) -> (i32, i32, i32) {
    %c0_i32 = arith.constant 0 : i32
    %c0_i32_0 = arith.constant 0 : i32
    %c0_i32_1 = arith.constant 0 : i32
    return %arg0, %c0_i32, %c0_i32_0 : i32, i32, i32
  }
}

module attributes {stable_mosaic.version = 11 : i64} {
  func.func @_ln_mlp_kernel(%arg0: i32, %arg1: memref<1x5x128xbf16, #tpu.memory_space<vmem>>, %arg2: memref<1x128xf32, #tpu.memory_space<vmem>>, %arg3: memref<1x128xf32, #tpu.memory_space<vmem>>, %arg4: memref<128x256xbf16, #tpu.memory_space<vmem>>, %arg5: memref<1x256xf32, #tpu.memory_space<vmem>>, %arg6: memref<256x128xbf16, #tpu.memory_space<vmem>>, %arg7: memref<1x128xf32, #tpu.memory_space<vmem>>, %arg8: memref<1x5x128xbf16, #tpu.memory_space<vmem>>) attributes {dimension_semantics = [#tpu.dimension_semantics<parallel>], iteration_bounds = array<i64: 2>, scalar_prefetch = 0 : i64, scratch_operands = 0 : i64, tpu.core_type = #tpu.core_type<tc>, window_params = [{transform_indices = @transform_0, window_bounds = array<i64: 1, 5, 128>}, {pipeline_mode = #tpu.pipeline_mode<synchronous>, transform_indices = @transform_1, window_bounds = array<i64: 1, 128>}, {pipeline_mode = #tpu.pipeline_mode<synchronous>, transform_indices = @transform_2, window_bounds = array<i64: 1, 128>}, {pipeline_mode = #tpu.pipeline_mode<synchronous>, transform_indices = @transform_3, window_bounds = array<i64: 128, 256>}, {pipeline_mode = #tpu.pipeline_mode<synchronous>, transform_indices = @transform_4, window_bounds = array<i64: 1, 256>}, {pipeline_mode = #tpu.pipeline_mode<synchronous>, transform_indices = @transform_5, window_bounds = array<i64: 256, 128>}, {pipeline_mode = #tpu.pipeline_mode<synchronous>, transform_indices = @transform_6, window_bounds = array<i64: 1, 128>}, {transform_indices = @transform_7, window_bounds = array<i64: 1, 5, 128>}]} {
    %c0 = arith.constant 0 : index
    %c0_0 = arith.constant 0 : index
    %c0_1 = arith.constant 0 : index
    %0 = vector.load %arg1[%c0, %c0_0, %c0_1] : memref<1x5x128xbf16, #tpu.memory_space<vmem>>, vector<1x5x128xbf16>
    %1 = vector.shape_cast %0 : vector<1x5x128xbf16> to vector<5x128xbf16>
    %2 = arith.extf %1 : vector<5x128xbf16> to vector<5x128xf32>
    %cst = arith.constant dense<0.000000e+00> : vector<5xf32>
    %3 = vector.multi_reduction <add>, %2, %cst [1] : vector<5x128xf32> to vector<5xf32>
    %4 = vector.shape_cast %3 : vector<5xf32> to vector<5x1xf32>
    %cst_2 = arith.constant 1.280000e+02 : f32
    %5 = vector.broadcast %cst_2 : f32 to vector<5x1xf32>
    %6 = arith.divf %4, %5 : vector<5x1xf32>
    %7 = vector.broadcast %6 : vector<5x1xf32> to vector<5x128xf32>
    %8 = arith.subf %2, %7 : vector<5x128xf32>
    %9 = arith.mulf %8, %8 : vector<5x128xf32>
    %cst_3 = arith.constant dense<0.000000e+00> : vector<5xf32>
    %10 = vector.multi_reduction <add>, %9, %cst_3 [1] : vector<5x128xf32> to vector<5xf32>
    %11 = vector.shape_cast %10 : vector<5xf32> to vector<5x1xf32>
    %cst_4 = arith.constant 1.280000e+02 : f32
    %12 = vector.broadcast %cst_4 : f32 to vector<5x1xf32>
    %13 = arith.divf %11, %12 : vector<5x1xf32>
    %cst_5 = arith.constant 9.99999997E-7 : f32
    %14 = vector.broadcast %cst_5 : f32 to vector<5x1xf32>
    %15 = arith.addf %13, %14 : vector<5x1xf32>
    %16 = math.rsqrt %15 : vector<5x1xf32>
    %17 = vector.broadcast %16 : vector<5x1xf32> to vector<5x128xf32>
    %18 = arith.mulf %8, %17 : vector<5x128xf32>
    %c0_6 = arith.constant 0 : index
    %c0_7 = arith.constant 0 : index
    %19 = vector.load %arg2[%c0_6, %c0_7] : memref<1x128xf32, #tpu.memory_space<vmem>>, vector<1x128xf32>
    %20 = vector.broadcast %19 : vector<1x128xf32> to vector<5x128xf32>
    %21 = arith.mulf %18, %20 : vector<5x128xf32>
    %c0_8 = arith.constant 0 : index
    %c0_9 = arith.constant 0 : index
    %22 = vector.load %arg3[%c0_8, %c0_9] : memref<1x128xf32, #tpu.memory_space<vmem>>, vector<1x128xf32>
    %23 = vector.broadcast %22 : vector<1x128xf32> to vector<5x128xf32>
    %24 = arith.addf %21, %23 : vector<5x128xf32>
    %25 = arith.truncf %24 : vector<5x128xf32> to vector<5x128xbf16>
    %c0_10 = arith.constant 0 : index
    %c0_11 = arith.constant 0 : index
    %26 = vector.load %arg4[%c0_10, %c0_11] : memref<128x256xbf16, #tpu.memory_space<vmem>>, vector<128x256xbf16>
    %cst_12 = arith.constant dense<0.000000e+00> : vector<5x256xf32>
    %27 = tpu.matmul %25, %26, %cst_12 {dimension_numbers = #tpu.dot_dimension_numbers<[1], [0], [0], [1], [0, 0, 1, 1], [], []>} : vector<5x128xbf16>, vector<128x256xbf16>, vector<5x256xf32> -> vector<5x256xf32>
    %c0_13 = arith.constant 0 : index
    %c0_14 = arith.constant 0 : index
    %28 = vector.load %arg5[%c0_13, %c0_14] : memref<1x256xf32, #tpu.memory_space<vmem>>, vector<1x256xf32>
    %29 = vector.broadcast %28 : vector<1x256xf32> to vector<5x256xf32>
    %30 = arith.addf %27, %29 : vector<5x256xf32>
    %cst_15 = arith.constant 5.000000e-01 : f32
    %31 = vector.broadcast %cst_15 : f32 to vector<5x256xf32>
    %32 = arith.mulf %31, %30 : vector<5x256xf32>
    %cst_16 = arith.constant 4.471500e-02 : f32
    %33 = vector.broadcast %cst_16 : f32 to vector<5x256xf32>
    %34 = arith.mulf %33, %30 : vector<5x256xf32>
    %35 = arith.mulf %34, %30 : vector<5x256xf32>
    %36 = arith.mulf %35, %30 : vector<5x256xf32>
    %37 = arith.addf %30, %36 : vector<5x256xf32>
    %cst_17 = arith.constant 0.797884583 : f32
    %38 = vector.broadcast %cst_17 : f32 to vector<5x256xf32>
    %39 = arith.mulf %38, %37 : vector<5x256xf32>
    %40 = math.tanh %39 : vector<5x256xf32>
    %cst_18 = arith.constant 1.000000e+00 : f32
    %41 = vector.broadcast %cst_18 : f32 to vector<5x256xf32>
    %42 = arith.addf %41, %40 : vector<5x256xf32>
    %43 = arith.mulf %32, %42 : vector<5x256xf32>
    %44 = arith.truncf %43 : vector<5x256xf32> to vector<5x256xbf16>
    %c0_19 = arith.constant 0 : index
    %c0_20 = arith.constant 0 : index
    %45 = vector.load %arg6[%c0_19, %c0_20] : memref<256x128xbf16, #tpu.memory_space<vmem>>, vector<256x128xbf16>
    %cst_21 = arith.constant dense<0.000000e+00> : vector<5x128xf32>
    %46 = tpu.matmul %44, %45, %cst_21 {dimension_numbers = #tpu.dot_dimension_numbers<[1], [0], [0], [1], [0, 0, 1, 1], [], []>} : vector<5x256xbf16>, vector<256x128xbf16>, vector<5x128xf32> -> vector<5x128xf32>
    %c0_22 = arith.constant 0 : index
    %c0_23 = arith.constant 0 : index
    %47 = vector.load %arg7[%c0_22, %c0_23] : memref<1x128xf32, #tpu.memory_space<vmem>>, vector<1x128xf32>
    %48 = vector.broadcast %47 : vector<1x128xf32> to vector<5x128xf32>
    %49 = arith.addf %46, %48 : vector<5x128xf32>
    %50 = arith.addf %2, %49 : vector<5x128xf32>
    %51 = arith.truncf %50 : vector<5x128xf32> to vector<5x128xbf16>
    %c0_24 = arith.constant 0 : index
    %c0_25 = arith.constant 0 : index
    %c0_26 = arith.constant 0 : index
    %52 = vector.load %arg8[%c0_24, %c0_25, %c0_26] : memref<1x5x128xbf16, #tpu.memory_space<vmem>>, vector<1x5x128xbf16>
    %53 = vector.shape_cast %52 : vector<1x5x128xbf16> to vector<5x128xbf16>
    %54 = vector.shape_cast %51 : vector<5x128xbf16> to vector<1x5x128xbf16>
    tpu.vector_store %arg8[%c0_24, %c0_25, %c0_26], %54 {strides = array<i32>} : memref<1x5x128xbf16, #tpu.memory_space<vmem>>, vector<1x5x128xbf16>,
    return
  }
  func.func @transform_0(%arg0: i32) -> (i32, i32, i32) {
    %c0_i32 = arith.constant 0 : i32
    %c0_i32_0 = arith.constant 0 : i32
    %c0_i32_1 = arith.constant 0 : i32
    return %arg0, %c0_i32, %c0_i32_0 : i32, i32, i32
  }
  func.func @transform_1(%arg0: i32) -> (i32, i32) {
    %c0_i32 = arith.constant 0 : i32
    %c0_i32_0 = arith.constant 0 : i32
    %c0_i32_1 = arith.constant 0 : i32
    return %c0_i32, %c0_i32_0 : i32, i32
  }
  func.func @transform_2(%arg0: i32) -> (i32, i32) {
    %c0_i32 = arith.constant 0 : i32
    %c0_i32_0 = arith.constant 0 : i32
    %c0_i32_1 = arith.constant 0 : i32
    return %c0_i32, %c0_i32_0 : i32, i32
  }
  func.func @transform_3(%arg0: i32) -> (i32, i32) {
    %c0_i32 = arith.constant 0 : i32
    %c0_i32_0 = arith.constant 0 : i32
    %c0_i32_1 = arith.constant 0 : i32
    return %c0_i32, %c0_i32_0 : i32, i32
  }
  func.func @transform_4(%arg0: i32) -> (i32, i32) {
    %c0_i32 = arith.constant 0 : i32
    %c0_i32_0 = arith.constant 0 : i32
    %c0_i32_1 = arith.constant 0 : i32
    return %c0_i32, %c0_i32_0 : i32, i32
  }
  func.func @transform_5(%arg0: i32) -> (i32, i32) {
    %c0_i32 = arith.constant 0 : i32
    %c0_i32_0 = arith.constant 0 : i32
    %c0_i32_1 = arith.constant 0 : i32
    return %c0_i32, %c0_i32_0 : i32, i32
  }
  func.func @transform_6(%arg0: i32) -> (i32, i32) {
    %c0_i32 = arith.constant 0 : i32
    %c0_i32_0 = arith.constant 0 : i32
    %c0_i32_1 = arith.constant 0 : i32
    return %c0_i32, %c0_i32_0 : i32, i32
  }
  func.func @transform_7(%arg0: i32) -> (i32, i32, i32) {
    %c0_i32 = arith.constant 0 : i32
    %c0_i32_0 = arith.constant 0 : i32
    %c0_i32_1 = arith.constant 0 : i32
    return %arg0, %c0_i32, %c0_i32_0 : i32, i32, i32
  }
}

module attributes {stable_mosaic.version = 11 : i64} {
  func.func @_ln_mlp_kernel(%arg0: i32, %arg1: memref<1x5x128xbf16, #tpu.memory_space<vmem>>, %arg2: memref<1x128xf32, #tpu.memory_space<vmem>>, %arg3: memref<1x128xf32, #tpu.memory_space<vmem>>, %arg4: memref<128x256xbf16, #tpu.memory_space<vmem>>, %arg5: memref<1x256xf32, #tpu.memory_space<vmem>>, %arg6: memref<256x128xbf16, #tpu.memory_space<vmem>>, %arg7: memref<1x128xf32, #tpu.memory_space<vmem>>, %arg8: memref<1x5x128xbf16, #tpu.memory_space<vmem>>) attributes {dimension_semantics = [#tpu.dimension_semantics<parallel>], iteration_bounds = array<i64: 2>, scalar_prefetch = 0 : i64, scratch_operands = 0 : i64, tpu.core_type = #tpu.core_type<tc>, window_params = [{transform_indices = @transform_0, window_bounds = array<i64: 1, 5, 128>}, {pipeline_mode = #tpu.pipeline_mode<synchronous>, transform_indices = @transform_1, window_bounds = array<i64: 1, 128>}, {pipeline_mode = #tpu.pipeline_mode<synchronous>, transform_indices = @transform_2, window_bounds = array<i64: 1, 128>}, {pipeline_mode = #tpu.pipeline_mode<synchronous>, transform_indices = @transform_3, window_bounds = array<i64: 128, 256>}, {pipeline_mode = #tpu.pipeline_mode<synchronous>, transform_indices = @transform_4, window_bounds = array<i64: 1, 256>}, {pipeline_mode = #tpu.pipeline_mode<synchronous>, transform_indices = @transform_5, window_bounds = array<i64: 256, 128>}, {pipeline_mode = #tpu.pipeline_mode<synchronous>, transform_indices = @transform_6, window_bounds = array<i64: 1, 128>}, {transform_indices = @transform_7, window_bounds = array<i64: 1, 5, 128>}]} {
    %c0 = arith.constant 0 : index
    %c0_0 = arith.constant 0 : index
    %c0_1 = arith.constant 0 : index
    %0 = vector.load %arg1[%c0, %c0_0, %c0_1] : memref<1x5x128xbf16, #tpu.memory_space<vmem>>, vector<1x5x128xbf16>
    %1 = vector.shape_cast %0 : vector<1x5x128xbf16> to vector<5x128xbf16>
    %2 = arith.extf %1 : vector<5x128xbf16> to vector<5x128xf32>
    %cst = arith.constant dense<0.000000e+00> : vector<5xf32>
    %3 = vector.multi_reduction <add>, %2, %cst [1] : vector<5x128xf32> to vector<5xf32>
    %4 = vector.shape_cast %3 : vector<5xf32> to vector<5x1xf32>
    %cst_2 = arith.constant 1.280000e+02 : f32
    %5 = vector.broadcast %cst_2 : f32 to vector<5x1xf32>
    %6 = arith.divf %4, %5 : vector<5x1xf32>
    %7 = vector.broadcast %6 : vector<5x1xf32> to vector<5x128xf32>
    %8 = arith.subf %2, %7 : vector<5x128xf32>
    %9 = arith.mulf %8, %8 : vector<5x128xf32>
    %cst_3 = arith.constant dense<0.000000e+00> : vector<5xf32>
    %10 = vector.multi_reduction <add>, %9, %cst_3 [1] : vector<5x128xf32> to vector<5xf32>
    %11 = vector.shape_cast %10 : vector<5xf32> to vector<5x1xf32>
    %cst_4 = arith.constant 1.280000e+02 : f32
    %12 = vector.broadcast %cst_4 : f32 to vector<5x1xf32>
    %13 = arith.divf %11, %12 : vector<5x1xf32>
    %cst_5 = arith.constant 9.99999997E-7 : f32
    %14 = vector.broadcast %cst_5 : f32 to vector<5x1xf32>
    %15 = arith.addf %13, %14 : vector<5x1xf32>
    %16 = math.rsqrt %15 : vector<5x1xf32>
    %17 = vector.broadcast %16 : vector<5x1xf32> to vector<5x128xf32>
    %18 = arith.mulf %8, %17 : vector<5x128xf32>
    %c0_6 = arith.constant 0 : index
    %c0_7 = arith.constant 0 : index
    %19 = vector.load %arg2[%c0_6, %c0_7] : memref<1x128xf32, #tpu.memory_space<vmem>>, vector<1x128xf32>
    %20 = vector.broadcast %19 : vector<1x128xf32> to vector<5x128xf32>
    %21 = arith.mulf %18, %20 : vector<5x128xf32>
    %c0_8 = arith.constant 0 : index
    %c0_9 = arith.constant 0 : index
    %22 = vector.load %arg3[%c0_8, %c0_9] : memref<1x128xf32, #tpu.memory_space<vmem>>, vector<1x128xf32>
    %23 = vector.broadcast %22 : vector<1x128xf32> to vector<5x128xf32>
    %24 = arith.addf %21, %23 : vector<5x128xf32>
    %25 = arith.truncf %24 : vector<5x128xf32> to vector<5x128xbf16>
    %c0_10 = arith.constant 0 : index
    %c0_11 = arith.constant 0 : index
    %26 = vector.load %arg4[%c0_10, %c0_11] : memref<128x256xbf16, #tpu.memory_space<vmem>>, vector<128x256xbf16>
    %cst_12 = arith.constant dense<0.000000e+00> : vector<5x256xf32>
    %27 = tpu.matmul %25, %26, %cst_12 {dimension_numbers = #tpu.dot_dimension_numbers<[1], [0], [0], [1], [0, 0, 1, 1], [], []>} : vector<5x128xbf16>, vector<128x256xbf16>, vector<5x256xf32> -> vector<5x256xf32>
    %c0_13 = arith.constant 0 : index
    %c0_14 = arith.constant 0 : index
    %28 = vector.load %arg5[%c0_13, %c0_14] : memref<1x256xf32, #tpu.memory_space<vmem>>, vector<1x256xf32>
    %29 = vector.broadcast %28 : vector<1x256xf32> to vector<5x256xf32>
    %30 = arith.addf %27, %29 : vector<5x256xf32>
    %cst_15 = arith.constant 5.000000e-01 : f32
    %31 = vector.broadcast %cst_15 : f32 to vector<5x256xf32>
    %32 = arith.mulf %31, %30 : vector<5x256xf32>
    %cst_16 = arith.constant 4.471500e-02 : f32
    %33 = vector.broadcast %cst_16 : f32 to vector<5x256xf32>
    %34 = arith.mulf %33, %30 : vector<5x256xf32>
    %35 = arith.mulf %34, %30 : vector<5x256xf32>
    %36 = arith.mulf %35, %30 : vector<5x256xf32>
    %37 = arith.addf %30, %36 : vector<5x256xf32>
    %cst_17 = arith.constant 0.797884583 : f32
    %38 = vector.broadcast %cst_17 : f32 to vector<5x256xf32>
    %39 = arith.mulf %38, %37 : vector<5x256xf32>
    %40 = math.tanh %39 : vector<5x256xf32>
    %cst_18 = arith.constant 1.000000e+00 : f32
    %41 = vector.broadcast %cst_18 : f32 to vector<5x256xf32>
    %42 = arith.addf %41, %40 : vector<5x256xf32>
    %43 = arith.mulf %32, %42 : vector<5x256xf32>
    %44 = arith.truncf %43 : vector<5x256xf32> to vector<5x256xbf16>
    %c0_19 = arith.constant 0 : index
    %c0_20 = arith.constant 0 : index
    %45 = vector.load %arg6[%c0_19, %c0_20] : memref<256x128xbf16, #tpu.memory_space<vmem>>, vector<256x128xbf16>
    %cst_21 = arith.constant dense<0.000000e+00> : vector<5x128xf32>
    %46 = tpu.matmul %44, %45, %cst_21 {dimension_numbers = #tpu.dot_dimension_numbers<[1], [0], [0], [1], [0, 0, 1, 1], [], []>} : vector<5x256xbf16>, vector<256x128xbf16>, vector<5x128xf32> -> vector<5x128xf32>
    %c0_22 = arith.constant 0 : index
    %c0_23 = arith.constant 0 : index
    %47 = vector.load %arg7[%c0_22, %c0_23] : memref<1x128xf32, #tpu.memory_space<vmem>>, vector<1x128xf32>
    %48 = vector.broadcast %47 : vector<1x128xf32> to vector<5x128xf32>
    %49 = arith.addf %46, %48 : vector<5x128xf32>
    %50 = arith.addf %2, %49 : vector<5x128xf32>
    %51 = arith.truncf %50 : vector<5x128xf32> to vector<5x128xbf16>
    %c0_24 = arith.constant 0 : index
    %c0_25 = arith.constant 0 : index
    %c0_26 = arith.constant 0 : index
    %52 = vector.load %arg8[%c0_24, %c0_25, %c0_26] : memref<1x5x128xbf16, #tpu.memory_space<vmem>>, vector<1x5x128xbf16>
    %53 = vector.shape_cast %52 : vector<1x5x128xbf16> to vector<5x128xbf16>
    %54 = vector.shape_cast %51 : vector<5x128xbf16> to vector<1x5x128xbf16>
    tpu.vector_store %arg8[%c0_24, %c0_25, %c0_26], %54 {strides = array<i32>} : memref<1x5x128xbf16, #tpu.memory_space<vmem>>, vector<1x5x128xbf16>,
    return
  }
  func.func @transform_0(%arg0: i32) -> (i32, i32, i32) {
    %c0_i32 = arith.constant 0 : i32
    %c0_i32_0 = arith.constant 0 : i32
    %c0_i32_1 = arith.constant 0 : i32
    return %arg0, %c0_i32, %c0_i32_0 : i32, i32, i32
  }
  func.func @transform_1(%arg0: i32) -> (i32, i32) {
    %c0_i32 = arith.constant 0 : i32
    %c0_i32_0 = arith.constant 0 : i32
    %c0_i32_1 = arith.constant 0 : i32
    return %c0_i32, %c0_i32_0 : i32, i32
  }
  func.func @transform_2(%arg0: i32) -> (i32, i32) {
    %c0_i32 = arith.constant 0 : i32
    %c0_i32_0 = arith.constant 0 : i32
    %c0_i32_1 = arith.constant 0 : i32
    return %c0_i32, %c0_i32_0 : i32, i32
  }
  func.func @transform_3(%arg0: i32) -> (i32, i32) {
    %c0_i32 = arith.constant 0 : i32
    %c0_i32_0 = arith.constant 0 : i32
    %c0_i32_1 = arith.constant 0 : i32
    return %c0_i32, %c0_i32_0 : i32, i32
  }
  func.func @transform_4(%arg0: i32) -> (i32, i32) {
    %c0_i32 = arith.constant 0 : i32
    %c0_i32_0 = arith.constant 0 : i32
    %c0_i32_1 = arith.constant 0 : i32
    return %c0_i32, %c0_i32_0 : i32, i32
  }
  func.func @transform_5(%arg0: i32) -> (i32, i32) {
    %c0_i32 = arith.constant 0 : i32
    %c0_i32_0 = arith.constant 0 : i32
    %c0_i32_1 = arith.constant 0 : i32
    return %c0_i32, %c0_i32_0 : i32, i32
  }
  func.func @transform_6(%arg0: i32) -> (i32, i32) {
    %c0_i32 = arith.constant 0 : i32
    %c0_i32_0 = arith.constant 0 : i32
    %c0_i32_1 = arith.constant 0 : i32
    return %c0_i32, %c0_i32_0 : i32, i32
  }
  func.func @transform_7(%arg0: i32) -> (i32, i32, i32) {
    %c0_i32 = arith.constant 0 : i32
    %c0_i32_0 = arith.constant 0 : i32
    %c0_i32_1 = arith.constant 0 : i32
    return %arg0, %c0_i32, %c0_i32_0 : i32, i32, i32
  }
}

module attributes {stable_mosaic.version = 11 : i64} {
  func.func @_head_kernel(%arg0: i32, %arg1: memref<2x128xbf16, #tpu.memory_space<vmem>>, %arg2: memref<1x128xf32, #tpu.memory_space<vmem>>, %arg3: memref<1x128xf32, #tpu.memory_space<vmem>>, %arg4: memref<128x128xbf16, #tpu.memory_space<vmem>>, %arg5: memref<1x128xf32, #tpu.memory_space<vmem>>, %arg6: memref<2x128xf32, #tpu.memory_space<vmem>>) attributes {dimension_semantics = [#tpu.dimension_semantics<arbitrary>], iteration_bounds = array<i64: 1>, scalar_prefetch = 0 : i64, scratch_operands = 0 : i64, tpu.core_type = #tpu.core_type<tc>, window_params = [{pipeline_mode = #tpu.pipeline_mode<synchronous>, transform_indices = @transform_0, window_bounds = array<i64: 2, 128>}, {pipeline_mode = #tpu.pipeline_mode<synchronous>, transform_indices = @transform_1, window_bounds = array<i64: 1, 128>}, {pipeline_mode = #tpu.pipeline_mode<synchronous>, transform_indices = @transform_2, window_bounds = array<i64: 1, 128>}, {pipeline_mode = #tpu.pipeline_mode<synchronous>, transform_indices = @transform_3, window_bounds = array<i64: 128, 128>}, {pipeline_mode = #tpu.pipeline_mode<synchronous>, transform_indices = @transform_4, window_bounds = array<i64: 1, 128>}, {pipeline_mode = #tpu.pipeline_mode<synchronous>, transform_indices = @transform_5, window_bounds = array<i64: 2, 128>}]} {
    %c0 = arith.constant 0 : index
    %c0_0 = arith.constant 0 : index
    %0 = vector.load %arg1[%c0, %c0_0] : memref<2x128xbf16, #tpu.memory_space<vmem>>, vector<2x128xbf16>
    %1 = arith.extf %0 : vector<2x128xbf16> to vector<2x128xf32>
    %cst = arith.constant dense<0.000000e+00> : vector<2xf32>
    %2 = vector.multi_reduction <add>, %1, %cst [1] : vector<2x128xf32> to vector<2xf32>
    %3 = vector.shape_cast %2 : vector<2xf32> to vector<2x1xf32>
    %cst_1 = arith.constant 1.280000e+02 : f32
    %4 = vector.broadcast %cst_1 : f32 to vector<2x1xf32>
    %5 = arith.divf %3, %4 : vector<2x1xf32>
    %6 = vector.broadcast %5 : vector<2x1xf32> to vector<2x128xf32>
    %7 = arith.subf %1, %6 : vector<2x128xf32>
    %8 = arith.mulf %7, %7 : vector<2x128xf32>
    %cst_2 = arith.constant dense<0.000000e+00> : vector<2xf32>
    %9 = vector.multi_reduction <add>, %8, %cst_2 [1] : vector<2x128xf32> to vector<2xf32>
    %10 = vector.shape_cast %9 : vector<2xf32> to vector<2x1xf32>
    %cst_3 = arith.constant 1.280000e+02 : f32
    %11 = vector.broadcast %cst_3 : f32 to vector<2x1xf32>
    %12 = arith.divf %10, %11 : vector<2x1xf32>
    %cst_4 = arith.constant 9.99999997E-7 : f32
    %13 = vector.broadcast %cst_4 : f32 to vector<2x1xf32>
    %14 = arith.addf %12, %13 : vector<2x1xf32>
    %15 = math.rsqrt %14 : vector<2x1xf32>
    %16 = vector.broadcast %15 : vector<2x1xf32> to vector<2x128xf32>
    %17 = arith.mulf %7, %16 : vector<2x128xf32>
    %c0_5 = arith.constant 0 : index
    %c0_6 = arith.constant 0 : index
    %18 = vector.load %arg2[%c0_5, %c0_6] : memref<1x128xf32, #tpu.memory_space<vmem>>, vector<1x128xf32>
    %19 = vector.broadcast %18 : vector<1x128xf32> to vector<2x128xf32>
    %20 = arith.mulf %17, %19 : vector<2x128xf32>
    %c0_7 = arith.constant 0 : index
    %c0_8 = arith.constant 0 : index
    %21 = vector.load %arg3[%c0_7, %c0_8] : memref<1x128xf32, #tpu.memory_space<vmem>>, vector<1x128xf32>
    %22 = vector.broadcast %21 : vector<1x128xf32> to vector<2x128xf32>
    %23 = arith.addf %20, %22 : vector<2x128xf32>
    %24 = arith.truncf %23 : vector<2x128xf32> to vector<2x128xbf16>
    %c0_9 = arith.constant 0 : index
    %c0_10 = arith.constant 0 : index
    %25 = vector.load %arg4[%c0_9, %c0_10] : memref<128x128xbf16, #tpu.memory_space<vmem>>, vector<128x128xbf16>
    %cst_11 = arith.constant dense<0.000000e+00> : vector<2x128xf32>
    %26 = tpu.matmul %24, %25, %cst_11 {dimension_numbers = #tpu.dot_dimension_numbers<[1], [0], [0], [1], [0, 0, 1, 1], [], []>} : vector<2x128xbf16>, vector<128x128xbf16>, vector<2x128xf32> -> vector<2x128xf32>
    %c0_12 = arith.constant 0 : index
    %c0_13 = arith.constant 0 : index
    %27 = vector.load %arg5[%c0_12, %c0_13] : memref<1x128xf32, #tpu.memory_space<vmem>>, vector<1x128xf32>
    %28 = vector.broadcast %27 : vector<1x128xf32> to vector<2x128xf32>
    %29 = arith.addf %26, %28 : vector<2x128xf32>
    %c0_14 = arith.constant 0 : index
    %c0_15 = arith.constant 0 : index
    %30 = vector.load %arg6[%c0_14, %c0_15] : memref<2x128xf32, #tpu.memory_space<vmem>>, vector<2x128xf32>
    tpu.vector_store %arg6[%c0_14, %c0_15], %29 {strides = array<i32>} : memref<2x128xf32, #tpu.memory_space<vmem>>, vector<2x128xf32>,
    return
  }
  func.func @transform_0(%arg0: i32) -> (i32, i32) {
    %c0_i32 = arith.constant 0 : i32
    %c0_i32_0 = arith.constant 0 : i32
    %c0_i32_1 = arith.constant 0 : i32
    return %c0_i32, %c0_i32_0 : i32, i32
  }
  func.func @transform_1(%arg0: i32) -> (i32, i32) {
    %c0_i32 = arith.constant 0 : i32
    %c0_i32_0 = arith.constant 0 : i32
    %c0_i32_1 = arith.constant 0 : i32
    return %c0_i32, %c0_i32_0 : i32, i32
  }
  func.func @transform_2(%arg0: i32) -> (i32, i32) {
    %c0_i32 = arith.constant 0 : i32
    %c0_i32_0 = arith.constant 0 : i32
    %c0_i32_1 = arith.constant 0 : i32
    return %c0_i32, %c0_i32_0 : i32, i32
  }
  func.func @transform_3(%arg0: i32) -> (i32, i32) {
    %c0_i32 = arith.constant 0 : i32
    %c0_i32_0 = arith.constant 0 : i32
    %c0_i32_1 = arith.constant 0 : i32
    return %c0_i32, %c0_i32_0 : i32, i32
  }
  func.func @transform_4(%arg0: i32) -> (i32, i32) {
    %c0_i32 = arith.constant 0 : i32
    %c0_i32_0 = arith.constant 0 : i32
    %c0_i32_1 = arith.constant 0 : i32
    return %c0_i32, %c0_i32_0 : i32, i32
  }
  func.func @transform_5(%arg0: i32) -> (i32, i32) {
    %c0_i32 = arith.constant 0 : i32
    %c0_i32_0 = arith.constant 0 : i32
    %c0_i32_1 = arith.constant 0 : i32
    return %c0_i32, %c0_i32_0 : i32, i32
  }
}

</mosaic_0001>

<llo_original>
// kernel: vit_forward.9
$region0: #{vit_forward.9}
  #allocation0 [shape = 'u32[]', space=smem, size = 0x4, offset = 0x4, fixed_abs, tag = 'smem constant byte address 0x4 - core index']
  #allocation1 [shape = 'u32[72,128]{1,0:T(1,128)}', space=vmem, size = 0x9000, scoped, tag = 'internal scratch']
  %s0 = inlined_call_operand.vmem [shape: bf16[2,5,128], index: 0, kind: input, shape index: {}]
  %s1 = inlined_call_operand.vmem [shape: f32[1,128], index: 1, kind: input, shape index: {}]
  %s2 = inlined_call_operand.vmem [shape: f32[1,128], index: 2, kind: input, shape index: {}]
  %s3 = inlined_call_operand.vmem [shape: bf16[128,384], index: 3, kind: input, shape index: {}]
  %s4 = inlined_call_operand.vmem [shape: f32[1,384], index: 4, kind: input, shape index: {}]
  %s5 = inlined_call_operand.vmem [shape: bf16[2,5,384], index: 5, kind: output, shape index: {}]
  %s6 = sld [smem:[#allocation0]]
  $region53: #{vit_forward.9} parent=0
    _
  %s8 = ssub.s32 1, %s6
  %s9 = scalar_select 0, %s8, %s6
  loop: start=0, step=1, limit=4
  $region2: #{vit_forward.9} parent=0 // loop_pre_header
    _
  $region3: #{vit_forward.9} parent=0 // loop_header
    %s11 = sphi 0, %s15
    %p12 = scmp.ge.s32.totalorder %s11, 4
    %s21 = sphi 0, %s23
    %s24 = sphi 0, %s21
    %s25 = sphi 0, %s24
    %s41 = sphi 0, %s25
    %s45 = sphi 0, %s45
    %s47 = sphi 0, %s45
    %s48 = sphi 0, %s47
    %s62 = sphi 0, %s48
    %s66 = sphi 0, %s66
    %s68 = sphi 0, %s66
    %s69 = sphi 0, %s68
    %s83 = sphi 0, %s69
    %s87 = sphi 0, %s87
    %s89 = sphi 0, %s87
    %s90 = sphi 0, %s89
    %s104 = sphi 0, %s90
    %s108 = sphi 0, %s108
    %s110 = sphi 0, %s108
    %s111 = sphi 0, %s110
    %s125 = sphi 0, %s111
    %s131 = sphi 0, %s133
    %s134 = sphi 0, %s131
    %s135 = sphi 0, %s134
    %s151 = sphi 0, %s135
  $region4: #{vit_forward.9} parent=0 // loop_header_branch
    %14 = sbr.rel (%p12) target = $region8
  $region5: #{vit_forward.9} parent=0 // loop_body
    %s16 = ssub.s32 %s11, 1
    %s17 = ssub.s32 %s11, 2
    %s18 = sadd.s32 %s11, 1
    %s19 = ssub.s32 %s11, %s18
    %p20 = scmp.eq.s32.totalorder %s19, 0
    %s22 = sadd.s32 %s21, 1
    %s23 = scalar_select %p20, %s21, %s22
    %p26 = pneg %p20
    %p27 = scmp.eq.s32.totalorder %s11, 1
    %p28 = por %p26, %p27
    %p29 = scmp.ne.s32.totalorder %s21, %s24
    %p30 = scmp.eq.s32.totalorder %s11, 0
    %p31 = por %p29, %p30
    %p32 = scmp.ne.s32.totalorder %s21, %s24
    %p33 = scmp.eq.s32.totalorder %s16, 1
    %p34 = por %p32, %p33
    %p35 = scmp.ne.s32.totalorder %s24, %s25
    %p36 = scmp.eq.s32.totalorder %s16, 0
    %p37 = por %p35, %p36
    %p38 = scmp.ne.s32.totalorder %s24, %s25
    %p39 = scmp.eq.s32.totalorder %s17, 1
    %p40 = por %p38, %p39
    %p42 = scmp.ne.s32.totalorder %s25, %s41
    %p43 = scmp.eq.s32.totalorder %s17, 0
    %p44 = por %p42, %p43
    %s46 = sadd.s32 %s45, 1
    %p49 = scmp.eq.s32.totalorder %s11, 1
    %p50 = scmp.ne.s32.totalorder %s45, %s47
    %p51 = scmp.eq.s32.totalorder %s11, 0
    %p52 = por %p50, %p51
    %p53 = scmp.ne.s32.totalorder %s45, %s47
    %p54 = scmp.eq.s32.totalorder %s16, 1
    %p55 = por %p53, %p54
    %p56 = scmp.ne.s32.totalorder %s47, %s48
    %p57 = scmp.eq.s32.totalorder %s16, 0
    %p58 = por %p56, %p57
    %p59 = scmp.ne.s32.totalorder %s47, %s48
    %p60 = scmp.eq.s32.totalorder %s17, 1
    %p61 = por %p59, %p60
    %p63 = scmp.ne.s32.totalorder %s48, %s62
    %p64 = scmp.eq.s32.totalorder %s17, 0
    %p65 = por %p63, %p64
    %s67 = sadd.s32 %s66, 1
    %p70 = scmp.eq.s32.totalorder %s11, 1
    %p71 = scmp.ne.s32.totalorder %s66, %s68
    %p72 = scmp.eq.s32.totalorder %s11, 0
    %p73 = por %p71, %p72
    %p74 = scmp.ne.s32.totalorder %s66, %s68
    %p75 = scmp.eq.s32.totalorder %s16, 1
    %p76 = por %p74, %p75
    %p77 = scmp.ne.s32.totalorder %s68, %s69
    %p78 = scmp.eq.s32.totalorder %s16, 0
    %p79 = por %p77, %p78
    %p80 = scmp.ne.s32.totalorder %s68, %s69
    %p81 = scmp.eq.s32.totalorder %s17, 1
    %p82 = por %p80, %p81
    %p84 = scmp.ne.s32.totalorder %s69, %s83
    %p85 = scmp.eq.s32.totalorder %s17, 0
    %p86 = por %p84, %p85
    %s88 = sadd.s32 %s87, 1
    %p91 = scmp.eq.s32.totalorder %s11, 1
    %p92 = scmp.ne.s32.totalorder %s87, %s89
    %p93 = scmp.eq.s32.totalorder %s11, 0
    %p94 = por %p92, %p93
    %p95 = scmp.ne.s32.totalorder %s87, %s89
    %p96 = scmp.eq.s32.totalorder %s16, 1
    %p97 = por %p95, %p96
    %p98 = scmp.ne.s32.totalorder %s89, %s90
    %p99 = scmp.eq.s32.totalorder %s16, 0
    %p100 = por %p98, %p99
    %p101 = scmp.ne.s32.totalorder %s89, %s90
    %p102 = scmp.eq.s32.totalorder %s17, 1
    %p103 = por %p101, %p102
    %p105 = scmp.ne.s32.totalorder %s90, %s104
    %p106 = scmp.eq.s32.totalorder %s17, 0
    %p107 = por %p105, %p106
    %s109 = sadd.s32 %s108, 1
    %p112 = scmp.eq.s32.totalorder %s11, 1
    %p113 = scmp.ne.s32.totalorder %s108, %s110
    %p114 = scmp.eq.s32.totalorder %s11, 0
    %p115 = por %p113, %p114
    %p116 = scmp.ne.s32.totalorder %s108, %s110
    %p117 = scmp.eq.s32.totalorder %s16, 1
    %p118 = por %p116, %p117
    %p119 = scmp.ne.s32.totalorder %s110, %s111
    %p120 = scmp.eq.s32.totalorder %s16, 0
    %p121 = por %p119, %p120
    %p122 = scmp.ne.s32.totalorder %s110, %s111
    %p123 = scmp.eq.s32.totalorder %s17, 1
    %p124 = por %p122, %p123
    %p126 = scmp.ne.s32.totalorder %s111, %s125
    %p127 = scmp.eq.s32.totalorder %s17, 0
    %p128 = por %p126, %p127
    %s129 = ssub.s32 %s11, %s18
    %p130 = scmp.eq.s32.totalorder %s129, 0
    %s132 = sadd.s32 %s131, 1
    %s133 = scalar_select %p130, %s131, %s132
    %p136 = pneg %p130
    %p137 = scmp.eq.s32.totalorder %s11, 1
    %p138 = por %p136, %p137
    %p139 = scmp.ne.s32.totalorder %s131, %s134
    %p140 = scmp.eq.s32.totalorder %s11, 0
    %p141 = por %p139, %p140
    %p142 = scmp.ne.s32.totalorder %s131, %s134
    %p143 = scmp.eq.s32.totalorder %s16, 1
    %p144 = por %p142, %p143
    %p145 = scmp.ne.s32.totalorder %s134, %s135
    %p146 = scmp.eq.s32.totalorder %s16, 0
    %p147 = por %p145, %p146
    %p148 = scmp.ne.s32.totalorder %s134, %s135
    %p149 = scmp.eq.s32.totalorder %s17, 1
    %p150 = por %p148, %p149
    %p152 = scmp.ne.s32.totalorder %s135, %s151
    %p153 = scmp.eq.s32.totalorder %s17, 0
    %p154 = por %p152, %p153
    %p155 = scmp.le.s32.totalorder 1, %s11
    %p156 = scmp.lt.s32.totalorder %s11, 3
    %p157 = pnand %p155, %p156
    %p158 = pneg %p157
    // Predicated region
    $region9: #{vit_forward.9} parent=5 // pred_check
      _
    $region10: #{vit_forward.9} parent=5 // pred_check_branch
      %160 = sbr.rel (%p157) target = $region12
    $region11: #{vit_forward.9} parent=5 // pred_region
      %s161 = ssub.s32 %s11, 1
      // Predicated region
      $region13: #{vit_forward.9} parent=11 // pred_check
        %p162 = pneg %p58
      $region14: #{vit_forward.9} parent=11 // pred_check_branch
        %164 = sbr.rel (%p162) target = $region16
      $region15: #{vit_forward.9} parent=11 // pred_region
        _
      $region16: #{vit_forward.9} parent=11 // pred_fallthru
        _
      // Predicated region
      $region17: #{vit_forward.9} parent=11 // pred_check
        %p165 = pneg %p79
      $region18: #{vit_forward.9} parent=11 // pred_check_branch
        %167 = sbr.rel (%p165) target = $region20
      $region19: #{vit_forward.9} parent=11 // pred_region
        _
      $region20: #{vit_forward.9} parent=11 // pred_fallthru
        _
      // Predicated region
      $region21: #{vit_forward.9} parent=11 // pred_check
        %p168 = pneg %p100
      $region22: #{vit_forward.9} parent=11 // pred_check_branch
        %170 = sbr.rel (%p168) target = $region24
      $region23: #{vit_forward.9} parent=11 // pred_region
        _
      $region24: #{vit_forward.9} parent=11 // pred_fallthru
        _
      // Predicated region
      $region25: #{vit_forward.9} parent=11 // pred_check
        %p171 = pneg %p121
      $region26: #{vit_forward.9} parent=11 // pred_check_branch
        %173 = sbr.rel (%p171) target = $region28
      $region27: #{vit_forward.9} parent=11 // pred_region
        _
      $region28: #{vit_forward.9} parent=11 // pred_fallthru
        _
    $region12: #{vit_forward.9} parent=5 // pred_fallthru
      _
    %p174 = scmp.lt.s32.totalorder %s11, 2
    // Predicated region
    $region29: #{vit_forward.9} parent=5 // pred_check
      %p175 = pneg %p174
    $region30: #{vit_forward.9} parent=5 // pred_check_branch
      %177 = sbr.rel (%p175) target = $region32
    $region31: #{vit_forward.9} parent=5 // pred_region
      // Predicated region
      $region33: #{vit_forward.9} parent=31 // pred_check
        %p178 = pneg %p31
      $region34: #{vit_forward.9} parent=31 // pred_check_branch
        %180 = sbr.rel (%p178) target = $region36
      $region35: #{vit_forward.9} parent=31 // pred_region
        %p181 = scmp.lt.s32.totalorder %s11, 1
        %s182 = scalar_select %p181, %s11, 1
        %s183 = smul.addr %s182, 4
        %s184 = scalar_lea.vmem %s0, %s183
      $region36: #{vit_forward.9} parent=31 // pred_fallthru
        _
    $region32: #{vit_forward.9} parent=5 // pred_fallthru
      _
    %p185 = scmp.le.s32.totalorder 1, %s11
    %p186 = scmp.lt.s32.totalorder %s11, 3
    %p187 = pnand %p185, %p186
    %p188 = pneg %p187
    // Predicated region
    $region37: #{vit_forward.9} parent=5 // pred_check
      _
    $region38: #{vit_forward.9} parent=5 // pred_check_branch
      %190 = sbr.rel (%p187) target = $region40
    $region39: #{vit_forward.9} parent=5 // pred_region
      %s191 = ssub.s32 %s11, 1
      %p192 = scmp.lt.s32.totalorder %s16, 1
      %s193 = scalar_select %p192, %s16, 1
      %s194 = smul.addr %s193, 4
      %s195 = scalar_lea.vmem %s0, %s194
      %p196 = pneg %p37
      %p197 = pneg %p34
      %p198 = pneg %p58
      %p199 = pneg %p55
      %p200 = pneg %p79
      %p201 = pneg %p76
      %p202 = pneg %p100
      %p203 = pneg %p97
      %p204 = pneg %p121
      %p205 = pneg %p118
      %p206 = pneg %p147
      %p207 = pneg %p144
      %p208 = scmp.lt.s32.totalorder %s16, 1
      %s209 = scalar_select %p208, %s16, 1
      %s210 = smul.addr %s209, 3
      %s211 = smul.addr %s210, 4
      %s212 = scalar_lea.vmem %s5, %s211
      %p213 = scmp.lt.s32.totalorder %s16, 1
      %s214 = scalar_select %p213, %s16, 1
      %s215 = smul.addr %s214, 4
      %s216 = scalar_lea.vmem %s0, %s215
      %p217 = scmp.lt.s32.totalorder %s16, 1
      %s218 = scalar_select %p217, %s16, 1
      %s219 = smul.addr %s218, 3
      %s220 = smul.addr %s219, 4
      %s221 = scalar_lea.vmem %s5, %s220
      %v222 = vld [vmem:[%s216] sm:$0x7]
      %v223 = vunpack.c.l.bf16 %v222
      %vm224 = vcmask 1044480
      %v225 = vsel %vm224, %v223, 0.0
      %226 = vadd.xlane.f32.xlu0 %v225
      %v227 = vpop.xlane.xlu0 %226
      %v228 = vrcp.pop 128.0
      %v229 = vmul.f32 128.0, %v228
      %v230 = vsub.f32 1.0, %v229
      %v231 = vmul.f32 %v228, %v230
      %v232 = vadd.f32 %v228, %v231
      %vm233 = vweird.f32 %v228
      %v234 = vsel %vm233, %v228, %v232
      %v235 = vmul.f32 %v227, %v234
      %v236 = vsub.f32 %v223, %v235
      %v237 = vmul.f32 %v236, %v236
      %v238 = vsel %vm224, %v237, 0.0
      %239 = vadd.xlane.f32.xlu0 %v238
      %v240 = vpop.xlane.xlu0 %239
      %v241 = vmul.f32 %v240, %v234
      %v242 = vadd.f32 %v241, 1e-06
      %v243 = vrsqrt.pop %v242
      %v244 = vmul.f32 %v243, %v242
      %v245 = vmul.f32 %v244, %v243
      %v246 = vmul.f32 0.5, %v245
      %v247 = vsub.f32 1.5, %v246
      %v248 = vmul.f32 %v243, %v247
      %vm249 = vweird.f32 %v242
      %vm250 = vweird.f32 %v243
      %vm251 = vmor %vm249, %vm250
      %v252 = vsel %vm251, %v243, %v248
      %v253 = vmul.f32 %v236, %v252
      %v254 = vld [vmem:[%s1] sm:$0x1]
      %v256 = vperm.slane %v254, 0
      %v258 = vmul.f32 %v253, %v256
      %v259 = vld [vmem:[%s2] sm:$0x1]
      %v261 = vperm.slane %v259, 0
      %v263 = vadd.f32 %v258, %v261
      %v264 = vpack.c.bf16 %v263, %v263
      %v265 = vld [vmem:[%s3] sm:$0xff]
      %v266 = vld [vmem:[%s3 + $0x8] sm:$0xf]
      %v267 = vld [vmem:[%s3 + $0xc] sm:$0xff]
      %v268 = vld [vmem:[%s3 + $0x14] sm:$0xf]
      %v269 = vld [vmem:[%s3 + $0x18] sm:$0xff]
      %v270 = vld [vmem:[%s3 + $0x20] sm:$0xf]
      %v271 = vld [vmem:[%s3 + $0x24] sm:$0xff]
      %v272 = vld [vmem:[%s3 + $0x2c] sm:$0xf]
      %v273 = vld [vmem:[%s3 + $0x30] sm:$0xff]
      %v274 = vld [vmem:[%s3 + $0x38] sm:$0xf]
      %v275 = vld [vmem:[%s3 + $0x3c] sm:$0xff]
      %v276 = vld [vmem:[%s3 + $0x44] sm:$0xf]
      %v277 = vld [vmem:[%s3 + $0x48] sm:$0xff]
      %v278 = vld [vmem:[%s3 + $0x50] sm:$0xf]
      %v279 = vld [vmem:[%s3 + $0x54] sm:$0xff]
      %v280 = vld [vmem:[%s3 + $0x5c] sm:$0xf]
      %v281 = vld [vmem:[%s3 + $0x60] sm:$0xff]
      %v282 = vld [vmem:[%s3 + $0x68] sm:$0xf]
      %v283 = vld [vmem:[%s3 + $0x6c] sm:$0xff]
      %v284 = vld [vmem:[%s3 + $0x74] sm:$0xf]
      %v285 = vld [vmem:[%s3 + $0x78] sm:$0xff]
      %v286 = vld [vmem:[%s3 + $0x80] sm:$0xf]
      %v287 = vld [vmem:[%s3 + $0x84] sm:$0xff]
      %v288 = vld [vmem:[%s3 + $0x8c] sm:$0xf]
      %v289 = vld [vmem:[%s3 + $0x90] sm:$0xff]
      %v290 = vld [vmem:[%s3 + $0x98] sm:$0xf]
      %v291 = vld [vmem:[%s3 + $0x9c] sm:$0xff]
      %v292 = vld [vmem:[%s3 + $0xa4] sm:$0xf]
      %v293 = vld [vmem:[%s3 + $0xa8] sm:$0xff]
      %v294 = vld [vmem:[%s3 + $0xb0] sm:$0xf]
      %v295 = vld [vmem:[%s3 + $0xb4] sm:$0xff]
      %v296 = vld [vmem:[%s3 + $0xbc] sm:$0xf]
      %v297 = vld [vmem:[%s4] sm:$0x7]
      %v299 = vperm.slane %v297, 0
      %v300 = vperm.slane %v297, 1
      %v301 = vperm.slane %v297, 2
      %v337 = vunpack.c.l.b16 %v265
      %v338 = vunpack.c.h.b16 %v265
      %v339 = vunpack.c.l.b16 %v266
      %v340 = vunpack.c.l.b16 %v267
      %v341 = vunpack.c.h.b16 %v267
      %v342 = vunpack.c.l.b16 %v268
      %v343 = vunpack.c.l.b16 %v269
      %v344 = vunpack.c.h.b16 %v269
      %v345 = vunpack.c.l.b16 %v270
      %v346 = vunpack.c.l.b16 %v271
      %v347 = vunpack.c.h.b16 %v271
      %v348 = vunpack.c.l.b16 %v272
      %v349 = vunpack.c.l.b16 %v273
      %v350 = vunpack.c.h.b16 %v273
      %v351 = vunpack.c.l.b16 %v274
      %v352 = vunpack.c.l.b16 %v275
      %v353 = vunpack.c.h.b16 %v275
      %v354 = vunpack.c.l.b16 %v276
      %v355 = vunpack.c.l.b16 %v277
      %v356 = vunpack.c.h.b16 %v277
      %v357 = vunpack.c.l.b16 %v278
      %v358 = vunpack.c.l.b16 %v279
      %v359 = vunpack.c.h.b16 %v279
      %v360 = vunpack.c.l.b16 %v280
      %v361 = vunpack.c.l.b16 %v281
      %v362 = vunpack.c.h.b16 %v281
      %v363 = vunpack.c.l.b16 %v282
      %v364 = vunpack.c.l.b16 %v283
      %v365 = vunpack.c.h.b16 %v283
      %v366 = vunpack.c.l.b16 %v284
      %v367 = vunpack.c.l.b16 %v285
      %v368 = vunpack.c.h.b16 %v285
      %v369 = vunpack.c.l.b16 %v286
      %v370 = vunpack.c.l.b16 %v287
      %v371 = vunpack.c.h.b16 %v287
      %v372 = vunpack.c.l.b16 %v288
      %v373 = vunpack.c.l.b16 %v289
      %v374 = vunpack.c.h.b16 %v289
      %v375 = vunpack.c.l.b16 %v290
      %v376 = vunpack.c.l.b16 %v291
      %v377 = vunpack.c.h.b16 %v291
      %v378 = vunpack.c.l.b16 %v292
      %v379 = vunpack.c.l.b16 %v293
      %v380 = vunpack.c.h.b16 %v293
      %v381 = vunpack.c.l.b16 %v294
      %v382 = vunpack.c.l.b16 %v295
      %v383 = vunpack.c.h.b16 %v295
      %v384 = vunpack.c.l.b16 %v296
      %v385 = vpack.c.b16 %v340, %v337
      %v386 = vpack.c.b16 %v341, %v338
      %v387 = vpack.c.b16 %v342, %v339
      %v388 = vpack.c.b16 %v346, %v343
      %v389 = vpack.c.b16 %v347, %v344
      %v390 = vpack.c.b16 %v348, %v345
      %v391 = vpack.c.b16 %v352, %v349
      %v392 = vpack.c.b16 %v353, %v350
      %v393 = vpack.c.b16 %v354, %v351
      %v394 = vpack.c.b16 %v358, %v355
      %v395 = vpack.c.b16 %v359, %v356
      %v396 = vpack.c.b16 %v360, %v357
      %v397 = vpack.c.b16 %v364, %v361
      %v398 = vpack.c.b16 %v365, %v362
      %v399 = vpack.c.b16 %v366, %v363
      %v400 = vpack.c.b16 %v370, %v367
      %v401 = vpack.c.b16 %v371, %v368
      %v402 = vpack.c.b16 %v372, %v369
      %v403 = vpack.c.b16 %v376, %v373
      %v404 = vpack.c.b16 %v377, %v374
      %v405 = vpack.c.b16 %v378, %v375
      %v406 = vpack.c.b16 %v382, %v379
      %v407 = vpack.c.b16 %v383, %v380
      %v408 = vpack.c.b16 %v384, %v381
      %433 = vmatpush.bf16.msra.mxu0 %v406
      %434 = vmatpush.bf16.msra.mxu0 %v403
      %435 = vmatpush.bf16.msra.mxu0 %v400
      %436 = vmatpush.bf16.msra.mxu0 %v397
      %437 = vmatpush.bf16.msra.mxu0 %v394
      %438 = vmatpush.bf16.msra.mxu0 %v391
      %439 = vmatpush.bf16.msra.mxu0 %v388
      %440 = vmatpush.bf16.msra.mxu0 %v385
      %441 = vmatmul.bf16.gmra.mxu0 %v264
      %v442 = vpop.f32.mrf.mxu0
      %v443 = vadd.f32 %v299, %v442
      %v444 = vpop.f32.mrf.mxu0
      %445 = vdwg.mxu0
      %446 = vmatpush.bf16.msra.mxu0 %v407
      %447 = vmatpush.bf16.msra.mxu0 %v404
      %448 = vmatpush.bf16.msra.mxu0 %v401
      %449 = vmatpush.bf16.msra.mxu0 %v398
      %450 = vmatpush.bf16.msra.mxu0 %v395
      %451 = vmatpush.bf16.msra.mxu0 %v392
      %452 = vmatpush.bf16.msra.mxu0 %v389
      %453 = vmatpush.bf16.msra.mxu0 %v386
      %454 = vmatmul.bf16.gmra.mxu0 %v264
      %v455 = vpop.f32.mrf.mxu0
      %v456 = vadd.f32 %v300, %v455
      %v457 = vpop.f32.mrf.mxu0
      %458 = vdwg.mxu0
      %459 = vmatpush.bf16.msra.mxu0 %v408
      %460 = vmatpush.bf16.msra.mxu0 %v405
      %461 = vmatpush.bf16.msra.mxu0 %v402
      %462 = vmatpush.bf16.msra.mxu0 %v399
      %463 = vmatpush.bf16.msra.mxu0 %v396
      %464 = vmatpush.bf16.msra.mxu0 %v393
      %465 = vmatpush.bf16.msra.mxu0 %v390
      %466 = vmatpush.bf16.msra.mxu0 %v387
      %467 = vmatmul.bf16.gmra.mxu0 %v264
      %v468 = vpop.f32.mrf.mxu0
      %v469 = vadd.f32 %v301, %v468
      %v470 = vpop.f32.mrf.mxu0
      %471 = vdwg.mxu0
      %v472 = vpack.c.bf16 %v456, %v443
      %v473 = vpack.c.bf16 %v469, %v469
      %vm474 = vcmask 1042432
      %vm475 = vsmask.f32 2304
      %vm476 = vmand %vm474, %vm475
      %vm477 = vcmask 1046532
      %vm478 = vsmask.f32 6400
      %vm479 = vmand %vm477, %vm478
      %vm480 = vmor %vm479, %vm476
      %v481 = vld [vmem:[%s221] sm:$0x77]
      %v482 = vsel %vm480, %v472, %v481
      %483 = vst [vmem:[%s221] sm:$0x77] %v482
      %v484 = vld [vmem:[%s221 + $0x8] sm:$0x7]
      %v485 = vsel %vm476, %v473, %v484
      %486 = vst [vmem:[%s221 + $0x8] sm:$0x7] %v485
      %p487 = scmp.lt.s32.totalorder %s16, 1
      %s488 = scalar_select %p487, %s16, 1
      %s489 = smul.addr %s488, 3
      %s490 = smul.addr %s489, 4
      %s491 = scalar_lea.vmem %s5, %s490
      // Predicated region
      $region41: #{vit_forward.9} parent=39 // pred_check
        %p492 = pneg %p144
      $region42: #{vit_forward.9} parent=39 // pred_check_branch
        %494 = sbr.rel (%p492) target = $region44
      $region43: #{vit_forward.9} parent=39 // pred_region
        _
      $region44: #{vit_forward.9} parent=39 // pred_fallthru
        _
    $region40: #{vit_forward.9} parent=5 // pred_fallthru
      _
    %p495 = scmp.le.s32.totalorder 2, %s11
    // Predicated region
    $region45: #{vit_forward.9} parent=5 // pred_check
      %p496 = pneg %p495
    $region46: #{vit_forward.9} parent=5 // pred_check_branch
      %498 = sbr.rel (%p496) target = $region48
    $region47: #{vit_forward.9} parent=5 // pred_region
      %s499 = ssub.s32 %s11, 2
      // Predicated region
      $region49: #{vit_forward.9} parent=47 // pred_check
        %p500 = pneg %p150
      $region50: #{vit_forward.9} parent=47 // pred_check_branch
        %502 = sbr.rel (%p500) target = $region52
      $region51: #{vit_forward.9} parent=47 // pred_region
        %p503 = scmp.lt.s32.totalorder %s17, 1
        %s504 = scalar_select %p503, %s17, 1
        %s505 = smul.addr %s504, 3
        %s506 = smul.addr %s505, 4
        %s507 = scalar_lea.vmem %s5, %s506
      $region52: #{vit_forward.9} parent=47 // pred_fallthru
        _
    $region48: #{vit_forward.9} parent=5 // pred_fallthru
      _
  $region6: #{vit_forward.9} parent=0 // loop_footer
    %s15 = sadd.s32 1, %s11
  $region7: #{vit_forward.9} parent=0 // loop_footer_branch
    %10 = sbr.rel target = $region3
  $region8: #{vit_forward.9} parent=0 // loop_exit
    _

// kernel: vit_forward.10
$region0: #{vit_forward.10}
  #allocation0 [shape = 'u32[]', space=smem, size = 0x4, offset = 0x4, fixed_abs, tag = 'smem constant byte address 0x4 - core index']
  #allocation1 [shape = 'u32[72,128]{1,0:T(1,128)}', space=vmem, size = 0x9000, scoped, tag = 'internal scratch']
  %s0 = inlined_call_operand.vmem [shape: bf16[2,5,384], index: 0, kind: input, shape index: {}]
  %s1 = inlined_call_operand.vmem [shape: bf16[2,5,128], index: 1, kind: input, shape index: {}]
  %s2 = inlined_call_operand.hbm [shape: bf16[128,128], index: 2, kind: input, shape index: {}]
  %s3 = inlined_call_operand.vmem [shape: f32[1,128], index: 3, kind: input, shape index: {}]
  %s4 = inlined_call_operand.vmem [shape: bf16[2,5,128], index: 4, kind: output, shape index: {}]
  %s5 = sld [smem:[#allocation0]]
  $region53: #{vit_forward.10} parent=0
    _
  %s7 = ssub.s32 1, %s5
  %s8 = scalar_select 0, %s7, %s5
  $region1: #{vit_forward.10} parent=0
    #allocation2 [shape = 'u8[32768]{0}', space=vmem, size = 0x8000, scoped, tag = 'input window, operand 2, single buffered']
    #allocation3 [shape = 's32[2]{0}', space=sflag, size = 0x8, scoped, tag = 'scoped memory for vit_forward.10']
    %9 = vsyncpa [#allocation3], 0
    loop: start=0, step=1, limit=4
    $region2: #{vit_forward.10} parent=1 // loop_pre_header
      _
    $region3: #{vit_forward.10} parent=1 // loop_header
      %s11 = sphi 0, %s15
      %p12 = scmp.ge.s32.totalorder %s11, 4
      %s21 = sphi 0, %s23
      %s24 = sphi 0, %s21
      %s25 = sphi 0, %s24
      %s41 = sphi 0, %s25
      %s47 = sphi 0, %s49
      %s50 = sphi 0, %s47
      %s51 = sphi 0, %s50
      %s67 = sphi 0, %s51
      %s71 = sphi 0, %s71
      %s73 = sphi 0, %s71
      %s74 = sphi 0, %s73
      %s88 = sphi 0, %s74
      %s92 = sphi 0, %s92
      %s94 = sphi 0, %s92
      %s95 = sphi 0, %s94
      %s109 = sphi 0, %s95
      %s115 = sphi 0, %s117
      %s118 = sphi 0, %s115
      %s119 = sphi 0, %s118
      %s135 = sphi 0, %s119
    $region4: #{vit_forward.10} parent=1 // loop_header_branch
      %14 = sbr.rel (%p12) target = $region8
    $region5: #{vit_forward.10} parent=1 // loop_body
      %s16 = ssub.s32 %s11, 1
      %s17 = ssub.s32 %s11, 2
      %s18 = sadd.s32 %s11, 1
      %s19 = ssub.s32 %s11, %s18
      %p20 = scmp.eq.s32.totalorder %s19, 0
      %s22 = sadd.s32 %s21, 1
      %s23 = scalar_select %p20, %s21, %s22
      %p26 = pneg %p20
      %p27 = scmp.eq.s32.totalorder %s11, 1
      %p28 = por %p26, %p27
      %p29 = scmp.ne.s32.totalorder %s21, %s24
      %p30 = scmp.eq.s32.totalorder %s11, 0
      %p31 = por %p29, %p30
      %p32 = scmp.ne.s32.totalorder %s21, %s24
      %p33 = scmp.eq.s32.totalorder %s16, 1
      %p34 = por %p32, %p33
      %p35 = scmp.ne.s32.totalorder %s24, %s25
      %p36 = scmp.eq.s32.totalorder %s16, 0
      %p37 = por %p35, %p36
      %p38 = scmp.ne.s32.totalorder %s24, %s25
      %p39 = scmp.eq.s32.totalorder %s17, 1
      %p40 = por %p38, %p39
      %p42 = scmp.ne.s32.totalorder %s25, %s41
      %p43 = scmp.eq.s32.totalorder %s17, 0
      %p44 = por %p42, %p43
      %s45 = ssub.s32 %s11, %s18
      %p46 = scmp.eq.s32.totalorder %s45, 0
      %s48 = sadd.s32 %s47, 1
      %s49 = scalar_select %p46, %s47, %s48
      %p52 = pneg %p46
      %p53 = scmp.eq.s32.totalorder %s11, 1
      %p54 = por %p52, %p53
      %p55 = scmp.ne.s32.totalorder %s47, %s50
      %p56 = scmp.eq.s32.totalorder %s11, 0
      %p57 = por %p55, %p56
      %p58 = scmp.ne.s32.totalorder %s47, %s50
      %p59 = scmp.eq.s32.totalorder %s16, 1
      %p60 = por %p58, %p59
      %p61 = scmp.ne.s32.totalorder %s50, %s51
      %p62 = scmp.eq.s32.totalorder %s16, 0
      %p63 = por %p61, %p62
      %p64 = scmp.ne.s32.totalorder %s50, %s51
      %p65 = scmp.eq.s32.totalorder %s17, 1
      %p66 = por %p64, %p65
      %p68 = scmp.ne.s32.totalorder %s51, %s67
      %p69 = scmp.eq.s32.totalorder %s17, 0
      %p70 = por %p68, %p69
      %s72 = sadd.s32 %s71, 1
      %p75 = scmp.eq.s32.totalorder %s11, 1
      %p76 = scmp.ne.s32.totalorder %s71, %s73
      %p77 = scmp.eq.s32.totalorder %s11, 0
      %p78 = por %p76, %p77
      %p79 = scmp.ne.s32.totalorder %s71, %s73
      %p80 = scmp.eq.s32.totalorder %s16, 1
      %p81 = por %p79, %p80
      %p82 = scmp.ne.s32.totalorder %s73, %s74
      %p83 = scmp.eq.s32.totalorder %s16, 0
      %p84 = por %p82, %p83
      %p85 = scmp.ne.s32.totalorder %s73, %s74
      %p86 = scmp.eq.s32.totalorder %s17, 1
      %p87 = por %p85, %p86
      %p89 = scmp.ne.s32.totalorder %s74, %s88
      %p90 = scmp.eq.s32.totalorder %s17, 0
      %p91 = por %p89, %p90
      %s93 = sadd.s32 %s92, 1
      %p96 = scmp.eq.s32.totalorder %s11, 1
      %p97 = scmp.ne.s32.totalorder %s92, %s94
      %p98 = scmp.eq.s32.totalorder %s11, 0
      %p99 = por %p97, %p98
      %p100 = scmp.ne.s32.totalorder %s92, %s94
      %p101 = scmp.eq.s32.totalorder %s16, 1
      %p102 = por %p100, %p101
      %p103 = scmp.ne.s32.totalorder %s94, %s95
      %p104 = scmp.eq.s32.totalorder %s16, 0
      %p105 = por %p103, %p104
      %p106 = scmp.ne.s32.totalorder %s94, %s95
      %p107 = scmp.eq.s32.totalorder %s17, 1
      %p108 = por %p106, %p107
      %p110 = scmp.ne.s32.totalorder %s95, %s109
      %p111 = scmp.eq.s32.totalorder %s17, 0
      %p112 = por %p110, %p111
      %s113 = ssub.s32 %s11, %s18
      %p114 = scmp.eq.s32.totalorder %s113, 0
      %s116 = sadd.s32 %s115, 1
      %s117 = scalar_select %p114, %s115, %s116
      %p120 = pneg %p114
      %p121 = scmp.eq.s32.totalorder %s11, 1
      %p122 = por %p120, %p121
      %p123 = scmp.ne.s32.totalorder %s115, %s118
      %p124 = scmp.eq.s32.totalorder %s11, 0
      %p125 = por %p123, %p124
      %p126 = scmp.ne.s32.totalorder %s115, %s118
      %p127 = scmp.eq.s32.totalorder %s16, 1
      %p128 = por %p126, %p127
      %p129 = scmp.ne.s32.totalorder %s118, %s119
      %p130 = scmp.eq.s32.totalorder %s16, 0
      %p131 = por %p129, %p130
      %p132 = scmp.ne.s32.totalorder %s118, %s119
      %p133 = scmp.eq.s32.totalorder %s17, 1
      %p134 = por %p132, %p133
      %p136 = scmp.ne.s32.totalorder %s119, %s135
      %p137 = scmp.eq.s32.totalorder %s17, 0
      %p138 = por %p136, %p137
      %p139 = scmp.le.s32.totalorder 1, %s11
      %p140 = scmp.lt.s32.totalorder %s11, 3
      %p141 = pnand %p139, %p140
      %p142 = pneg %p141
      // Predicated region
      $region9: #{vit_forward.10} parent=5 // pred_check
        _
      $region10: #{vit_forward.10} parent=5 // pred_check_branch
        %144 = sbr.rel (%p141) target = $region12
      $region11: #{vit_forward.10} parent=5 // pred_region
        %s145 = ssub.s32 %s11, 1
        // Predicated region
        $region13: #{vit_forward.10} parent=11 // pred_check
          %p146 = pneg %p84
        $region14: #{vit_forward.10} parent=11 // pred_check_branch
          %148 = sbr.rel (%p146) target = $region16
        $region15: #{vit_forward.10} parent=11 // pred_region
          %150 = vsyncadd [#allocation3], 0
          %s151 = sshll.u32 %s2, 4
          %s152 = int_to_ptr.hbm [resolvable:$true] %s151
          %s153 = sshll.u32 [#allocation2], 4
          %s154 = int_to_ptr.vmem [resolvable:$true] %s153
          %159 = dma.hbm_to_vmem [thread:$0]  %s152, 1024, %s154, [#allocation3], 64, 64, 4
        $region16: #{vit_forward.10} parent=11 // pred_fallthru
          _
        // Predicated region
        $region17: #{vit_forward.10} parent=11 // pred_check
          %p160 = pneg %p105
        $region18: #{vit_forward.10} parent=11 // pred_check_branch
          %162 = sbr.rel (%p160) target = $region20
        $region19: #{vit_forward.10} parent=11 // pred_region
          _
        $region20: #{vit_forward.10} parent=11 // pred_fallthru
          _
      $region12: #{vit_forward.10} parent=5 // pred_fallthru
        _
      %p163 = scmp.lt.s32.totalorder %s11, 2
      // Predicated region
      $region21: #{vit_forward.10} parent=5 // pred_check
        %p164 = pneg %p163
      $region22: #{vit_forward.10} parent=5 // pred_check_branch
        %166 = sbr.rel (%p164) target = $region24
      $region23: #{vit_forward.10} parent=5 // pred_region
        // Predicated region
        $region25: #{vit_forward.10} parent=23 // pred_check
          %p167 = pneg %p31
        $region26: #{vit_forward.10} parent=23 // pred_check_branch
          %169 = sbr.rel (%p167) target = $region28
        $region27: #{vit_forward.10} parent=23 // pred_region
          %p170 = scmp.lt.s32.totalorder %s11, 1
          %s171 = scalar_select %p170, %s11, 1
          %s172 = smul.addr %s171, 3
          %s173 = smul.addr %s172, 4
          %s174 = scalar_lea.vmem %s0, %s173
        $region28: #{vit_forward.10} parent=23 // pred_fallthru
          _
        // Predicated region
        $region29: #{vit_forward.10} parent=23 // pred_check
          %p175 = pneg %p57
        $region30: #{vit_forward.10} parent=23 // pred_check_branch
          %177 = sbr.rel (%p175) target = $region32
        $region31: #{vit_forward.10} parent=23 // pred_region
          %p178 = scmp.lt.s32.totalorder %s11, 1
          %s179 = scalar_select %p178, %s11, 1
          %s180 = smul.addr %s179, 4
          %s181 = scalar_lea.vmem %s1, %s180
        $region32: #{vit_forward.10} parent=23 // pred_fallthru
          _
      $region24: #{vit_forward.10} parent=5 // pred_fallthru
        _
      %p182 = scmp.le.s32.totalorder 1, %s11
      %p183 = scmp.lt.s32.totalorder %s11, 3
      %p184 = pnand %p182, %p183
      %p185 = pneg %p184
      // Predicated region
      $region33: #{vit_forward.10} parent=5 // pred_check
        _
      $region34: #{vit_forward.10} parent=5 // pred_check_branch
        %187 = sbr.rel (%p184) target = $region36
      $region35: #{vit_forward.10} parent=5 // pred_region
        %s188 = ssub.s32 %s11, 1
        // Predicated region
        $region37: #{vit_forward.10} parent=35 // pred_check
          %p189 = pneg %p84
        $region38: #{vit_forward.10} parent=35 // pred_check_branch
          %191 = sbr.rel (%p189) target = $region40
        $region39: #{vit_forward.10} parent=35 // pred_region
          %193 = dma.done [#allocation3], 1024
        $region40: #{vit_forward.10} parent=35 // pred_fallthru
          _
        %p194 = scmp.lt.s32.totalorder %s16, 1
        %s195 = scalar_select %p194, %s16, 1
        %s196 = smul.addr %s195, 3
        %s197 = smul.addr %s196, 4
        %s198 = scalar_lea.vmem %s0, %s197
        %p199 = pneg %p37
        %p200 = pneg %p34
        %p201 = scmp.lt.s32.totalorder %s16, 1
        %s202 = scalar_select %p201, %s16, 1
        %s203 = smul.addr %s202, 4
        %s204 = scalar_lea.vmem %s1, %s203
        %p205 = pneg %p63
        %p206 = pneg %p60
        %p207 = pneg %p84
        %p208 = pneg %p81
        %p209 = pneg %p105
        %p210 = pneg %p102
        %p211 = pneg %p131
        %p212 = pneg %p128
        %p213 = scmp.lt.s32.totalorder %s16, 1
        %s214 = scalar_select %p213, %s16, 1
        %s215 = smul.addr %s214, 4
        %s216 = scalar_lea.vmem %s4, %s215
        %p217 = scmp.lt.s32.totalorder %s16, 1
        %s218 = scalar_select %p217, %s16, 1
        %s219 = smul.addr %s218, 3
        %s220 = smul.addr %s219, 4
        %s221 = scalar_lea.vmem %s0, %s220
        %p222 = scmp.lt.s32.totalorder %s16, 1
        %s223 = scalar_select %p222, %s16, 1
        %s224 = smul.addr %s223, 4
        %s225 = scalar_lea.vmem %s1, %s224
        %p226 = scmp.lt.s32.totalorder %s16, 1
        %s227 = scalar_select %p226, %s16, 1
        %s228 = smul.addr %s227, 4
        %s229 = scalar_lea.vmem %s4, %s228
        %v231 = vld [vmem:[%s221] sm:$0x77]
        %v232 = vld [vmem:[%s221 + $0x8] sm:$0x7]
        %v233 = vld [vmem:[%s225] sm:$0x7]
        %v234 = vunpack.c.l.bf16 %v233
        %v235 = vld [vmem:[%s3] sm:$0x1]
        %v237 = vperm.slane %v235, 0
        %v239 = vadd.f32 %v234, %v237
        %v241 = vunpack.c.h.b16 %v231
        %v242 = vpack.c.b16 %v241, %v241
        %vm243 = vcmask 261120
        %v245 = vsel %vm243, %v231, 0
        %v248 = vsel %vm243, %v242, 0
        %250 = vmatpush.bf16.xpose.msra.mxu0 0
        %251 = vmatpush.bf16.xpose.msra.mxu0 0
        %252 = vmatpush.bf16.xpose.msra.mxu0 0
        %253 = vmatpush.bf16.xpose.msra.mxu0 0
        %254 = vmatpush.bf16.xpose.msra.mxu0 0
        %255 = vmatpush.bf16.xpose.msra.mxu0 0
        %256 = vmatpush.bf16.xpose.msra.mxu0 0
        %257 = vmatpush.bf16.xpose.msra.mxu0 %v248
        %258 = vmatmul.bf16.gmra.mxu0 %v245
        %v259 = vpop.f32.mrf.mxu0
        %v260 = vadd.f32 0.0, %v259
        %v261 = vpop.f32.mrf.mxu0
        %262 = vdwg.mxu0
        %vm263 = vcmask 36864
        %v264 = vsel %vm263, %v260, -inf
        %265 = vmax.xlane.f32.xlu0 %v264
        %v266 = vpop.xlane.xlu0 %265
        %v267 = vsub.f32 %v260, %v266
        %v268 = vmul.f32 %v267, 1.442695
        %v269 = vpow.pop %v268
        %v270 = vsel %vm263, %v269, 0.0
        %271 = vadd.xlane.f32.xlu0 %v270
        %v272 = vpop.xlane.xlu0 %271
        %v273 = vrcp.pop %v272
        %v274 = vmul.f32 %v269, %v273
        %v275 = vpack.c.bf16 %v274, %v274
        %vm276 = vcmask 39936
        %v278 = vsel %vm276, %v275, 0
        %vm280 = vcmask 1041408
        %vm281 = vcmask 1042432
        %v282 = vsel %vm280, 4294967295, 65535
        %v283 = vsel %vm281, %v282, 0
        %v285 = vand.u32 %v232, %v283
        %287 = vmatpush.bf16.msra.mxu0 0
        %288 = vmatpush.bf16.msra.mxu0 0
        %289 = vmatpush.bf16.msra.mxu0 0
        %290 = vmatpush.bf16.msra.mxu0 0
        %291 = vmatpush.bf16.msra.mxu0 0
        %292 = vmatpush.bf16.msra.mxu0 0
        %293 = vmatpush.bf16.msra.mxu0 0
        %294 = vmatpush.bf16.msra.mxu0 %v285
        %295 = vmatmul.bf16.gmra.mxu0 %v278
        %v296 = vpop.f32.mrf.mxu0
        %v297 = vadd.f32 0.0, %v296
        %v298 = vpop.f32.mrf.mxu0
        %299 = vdwg.mxu0
        %v300 = vpack.c.bf16 %v297, %v297
        %v301 = vld [vmem:[#allocation2] sm:$0xf]
        %v302 = vld [vmem:[#allocation2 + $0x4] sm:$0xf]
        %v303 = vld [vmem:[#allocation2 + $0x8] sm:$0xf]
        %v304 = vld [vmem:[#allocation2 + $0xc] sm:$0xf]
        %v309 = vunpack.c.l.b16 %v301
        %v310 = vunpack.c.l.b16 %v302
        %v311 = vunpack.c.l.b16 %v303
        %v312 = vunpack.c.l.b16 %v304
        %v313 = vpack.c.b16 %v310, %v309
        %v314 = vpack.c.b16 %v312, %v311
        %v318 = vsel %vm243, %v300, 0
        %320 = vmatpush.bf16.msra.mxu0 0
        %321 = vmatpush.bf16.msra.mxu0 0
        %322 = vmatpush.bf16.msra.mxu0 0
        %323 = vmatpush.bf16.msra.mxu0 0
        %324 = vmatpush.bf16.msra.mxu0 0
        %325 = vmatpush.bf16.msra.mxu0 0
        %326 = vmatpush.bf16.msra.mxu0 %v314
        %327 = vmatpush.bf16.msra.mxu0 %v313
        %328 = vmatmul.bf16.gmra.mxu0 %v318
        %v329 = vpop.f32.mrf.mxu0
        %v330 = vadd.f32 0.0, %v329
        %v331 = vpop.f32.mrf.mxu0
        %332 = vdwg.mxu0
        %v333 = vadd.f32 %v239, %v330
        %v334 = vunpack.c.l.b16 %v231
        %v335 = vpack.c.b16 %v334, %v334
        %336 = vrot.lane.b32.xlu0 %v335, 96
        %v337 = vpop.permute.xlu0 %336
        %338 = vrot.lane.b32.xlu0 %v242, 96
        %v339 = vpop.permute.xlu0 %338
        %v341 = vsel %vm243, %v337, 0
        %v344 = vsel %vm243, %v339, 0
        %346 = vmatpush.bf16.xpose.msra.mxu0 0
        %347 = vmatpush.bf16.xpose.msra.mxu0 0
        %348 = vmatpush.bf16.xpose.msra.mxu0 0
        %349 = vmatpush.bf16.xpose.msra.mxu0 0
        %350 = vmatpush.bf16.xpose.msra.mxu0 0
        %351 = vmatpush.bf16.xpose.msra.mxu0 0
        %352 = vmatpush.bf16.xpose.msra.mxu0 0
        %353 = vmatpush.bf16.xpose.msra.mxu0 %v344
        %354 = vmatmul.bf16.gmra.mxu0 %v341
        %v355 = vpop.f32.mrf.mxu0
        %v356 = vadd.f32 0.0, %v355
        %v357 = vpop.f32.mrf.mxu0
        %358 = vdwg.mxu0
        %v359 = vsel %vm263, %v356, -inf
        %360 = vmax.xlane.f32.xlu0 %v359
        %v361 = vpop.xlane.xlu0 %360
        %v362 = vsub.f32 %v356, %v361
        %v363 = vmul.f32 %v362, 1.442695
        %v364 = vpow.pop %v363
        %v365 = vsel %vm263, %v364, 0.0
        %366 = vadd.xlane.f32.xlu0 %v365
        %v367 = vpop.xlane.xlu0 %366
        %v368 = vrcp.pop %v367
        %v369 = vmul.f32 %v364, %v368
        %v370 = vpack.c.bf16 %v369, %v369
        %v372 = vunpack.c.l.b16 %v232
        %v373 = vpack.c.b16 %v372, %v372
        %374 = vrot.lane.b32.xlu0 %v373, 96
        %v375 = vpop.permute.xlu0 %374
        %v377 = vsel %vm276, %v370, 0
        %v380 = vand.u32 %v375, %v283
        %382 = vmatpush.bf16.msra.mxu0 0
        %383 = vmatpush.bf16.msra.mxu0 0
        %384 = vmatpush.bf16.msra.mxu0 0
        %385 = vmatpush.bf16.msra.mxu0 0
        %386 = vmatpush.bf16.msra.mxu0 0
        %387 = vmatpush.bf16.msra.mxu0 0
        %388 = vmatpush.bf16.msra.mxu0 0
        %389 = vmatpush.bf16.msra.mxu0 %v380
        %390 = vmatmul.bf16.gmra.mxu0 %v377
        %v391 = vpop.f32.mrf.mxu0
        %v392 = vadd.f32 0.0, %v391
        %v393 = vpop.f32.mrf.mxu0
        %394 = vdwg.mxu0
        %v395 = vpack.c.bf16 %v392, %v392
        %v396 = vld [vmem:[#allocation2 + $0x10] sm:$0xf]
        %v397 = vld [vmem:[#allocation2 + $0x14] sm:$0xf]
        %v398 = vld [vmem:[#allocation2 + $0x18] sm:$0xf]
        %v399 = vld [vmem:[#allocation2 + $0x1c] sm:$0xf]
        %v404 = vunpack.c.l.b16 %v396
        %v405 = vunpack.c.l.b16 %v397
        %v406 = vunpack.c.l.b16 %v398
        %v407 = vunpack.c.l.b16 %v399
        %v408 = vpack.c.b16 %v405, %v404
        %v409 = vpack.c.b16 %v407, %v406
        %v413 = vsel %vm243, %v395, 0
        %415 = vmatpush.bf16.msra.mxu0 0
        %416 = vmatpush.bf16.msra.mxu0 0
        %417 = vmatpush.bf16.msra.mxu0 0
        %418 = vmatpush.bf16.msra.mxu0 0
        %419 = vmatpush.bf16.msra.mxu0 0
        %420 = vmatpush.bf16.msra.mxu0 0
        %421 = vmatpush.bf16.msra.mxu0 %v409
        %422 = vmatpush.bf16.msra.mxu0 %v408
        %423 = vmatmul.bf16.gmra.mxu0 %v413
        %v424 = vpop.f32.mrf.mxu0
        %v425 = vadd.f32 0.0, %v424
        %v426 = vpop.f32.mrf.mxu0
        %427 = vdwg.mxu0
        %v428 = vadd.f32 %v333, %v425
        %429 = vrot.lane.b32.xlu0 %v335, 64
        %v430 = vpop.permute.xlu0 %429
        %431 = vrot.lane.b32.xlu0 %v242, 64
        %v432 = vpop.permute.xlu0 %431
        %v434 = vsel %vm243, %v430, 0
        %v437 = vsel %vm243, %v432, 0
        %439 = vmatpush.bf16.xpose.msra.mxu0 0
        %440 = vmatpush.bf16.xpose.msra.mxu0 0
        %441 = vmatpush.bf16.xpose.msra.mxu0 0
        %442 = vmatpush.bf16.xpose.msra.mxu0 0
        %443 = vmatpush.bf16.xpose.msra.mxu0 0
        %444 = vmatpush.bf16.xpose.msra.mxu0 0
        %445 = vmatpush.bf16.xpose.msra.mxu0 0
        %446 = vmatpush.bf16.xpose.msra.mxu0 %v437
        %447 = vmatmul.bf16.gmra.mxu0 %v434
        %v448 = vpop.f32.mrf.mxu0
        %v449 = vadd.f32 0.0, %v448
        %v450 = vpop.f32.mrf.mxu0
        %451 = vdwg.mxu0
        %v452 = vsel %vm263, %v449, -inf
        %453 = vmax.xlane.f32.xlu0 %v452
        %v454 = vpop.xlane.xlu0 %453
        %v455 = vsub.f32 %v449, %v454
        %v456 = vmul.f32 %v455, 1.442695
        %v457 = vpow.pop %v456
        %v458 = vsel %vm263, %v457, 0.0
        %459 = vadd.xlane.f32.xlu0 %v458
        %v460 = vpop.xlane.xlu0 %459
        %v461 = vrcp.pop %v460
        %v462 = vmul.f32 %v457, %v461
        %v463 = vpack.c.bf16 %v462, %v462
        %464 = vrot.lane.b32.xlu0 %v373, 64
        %v465 = vpop.permute.xlu0 %464
        %v467 = vsel %vm276, %v463, 0
        %v470 = vand.u32 %v465, %v283
        %472 = vmatpush.bf16.msra.mxu0 0
        %473 = vmatpush.bf16.msra.mxu0 0
        %474 = vmatpush.bf16.msra.mxu0 0
        %475 = vmatpush.bf16.msra.mxu0 0
        %476 = vmatpush.bf16.msra.mxu0 0
        %477 = vmatpush.bf16.msra.mxu0 0
        %478 = vmatpush.bf16.msra.mxu0 0
        %479 = vmatpush.bf16.msra.mxu0 %v470
        %480 = vmatmul.bf16.gmra.mxu0 %v467
        %v481 = vpop.f32.mrf.mxu0
        %v482 = vadd.f32 0.0, %v481
        %v483 = vpop.f32.mrf.mxu0
        %484 = vdwg.mxu0
        %v485 = vpack.c.bf16 %v482, %v482
        %v486 = vld [vmem:[#allocation2 + $0x20] sm:$0xf]
        %v487 = vld [vmem:[#allocation2 + $0x24] sm:$0xf]
        %v488 = vld [vmem:[#allocation2 + $0x28] sm:$0xf]
        %v489 = vld [vmem:[#allocation2 + $0x2c] sm:$0xf]
        %v494 = vunpack.c.l.b16 %v486
        %v495 = vunpack.c.l.b16 %v487
        %v496 = vunpack.c.l.b16 %v488
        %v497 = vunpack.c.l.b16 %v489
        %v498 = vpack.c.b16 %v495, %v494
        %v499 = vpack.c.b16 %v497, %v496
        %v503 = vsel %vm243, %v485, 0
        %505 = vmatpush.bf16.msra.mxu0 0
        %506 = vmatpush.bf16.msra.mxu0 0
        %507 = vmatpush.bf16.msra.mxu0 0
        %508 = vmatpush.bf16.msra.mxu0 0
        %509 = vmatpush.bf16.msra.mxu0 0
        %510 = vmatpush.bf16.msra.mxu0 0
        %511 = vmatpush.bf16.msra.mxu0 %v499
        %512 = vmatpush.bf16.msra.mxu0 %v498
        %513 = vmatmul.bf16.gmra.mxu0 %v503
        %v514 = vpop.f32.mrf.mxu0
        %v515 = vadd.f32 0.0, %v514
        %v516 = vpop.f32.mrf.mxu0
        %517 = vdwg.mxu0
        %v518 = vadd.f32 %v428, %v515
        %519 = vrot.lane.b32.xlu0 %v335, 32
        %v520 = vpop.permute.xlu0 %519
        %521 = vrot.lane.b32.xlu0 %v242, 32
        %v522 = vpop.permute.xlu0 %521
        %v524 = vsel %vm243, %v520, 0
        %v527 = vsel %vm243, %v522, 0
        %529 = vmatpush.bf16.xpose.msra.mxu0 0
        %530 = vmatpush.bf16.xpose.msra.mxu0 0
        %531 = vmatpush.bf16.xpose.msra.mxu0 0
        %532 = vmatpush.bf16.xpose.msra.mxu0 0
        %533 = vmatpush.bf16.xpose.msra.mxu0 0
        %534 = vmatpush.bf16.xpose.msra.mxu0 0
        %535 = vmatpush.bf16.xpose.msra.mxu0 0
        %536 = vmatpush.bf16.xpose.msra.mxu0 %v527
        %537 = vmatmul.bf16.gmra.mxu0 %v524
        %v538 = vpop.f32.mrf.mxu0
        %v539 = vadd.f32 0.0, %v538
        %v540 = vpop.f32.mrf.mxu0
        %541 = vdwg.mxu0
        %v542 = vsel %vm263, %v539, -inf
        %543 = vmax.xlane.f32.xlu0 %v542
        %v544 = vpop.xlane.xlu0 %543
        %v545 = vsub.f32 %v539, %v544
        %v546 = vmul.f32 %v545, 1.442695
        %v547 = vpow.pop %v546
        %v548 = vsel %vm263, %v547, 0.0
        %549 = vadd.xlane.f32.xlu0 %v548
        %v550 = vpop.xlane.xlu0 %549
        %v551 = vrcp.pop %v550
        %v552 = vmul.f32 %v547, %v551
        %v553 = vpack.c.bf16 %v552, %v552
        %554 = vrot.lane.b32.xlu0 %v373, 32
        %v555 = vpop.permute.xlu0 %554
        %v557 = vsel %vm276, %v553, 0
        %v560 = vand.u32 %v555, %v283
        %562 = vmatpush.bf16.msra.mxu0 0
        %563 = vmatpush.bf16.msra.mxu0 0
        %564 = vmatpush.bf16.msra.mxu0 0
        %565 = vmatpush.bf16.msra.mxu0 0
        %566 = vmatpush.bf16.msra.mxu0 0
        %567 = vmatpush.bf16.msra.mxu0 0
        %568 = vmatpush.bf16.msra.mxu0 0
        %569 = vmatpush.bf16.msra.mxu0 %v560
        %570 = vmatmul.bf16.gmra.mxu0 %v557
        %v571 = vpop.f32.mrf.mxu0
        %v572 = vadd.f32 0.0, %v571
        %v573 = vpop.f32.mrf.mxu0
        %574 = vdwg.mxu0
        %v575 = vpack.c.bf16 %v572, %v572
        %v576 = vld [vmem:[#allocation2 + $0x30] sm:$0xf]
        %v577 = vld [vmem:[#allocation2 + $0x34] sm:$0xf]
        %v578 = vld [vmem:[#allocation2 + $0x38] sm:$0xf]
        %v579 = vld [vmem:[#allocation2 + $0x3c] sm:$0xf]
        %v584 = vunpack.c.l.b16 %v576
        %v585 = vunpack.c.l.b16 %v577
        %v586 = vunpack.c.l.b16 %v578
        %v587 = vunpack.c.l.b16 %v579
        %v588 = vpack.c.b16 %v585, %v584
        %v589 = vpack.c.b16 %v587, %v586
        %v593 = vsel %vm243, %v575, 0
        %595 = vmatpush.bf16.msra.mxu0 0
        %596 = vmatpush.bf16.msra.mxu0 0
        %597 = vmatpush.bf16.msra.mxu0 0
        %598 = vmatpush.bf16.msra.mxu0 0
        %599 = vmatpush.bf16.msra.mxu0 0
        %600 = vmatpush.bf16.msra.mxu0 0
        %601 = vmatpush.bf16.msra.mxu0 %v589
        %602 = vmatpush.bf16.msra.mxu0 %v588
        %603 = vmatmul.bf16.gmra.mxu0 %v593
        %v604 = vpop.f32.mrf.mxu0
        %v605 = vadd.f32 0.0, %v604
        %v606 = vpop.f32.mrf.mxu0
        %607 = vdwg.mxu0
        %v608 = vadd.f32 %v518, %v605
        %v609 = vpack.c.bf16 %v608, %v608
        %vm610 = vcmask 1042432
        %vm611 = vsmask.f32 2304
        %vm612 = vmand %vm610, %vm611
        %v613 = vld [vmem:[%s229] sm:$0x7]
        %v614 = vsel %vm612, %v609, %v613
        %615 = vst [vmem:[%s229] sm:$0x7] %v614
        %p616 = scmp.lt.s32.totalorder %s16, 1
        %s617 = scalar_select %p616, %s16, 1
        %s618 = smul.addr %s617, 4
        %s619 = scalar_lea.vmem %s4, %s618
        // Predicated region
        $region41: #{vit_forward.10} parent=35 // pred_check
          %p620 = pneg %p128
        $region42: #{vit_forward.10} parent=35 // pred_check_branch
          %622 = sbr.rel (%p620) target = $region44
        $region43: #{vit_forward.10} parent=35 // pred_region
          _
        $region44: #{vit_forward.10} parent=35 // pred_fallthru
          _
      $region36: #{vit_forward.10} parent=5 // pred_fallthru
        _
      %p623 = scmp.le.s32.totalorder 2, %s11
      // Predicated region
      $region45: #{vit_forward.10} parent=5 // pred_check
        %p624 = pneg %p623
      $region46: #{vit_forward.10} parent=5 // pred_check_branch
        %626 = sbr.rel (%p624) target = $region48
      $region47: #{vit_forward.10} parent=5 // pred_region
        %s627 = ssub.s32 %s11, 2
        // Predicated region
        $region49: #{vit_forward.10} parent=47 // pred_check
          %p628 = pneg %p134
        $region50: #{vit_forward.10} parent=47 // pred_check_branch
          %630 = sbr.rel (%p628) target = $region52
        $region51: #{vit_forward.10} parent=47 // pred_region
          %p631 = scmp.lt.s32.totalorder %s17, 1
          %s632 = scalar_select %p631, %s17, 1
          %s633 = smul.addr %s632, 4
          %s634 = scalar_lea.vmem %s4, %s633
        $region52: #{vit_forward.10} parent=47 // pred_fallthru
          _
      $region48: #{vit_forward.10} parent=5 // pred_fallthru
        _
    $region6: #{vit_forward.10} parent=1 // loop_footer
      %s15 = sadd.s32 1, %s11
    $region7: #{vit_forward.10} parent=1 // loop_footer_branch
      %10 = sbr.rel target = $region3
    $region8: #{vit_forward.10} parent=1 // loop_exit
      _
    %635 = vsyncpa [#allocation3], 1
    %s636 = scalar_lea.sflag [#allocation3], 1
    %637 = vsyncpa %s636, 1

// kernel: vit_forward.8
$region0: #{vit_forward.8}
  #allocation0 [shape = 'u32[]', space=smem, size = 0x4, offset = 0x4, fixed_abs, tag = 'smem constant byte address 0x4 - core index']
  #allocation1 [shape = 'u32[72,128]{1,0:T(1,128)}', space=vmem, size = 0x9000, scoped, tag = 'internal scratch']
  %s0 = inlined_call_operand.vmem [shape: bf16[2,4,768], index: 0, kind: input, shape index: {}]
  %s1 = inlined_call_operand.vmem [shape: bf16[768,128], index: 1, kind: input, shape index: {}]
  %s2 = inlined_call_operand.vmem [shape: f32[1,128], index: 2, kind: input, shape index: {}]
  %s3 = inlined_call_operand.vmem [shape: f32[4,128], index: 3, kind: input, shape index: {}]
  %s4 = inlined_call_operand.vmem [shape: bf16[2,4,128], index: 4, kind: output, shape index: {}]
  %s5 = sld [smem:[#allocation0]]
  $region49: #{vit_forward.8} parent=0
    _
  %s7 = ssub.s32 1, %s5
  %s8 = scalar_select 0, %s7, %s5
  loop: start=0, step=1, limit=4
  $region2: #{vit_forward.8} parent=0 // loop_pre_header
    _
  $region3: #{vit_forward.8} parent=0 // loop_header
    %s10 = sphi 0, %s14
    %p11 = scmp.ge.s32.totalorder %s10, 4
    %s20 = sphi 0, %s22
    %s23 = sphi 0, %s20
    %s24 = sphi 0, %s23
    %s40 = sphi 0, %s24
    %s44 = sphi 0, %s44
    %s46 = sphi 0, %s44
    %s47 = sphi 0, %s46
    %s61 = sphi 0, %s47
    %s65 = sphi 0, %s65
    %s67 = sphi 0, %s65
    %s68 = sphi 0, %s67
    %s82 = sphi 0, %s68
    %s86 = sphi 0, %s86
    %s88 = sphi 0, %s86
    %s89 = sphi 0, %s88
    %s103 = sphi 0, %s89
    %s109 = sphi 0, %s111
    %s112 = sphi 0, %s109
    %s113 = sphi 0, %s112
    %s129 = sphi 0, %s113
  $region4: #{vit_forward.8} parent=0 // loop_header_branch
    %13 = sbr.rel (%p11) target = $region8
  $region5: #{vit_forward.8} parent=0 // loop_body
    %s15 = ssub.s32 %s10, 1
    %s16 = ssub.s32 %s10, 2
    %s17 = sadd.s32 %s10, 1
    %s18 = ssub.s32 %s10, %s17
    %p19 = scmp.eq.s32.totalorder %s18, 0
    %s21 = sadd.s32 %s20, 1
    %s22 = scalar_select %p19, %s20, %s21
    %p25 = pneg %p19
    %p26 = scmp.eq.s32.totalorder %s10, 1
    %p27 = por %p25, %p26
    %p28 = scmp.ne.s32.totalorder %s20, %s23
    %p29 = scmp.eq.s32.totalorder %s10, 0
    %p30 = por %p28, %p29
    %p31 = scmp.ne.s32.totalorder %s20, %s23
    %p32 = scmp.eq.s32.totalorder %s15, 1
    %p33 = por %p31, %p32
    %p34 = scmp.ne.s32.totalorder %s23, %s24
    %p35 = scmp.eq.s32.totalorder %s15, 0
    %p36 = por %p34, %p35
    %p37 = scmp.ne.s32.totalorder %s23, %s24
    %p38 = scmp.eq.s32.totalorder %s16, 1
    %p39 = por %p37, %p38
    %p41 = scmp.ne.s32.totalorder %s24, %s40
    %p42 = scmp.eq.s32.totalorder %s16, 0
    %p43 = por %p41, %p42
    %s45 = sadd.s32 %s44, 1
    %p48 = scmp.eq.s32.totalorder %s10, 1
    %p49 = scmp.ne.s32.totalorder %s44, %s46
    %p50 = scmp.eq.s32.totalorder %s10, 0
    %p51 = por %p49, %p50
    %p52 = scmp.ne.s32.totalorder %s44, %s46
    %p53 = scmp.eq.s32.totalorder %s15, 1
    %p54 = por %p52, %p53
    %p55 = scmp.ne.s32.totalorder %s46, %s47
    %p56 = scmp.eq.s32.totalorder %s15, 0
    %p57 = por %p55, %p56
    %p58 = scmp.ne.s32.totalorder %s46, %s47
    %p59 = scmp.eq.s32.totalorder %s16, 1
    %p60 = por %p58, %p59
    %p62 = scmp.ne.s32.totalorder %s47, %s61
    %p63 = scmp.eq.s32.totalorder %s16, 0
    %p64 = por %p62, %p63
    %s66 = sadd.s32 %s65, 1
    %p69 = scmp.eq.s32.totalorder %s10, 1
    %p70 = scmp.ne.s32.totalorder %s65, %s67
    %p71 = scmp.eq.s32.totalorder %s10, 0
    %p72 = por %p70, %p71
    %p73 = scmp.ne.s32.totalorder %s65, %s67
    %p74 = scmp.eq.s32.totalorder %s15, 1
    %p75 = por %p73, %p74
    %p76 = scmp.ne.s32.totalorder %s67, %s68
    %p77 = scmp.eq.s32.totalorder %s15, 0
    %p78 = por %p76, %p77
    %p79 = scmp.ne.s32.totalorder %s67, %s68
    %p80 = scmp.eq.s32.totalorder %s16, 1
    %p81 = por %p79, %p80
    %p83 = scmp.ne.s32.totalorder %s68, %s82
    %p84 = scmp.eq.s32.totalorder %s16, 0
    %p85 = por %p83, %p84
    %s87 = sadd.s32 %s86, 1
    %p90 = scmp.eq.s32.totalorder %s10, 1
    %p91 = scmp.ne.s32.totalorder %s86, %s88
    %p92 = scmp.eq.s32.totalorder %s10, 0
    %p93 = por %p91, %p92
    %p94 = scmp.ne.s32.totalorder %s86, %s88
    %p95 = scmp.eq.s32.totalorder %s15, 1
    %p96 = por %p94, %p95
    %p97 = scmp.ne.s32.totalorder %s88, %s89
    %p98 = scmp.eq.s32.totalorder %s15, 0
    %p99 = por %p97, %p98
    %p100 = scmp.ne.s32.totalorder %s88, %s89
    %p101 = scmp.eq.s32.totalorder %s16, 1
    %p102 = por %p100, %p101
    %p104 = scmp.ne.s32.totalorder %s89, %s103
    %p105 = scmp.eq.s32.totalorder %s16, 0
    %p106 = por %p104, %p105
    %s107 = ssub.s32 %s10, %s17
    %p108 = scmp.eq.s32.totalorder %s107, 0
    %s110 = sadd.s32 %s109, 1
    %s111 = scalar_select %p108, %s109, %s110
    %p114 = pneg %p108
    %p115 = scmp.eq.s32.totalorder %s10, 1
    %p116 = por %p114, %p115
    %p117 = scmp.ne.s32.totalorder %s109, %s112
    %p118 = scmp.eq.s32.totalorder %s10, 0
    %p119 = por %p117, %p118
    %p120 = scmp.ne.s32.totalorder %s109, %s112
    %p121 = scmp.eq.s32.totalorder %s15, 1
    %p122 = por %p120, %p121
    %p123 = scmp.ne.s32.totalorder %s112, %s113
    %p124 = scmp.eq.s32.totalorder %s15, 0
    %p125 = por %p123, %p124
    %p126 = scmp.ne.s32.totalorder %s112, %s113
    %p127 = scmp.eq.s32.totalorder %s16, 1
    %p128 = por %p126, %p127
    %p130 = scmp.ne.s32.totalorder %s113, %s129
    %p131 = scmp.eq.s32.totalorder %s16, 0
    %p132 = por %p130, %p131
    %p133 = scmp.le.s32.totalorder 1, %s10
    %p134 = scmp.lt.s32.totalorder %s10, 3
    %p135 = pnand %p133, %p134
    %p136 = pneg %p135
    // Predicated region
    $region9: #{vit_forward.8} parent=5 // pred_check
      _
    $region10: #{vit_forward.8} parent=5 // pred_check_branch
      %138 = sbr.rel (%p135) target = $region12
    $region11: #{vit_forward.8} parent=5 // pred_region
      %s139 = ssub.s32 %s10, 1
      // Predicated region
      $region13: #{vit_forward.8} parent=11 // pred_check
        %p140 = pneg %p57
      $region14: #{vit_forward.8} parent=11 // pred_check_branch
        %142 = sbr.rel (%p140) target = $region16
      $region15: #{vit_forward.8} parent=11 // pred_region
        _
      $region16: #{vit_forward.8} parent=11 // pred_fallthru
        _
      // Predicated region
      $region17: #{vit_forward.8} parent=11 // pred_check
        %p143 = pneg %p78
      $region18: #{vit_forward.8} parent=11 // pred_check_branch
        %145 = sbr.rel (%p143) target = $region20
      $region19: #{vit_forward.8} parent=11 // pred_region
        _
      $region20: #{vit_forward.8} parent=11 // pred_fallthru
        _
      // Predicated region
      $region21: #{vit_forward.8} parent=11 // pred_check
        %p146 = pneg %p99
      $region22: #{vit_forward.8} parent=11 // pred_check_branch
        %148 = sbr.rel (%p146) target = $region24
      $region23: #{vit_forward.8} parent=11 // pred_region
        _
      $region24: #{vit_forward.8} parent=11 // pred_fallthru
        _
    $region12: #{vit_forward.8} parent=5 // pred_fallthru
      _
    %p149 = scmp.lt.s32.totalorder %s10, 2
    // Predicated region
    $region25: #{vit_forward.8} parent=5 // pred_check
      %p150 = pneg %p149
    $region26: #{vit_forward.8} parent=5 // pred_check_branch
      %152 = sbr.rel (%p150) target = $region28
    $region27: #{vit_forward.8} parent=5 // pred_region
      // Predicated region
      $region29: #{vit_forward.8} parent=27 // pred_check
        %p153 = pneg %p30
      $region30: #{vit_forward.8} parent=27 // pred_check_branch
        %155 = sbr.rel (%p153) target = $region32
      $region31: #{vit_forward.8} parent=27 // pred_region
        %p156 = scmp.lt.s32.totalorder %s10, 1
        %s157 = scalar_select %p156, %s10, 1
        %s158 = smul.addr %s157, 6
        %s159 = smul.addr %s158, 2
        %s160 = scalar_lea.vmem %s0, %s159
      $region32: #{vit_forward.8} parent=27 // pred_fallthru
        _
    $region28: #{vit_forward.8} parent=5 // pred_fallthru
      _
    %p161 = scmp.le.s32.totalorder 1, %s10
    %p162 = scmp.lt.s32.totalorder %s10, 3
    %p163 = pnand %p161, %p162
    %p164 = pneg %p163
    // Predicated region
    $region33: #{vit_forward.8} parent=5 // pred_check
      _
    $region34: #{vit_forward.8} parent=5 // pred_check_branch
      %166 = sbr.rel (%p163) target = $region36
    $region35: #{vit_forward.8} parent=5 // pred_region
      %s167 = ssub.s32 %s10, 1
      %p168 = scmp.lt.s32.totalorder %s15, 1
      %s169 = scalar_select %p168, %s15, 1
      %s170 = smul.addr %s169, 6
      %s171 = smul.addr %s170, 2
      %s172 = scalar_lea.vmem %s0, %s171
      %p173 = pneg %p36
      %p174 = pneg %p33
      %p175 = pneg %p57
      %p176 = pneg %p54
      %p177 = pneg %p78
      %p178 = pneg %p75
      %p179 = pneg %p99
      %p180 = pneg %p96
      %p181 = pneg %p125
      %p182 = pneg %p122
      %p183 = scmp.lt.s32.totalorder %s15, 1
      %s184 = scalar_select %p183, %s15, 1
      %s185 = smul.addr %s184, 2
      %s186 = scalar_lea.vmem %s4, %s185
      %p187 = scmp.lt.s32.totalorder %s15, 1
      %s188 = scalar_select %p187, %s15, 1
      %s189 = smul.addr %s188, 6
      %s190 = smul.addr %s189, 2
      %s191 = scalar_lea.vmem %s0, %s190
      %p192 = scmp.lt.s32.totalorder %s15, 1
      %s193 = scalar_select %p192, %s15, 1
      %s194 = smul.addr %s193, 2
      %s195 = scalar_lea.vmem %s4, %s194
      %v196 = vld [vmem:[%s191] sm:$0xff]
      %v197 = vld [vmem:[%s191 + $0x8] sm:$0xf]
      %v198 = vld [vmem:[%s1] sm:$0xf]
      %v199 = vld [vmem:[%s1 + $0x4] sm:$0xf]
      %v200 = vld [vmem:[%s1 + $0x8] sm:$0xf]
      %v201 = vld [vmem:[%s1 + $0xc] sm:$0xf]
      %v202 = vld [vmem:[%s1 + $0x10] sm:$0xf]
      %v203 = vld [vmem:[%s1 + $0x14] sm:$0xf]
      %v204 = vld [vmem:[%s1 + $0x18] sm:$0xf]
      %v205 = vld [vmem:[%s1 + $0x1c] sm:$0xf]
      %v206 = vld [vmem:[%s1 + $0x20] sm:$0xf]
      %v207 = vld [vmem:[%s1 + $0x24] sm:$0xf]
      %v208 = vld [vmem:[%s1 + $0x28] sm:$0xf]
      %v209 = vld [vmem:[%s1 + $0x2c] sm:$0xf]
      %v210 = vld [vmem:[%s1 + $0x30] sm:$0xf]
      %v211 = vld [vmem:[%s1 + $0x34] sm:$0xf]
      %v212 = vld [vmem:[%s1 + $0x38] sm:$0xf]
      %v213 = vld [vmem:[%s1 + $0x3c] sm:$0xf]
      %v214 = vld [vmem:[%s1 + $0x40] sm:$0xf]
      %v215 = vld [vmem:[%s1 + $0x44] sm:$0xf]
      %v216 = vld [vmem:[%s1 + $0x48] sm:$0xf]
      %v217 = vld [vmem:[%s1 + $0x4c] sm:$0xf]
      %v218 = vld [vmem:[%s1 + $0x50] sm:$0xf]
      %v219 = vld [vmem:[%s1 + $0x54] sm:$0xf]
      %v220 = vld [vmem:[%s1 + $0x58] sm:$0xf]
      %v221 = vld [vmem:[%s1 + $0x5c] sm:$0xf]
      %v222 = vld [vmem:[%s1 + $0x60] sm:$0xf]
      %v223 = vld [vmem:[%s1 + $0x64] sm:$0xf]
      %v224 = vld [vmem:[%s1 + $0x68] sm:$0xf]
      %v225 = vld [vmem:[%s1 + $0x6c] sm:$0xf]
      %v226 = vld [vmem:[%s1 + $0x70] sm:$0xf]
      %v227 = vld [vmem:[%s1 + $0x74] sm:$0xf]
      %v228 = vld [vmem:[%s1 + $0x78] sm:$0xf]
      %v229 = vld [vmem:[%s1 + $0x7c] sm:$0xf]
      %v230 = vld [vmem:[%s1 + $0x80] sm:$0xf]
      %v231 = vld [vmem:[%s1 + $0x84] sm:$0xf]
      %v232 = vld [vmem:[%s1 + $0x88] sm:$0xf]
      %v233 = vld [vmem:[%s1 + $0x8c] sm:$0xf]
      %v234 = vld [vmem:[%s1 + $0x90] sm:$0xf]
      %v235 = vld [vmem:[%s1 + $0x94] sm:$0xf]
      %v236 = vld [vmem:[%s1 + $0x98] sm:$0xf]
      %v237 = vld [vmem:[%s1 + $0x9c] sm:$0xf]
      %v238 = vld [vmem:[%s1 + $0xa0] sm:$0xf]
      %v239 = vld [vmem:[%s1 + $0xa4] sm:$0xf]
      %v240 = vld [vmem:[%s1 + $0xa8] sm:$0xf]
      %v241 = vld [vmem:[%s1 + $0xac] sm:$0xf]
      %v242 = vld [vmem:[%s1 + $0xb0] sm:$0xf]
      %v243 = vld [vmem:[%s1 + $0xb4] sm:$0xf]
      %v244 = vld [vmem:[%s1 + $0xb8] sm:$0xf]
      %v245 = vld [vmem:[%s1 + $0xbc] sm:$0xf]
      %v246 = vld [vmem:[%s1 + $0xc0] sm:$0xf]
      %v247 = vld [vmem:[%s1 + $0xc4] sm:$0xf]
      %v248 = vld [vmem:[%s1 + $0xc8] sm:$0xf]
      %v249 = vld [vmem:[%s1 + $0xcc] sm:$0xf]
      %v250 = vld [vmem:[%s1 + $0xd0] sm:$0xf]
      %v251 = vld [vmem:[%s1 + $0xd4] sm:$0xf]
      %v252 = vld [vmem:[%s1 + $0xd8] sm:$0xf]
      %v253 = vld [vmem:[%s1 + $0xdc] sm:$0xf]
      %v254 = vld [vmem:[%s1 + $0xe0] sm:$0xf]
      %v255 = vld [vmem:[%s1 + $0xe4] sm:$0xf]
      %v256 = vld [vmem:[%s1 + $0xe8] sm:$0xf]
      %v257 = vld [vmem:[%s1 + $0xec] sm:$0xf]
      %v258 = vld [vmem:[%s1 + $0xf0] sm:$0xf]
      %v259 = vld [vmem:[%s1 + $0xf4] sm:$0xf]
      %v260 = vld [vmem:[%s1 + $0xf8] sm:$0xf]
      %v261 = vld [vmem:[%s1 + $0xfc] sm:$0xf]
      %v262 = vld [vmem:[%s1 + $0x100] sm:$0xf]
      %v263 = vld [vmem:[%s1 + $0x104] sm:$0xf]
      %v264 = vld [vmem:[%s1 + $0x108] sm:$0xf]
      %v265 = vld [vmem:[%s1 + $0x10c] sm:$0xf]
      %v266 = vld [vmem:[%s1 + $0x110] sm:$0xf]
      %v267 = vld [vmem:[%s1 + $0x114] sm:$0xf]
      %v268 = vld [vmem:[%s1 + $0x118] sm:$0xf]
      %v269 = vld [vmem:[%s1 + $0x11c] sm:$0xf]
      %v270 = vld [vmem:[%s1 + $0x120] sm:$0xf]
      %v271 = vld [vmem:[%s1 + $0x124] sm:$0xf]
      %v272 = vld [vmem:[%s1 + $0x128] sm:$0xf]
      %v273 = vld [vmem:[%s1 + $0x12c] sm:$0xf]
      %v274 = vld [vmem:[%s1 + $0x130] sm:$0xf]
      %v275 = vld [vmem:[%s1 + $0x134] sm:$0xf]
      %v276 = vld [vmem:[%s1 + $0x138] sm:$0xf]
      %v277 = vld [vmem:[%s1 + $0x13c] sm:$0xf]
      %v278 = vld [vmem:[%s1 + $0x140] sm:$0xf]
      %v279 = vld [vmem:[%s1 + $0x144] sm:$0xf]
      %v280 = vld [vmem:[%s1 + $0x148] sm:$0xf]
      %v281 = vld [vmem:[%s1 + $0x14c] sm:$0xf]
      %v282 = vld [vmem:[%s1 + $0x150] sm:$0xf]
      %v283 = vld [vmem:[%s1 + $0x154] sm:$0xf]
      %v284 = vld [vmem:[%s1 + $0x158] sm:$0xf]
      %v285 = vld [vmem:[%s1 + $0x15c] sm:$0xf]
      %v286 = vld [vmem:[%s1 + $0x160] sm:$0xf]
      %v287 = vld [vmem:[%s1 + $0x164] sm:$0xf]
      %v288 = vld [vmem:[%s1 + $0x168] sm:$0xf]
      %v289 = vld [vmem:[%s1 + $0x16c] sm:$0xf]
      %v290 = vld [vmem:[%s1 + $0x170] sm:$0xf]
      %v291 = vld [vmem:[%s1 + $0x174] sm:$0xf]
      %v292 = vld [vmem:[%s1 + $0x178] sm:$0xf]
      %v293 = vld [vmem:[%s1 + $0x17c] sm:$0xf]
      %v294 = vld [vmem:[%s2] sm:$0x1]
      %v296 = vperm.slane %v294, 0
      %299 = vst [vmem:[#allocation1] ss:$4 sm:$0xff] %v196
      %s301 = scalar_lea.vmem [#allocation1], 32
      %302 = vst [vmem:[%s301] ss:$4 sm:$0xff] %v197
      %v303 = vld.sshfl [vmem:[#allocation1] sm:$0xff pattern:$0x73625140]
      %v304 = vld.sshfl [vmem:[#allocation1 + $0x8] sm:$0xff pattern:$0x73625140]
      %v305 = vld.sshfl [vmem:[#allocation1 + $0x10] sm:$0xff pattern:$0x73625140]
      %v306 = vld.sshfl [vmem:[#allocation1 + $0x18] sm:$0xff pattern:$0x73625140]
      %v307 = vld.sshfl [vmem:[#allocation1 + $0x20] sm:$0xff pattern:$0x73625140]
      %v308 = vld.sshfl [vmem:[#allocation1 + $0x28] sm:$0xff pattern:$0x73625140]
      %v411 = vunpack.c.l.b16 %v198
      %v412 = vunpack.c.l.b16 %v199
      %v413 = vunpack.c.l.b16 %v200
      %v414 = vunpack.c.l.b16 %v201
      %v415 = vunpack.c.l.b16 %v202
      %v416 = vunpack.c.l.b16 %v203
      %v417 = vunpack.c.l.b16 %v204
      %v418 = vunpack.c.l.b16 %v205
      %v419 = vunpack.c.l.b16 %v206
      %v420 = vunpack.c.l.b16 %v207
      %v421 = vunpack.c.l.b16 %v208
      %v422 = vunpack.c.l.b16 %v209
      %v423 = vunpack.c.l.b16 %v210
      %v424 = vunpack.c.l.b16 %v211
      %v425 = vunpack.c.l.b16 %v212
      %v426 = vunpack.c.l.b16 %v213
      %v427 = vunpack.c.l.b16 %v214
      %v428 = vunpack.c.l.b16 %v215
      %v429 = vunpack.c.l.b16 %v216
      %v430 = vunpack.c.l.b16 %v217
      %v431 = vunpack.c.l.b16 %v218
      %v432 = vunpack.c.l.b16 %v219
      %v433 = vunpack.c.l.b16 %v220
      %v434 = vunpack.c.l.b16 %v221
      %v435 = vunpack.c.l.b16 %v222
      %v436 = vunpack.c.l.b16 %v223
      %v437 = vunpack.c.l.b16 %v224
      %v438 = vunpack.c.l.b16 %v225
      %v439 = vunpack.c.l.b16 %v226
      %v440 = vunpack.c.l.b16 %v227
      %v441 = vunpack.c.l.b16 %v228
      %v442 = vunpack.c.l.b16 %v229
      %v443 = vunpack.c.l.b16 %v230
      %v444 = vunpack.c.l.b16 %v231
      %v445 = vunpack.c.l.b16 %v232
      %v446 = vunpack.c.l.b16 %v233
      %v447 = vunpack.c.l.b16 %v234
      %v448 = vunpack.c.l.b16 %v235
      %v449 = vunpack.c.l.b16 %v236
      %v450 = vunpack.c.l.b16 %v237
      %v451 = vunpack.c.l.b16 %v238
      %v452 = vunpack.c.l.b16 %v239
      %v453 = vunpack.c.l.b16 %v240
      %v454 = vunpack.c.l.b16 %v241
      %v455 = vunpack.c.l.b16 %v242
      %v456 = vunpack.c.l.b16 %v243
      %v457 = vunpack.c.l.b16 %v244
      %v458 = vunpack.c.l.b16 %v245
      %v459 = vunpack.c.l.b16 %v246
      %v460 = vunpack.c.l.b16 %v247
      %v461 = vunpack.c.l.b16 %v248
      %v462 = vunpack.c.l.b16 %v249
      %v463 = vunpack.c.l.b16 %v250
      %v464 = vunpack.c.l.b16 %v251
      %v465 = vunpack.c.l.b16 %v252
      %v466 = vunpack.c.l.b16 %v253
      %v467 = vunpack.c.l.b16 %v254
      %v468 = vunpack.c.l.b16 %v255
      %v469 = vunpack.c.l.b16 %v256
      %v470 = vunpack.c.l.b16 %v257
      %v471 = vunpack.c.l.b16 %v258
      %v472 = vunpack.c.l.b16 %v259
      %v473 = vunpack.c.l.b16 %v260
      %v474 = vunpack.c.l.b16 %v261
      %v475 = vunpack.c.l.b16 %v262
      %v476 = vunpack.c.l.b16 %v263
      %v477 = vunpack.c.l.b16 %v264
      %v478 = vunpack.c.l.b16 %v265
      %v479 = vunpack.c.l.b16 %v266
      %v480 = vunpack.c.l.b16 %v267
      %v481 = vunpack.c.l.b16 %v268
      %v482 = vunpack.c.l.b16 %v269
      %v483 = vunpack.c.l.b16 %v270
      %v484 = vunpack.c.l.b16 %v271
      %v485 = vunpack.c.l.b16 %v272
      %v486 = vunpack.c.l.b16 %v273
      %v487 = vunpack.c.l.b16 %v274
      %v488 = vunpack.c.l.b16 %v275
      %v489 = vunpack.c.l.b16 %v276
      %v490 = vunpack.c.l.b16 %v277
      %v491 = vunpack.c.l.b16 %v278
      %v492 = vunpack.c.l.b16 %v279
      %v493 = vunpack.c.l.b16 %v280
      %v494 = vunpack.c.l.b16 %v281
      %v495 = vunpack.c.l.b16 %v282
      %v496 = vunpack.c.l.b16 %v283
      %v497 = vunpack.c.l.b16 %v284
      %v498 = vunpack.c.l.b16 %v285
      %v499 = vunpack.c.l.b16 %v286
      %v500 = vunpack.c.l.b16 %v287
      %v501 = vunpack.c.l.b16 %v288
      %v502 = vunpack.c.l.b16 %v289
      %v503 = vunpack.c.l.b16 %v290
      %v504 = vunpack.c.l.b16 %v291
      %v505 = vunpack.c.l.b16 %v292
      %v506 = vunpack.c.l.b16 %v293
      %v507 = vpack.c.b16 %v412, %v411
      %v508 = vpack.c.b16 %v414, %v413
      %v509 = vpack.c.b16 %v416, %v415
      %v510 = vpack.c.b16 %v418, %v417
      %v511 = vpack.c.b16 %v420, %v419
      %v512 = vpack.c.b16 %v422, %v421
      %v513 = vpack.c.b16 %v424, %v423
      %v514 = vpack.c.b16 %v426, %v425
      %v515 = vpack.c.b16 %v428, %v427
      %v516 = vpack.c.b16 %v430, %v429
      %v517 = vpack.c.b16 %v432, %v431
      %v518 = vpack.c.b16 %v434, %v433
      %v519 = vpack.c.b16 %v436, %v435
      %v520 = vpack.c.b16 %v438, %v437
      %v521 = vpack.c.b16 %v440, %v439
      %v522 = vpack.c.b16 %v442, %v441
      %v523 = vpack.c.b16 %v444, %v443
      %v524 = vpack.c.b16 %v446, %v445
      %v525 = vpack.c.b16 %v448, %v447
      %v526 = vpack.c.b16 %v450, %v449
      %v527 = vpack.c.b16 %v452, %v451
      %v528 = vpack.c.b16 %v454, %v453
      %v529 = vpack.c.b16 %v456, %v455
      %v530 = vpack.c.b16 %v458, %v457
      %v531 = vpack.c.b16 %v460, %v459
      %v532 = vpack.c.b16 %v462, %v461
      %v533 = vpack.c.b16 %v464, %v463
      %v534 = vpack.c.b16 %v466, %v465
      %v535 = vpack.c.b16 %v468, %v467
      %v536 = vpack.c.b16 %v470, %v469
      %v537 = vpack.c.b16 %v472, %v471
      %v538 = vpack.c.b16 %v474, %v473
      %v539 = vpack.c.b16 %v476, %v475
      %v540 = vpack.c.b16 %v478, %v477
      %v541 = vpack.c.b16 %v480, %v479
      %v542 = vpack.c.b16 %v482, %v481
      %v543 = vpack.c.b16 %v484, %v483
      %v544 = vpack.c.b16 %v486, %v485
      %v545 = vpack.c.b16 %v488, %v487
      %v546 = vpack.c.b16 %v490, %v489
      %v547 = vpack.c.b16 %v492, %v491
      %v548 = vpack.c.b16 %v494, %v493
      %v549 = vpack.c.b16 %v496, %v495
      %v550 = vpack.c.b16 %v498, %v497
      %v551 = vpack.c.b16 %v500, %v499
      %v552 = vpack.c.b16 %v502, %v501
      %v553 = vpack.c.b16 %v504, %v503
      %v554 = vpack.c.b16 %v506, %v505
      %603 = vmatpush.bf16.msra.mxu0 %v514
      %604 = vmatpush.bf16.msra.mxu0 %v513
      %605 = vmatpush.bf16.msra.mxu0 %v512
      %606 = vmatpush.bf16.msra.mxu0 %v511
      %607 = vmatpush.bf16.msra.mxu0 %v510
      %608 = vmatpush.bf16.msra.mxu0 %v509
      %609 = vmatpush.bf16.msra.mxu0 %v508
      %610 = vmatpush.bf16.msra.mxu0 %v507
      %611 = vmatmul.bf16.gmra.mxu0 %v303
      %v612 = vpop.f32.mrf.mxu0
      %v613 = vadd.f32 %v296, %v612
      %v614 = vpop.f32.mrf.mxu0
      %615 = vdwg.mxu0
      %616 = vmatpush.bf16.msra.mxu0 %v522
      %617 = vmatpush.bf16.msra.mxu0 %v521
      %618 = vmatpush.bf16.msra.mxu0 %v520
      %619 = vmatpush.bf16.msra.mxu0 %v519
      %620 = vmatpush.bf16.msra.mxu0 %v518
      %621 = vmatpush.bf16.msra.mxu0 %v517
      %622 = vmatpush.bf16.msra.mxu0 %v516
      %623 = vmatpush.bf16.msra.mxu0 %v515
      %624 = vmatmul.bf16.gmra.mxu0 %v304
      %v625 = vpop.f32.mrf.mxu0
      %v626 = vadd.f32 %v613, %v625
      %v627 = vpop.f32.mrf.mxu0
      %628 = vdwg.mxu0
      %629 = vmatpush.bf16.msra.mxu0 %v530
      %630 = vmatpush.bf16.msra.mxu0 %v529
      %631 = vmatpush.bf16.msra.mxu0 %v528
      %632 = vmatpush.bf16.msra.mxu0 %v527
      %633 = vmatpush.bf16.msra.mxu0 %v526
      %634 = vmatpush.bf16.msra.mxu0 %v525
      %635 = vmatpush.bf16.msra.mxu0 %v524
      %636 = vmatpush.bf16.msra.mxu0 %v523
      %637 = vmatmul.bf16.gmra.mxu0 %v305
      %v638 = vpop.f32.mrf.mxu0
      %v639 = vadd.f32 %v626, %v638
      %v640 = vpop.f32.mrf.mxu0
      %641 = vdwg.mxu0
      %642 = vmatpush.bf16.msra.mxu0 %v538
      %643 = vmatpush.bf16.msra.mxu0 %v537
      %644 = vmatpush.bf16.msra.mxu0 %v536
      %645 = vmatpush.bf16.msra.mxu0 %v535
      %646 = vmatpush.bf16.msra.mxu0 %v534
      %647 = vmatpush.bf16.msra.mxu0 %v533
      %648 = vmatpush.bf16.msra.mxu0 %v532
      %649 = vmatpush.bf16.msra.mxu0 %v531
      %650 = vmatmul.bf16.gmra.mxu0 %v306
      %v651 = vpop.f32.mrf.mxu0
      %v652 = vadd.f32 %v639, %v651
      %v653 = vpop.f32.mrf.mxu0
      %654 = vdwg.mxu0
      %655 = vmatpush.bf16.msra.mxu0 %v546
      %656 = vmatpush.bf16.msra.mxu0 %v545
      %657 = vmatpush.bf16.msra.mxu0 %v544
      %658 = vmatpush.bf16.msra.mxu0 %v543
      %659 = vmatpush.bf16.msra.mxu0 %v542
      %660 = vmatpush.bf16.msra.mxu0 %v541
      %661 = vmatpush.bf16.msra.mxu0 %v540
      %662 = vmatpush.bf16.msra.mxu0 %v539
      %663 = vmatmul.bf16.gmra.mxu0 %v307
      %v664 = vpop.f32.mrf.mxu0
      %v665 = vadd.f32 %v652, %v664
      %v666 = vpop.f32.mrf.mxu0
      %667 = vdwg.mxu0
      %668 = vmatpush.bf16.msra.mxu0 %v554
      %669 = vmatpush.bf16.msra.mxu0 %v553
      %670 = vmatpush.bf16.msra.mxu0 %v552
      %671 = vmatpush.bf16.msra.mxu0 %v551
      %672 = vmatpush.bf16.msra.mxu0 %v550
      %673 = vmatpush.bf16.msra.mxu0 %v549
      %674 = vmatpush.bf16.msra.mxu0 %v548
      %675 = vmatpush.bf16.msra.mxu0 %v547
      %676 = vmatmul.bf16.gmra.mxu0 %v308
      %v677 = vpop.f32.mrf.mxu0
      %v678 = vadd.f32 %v665, %v677
      %v679 = vpop.f32.mrf.mxu0
      %680 = vdwg.mxu0
      %v681 = vld [vmem:[%s3] sm:$0xf]
      %v682 = vadd.f32 %v678, %v681
      %v683 = vpack.c.bf16 %v682, %v682
      %684 = vst [vmem:[%s195] sm:$0x3] %v683
      %p685 = scmp.lt.s32.totalorder %s15, 1
      %s686 = scalar_select %p685, %s15, 1
      %s687 = smul.addr %s686, 2
      %s688 = scalar_lea.vmem %s4, %s687
      // Predicated region
      $region37: #{vit_forward.8} parent=35 // pred_check
        %p689 = pneg %p122
      $region38: #{vit_forward.8} parent=35 // pred_check_branch
        %691 = sbr.rel (%p689) target = $region40
      $region39: #{vit_forward.8} parent=35 // pred_region
        _
      $region40: #{vit_forward.8} parent=35 // pred_fallthru
        _
    $region36: #{vit_forward.8} parent=5 // pred_fallthru
      _
    %p692 = scmp.le.s32.totalorder 2, %s10
    // Predicated region
    $region41: #{vit_forward.8} parent=5 // pred_check
      %p693 = pneg %p692
    $region42: #{vit_forward.8} parent=5 // pred_check_branch
      %695 = sbr.rel (%p693) target = $region44
    $region43: #{vit_forward.8} parent=5 // pred_region
      %s696 = ssub.s32 %s10, 2
      // Predicated region
      $region45: #{vit_forward.8} parent=43 // pred_check
        %p697 = pneg %p128
      $region46: #{vit_forward.8} parent=43 // pred_check_branch
        %699 = sbr.rel (%p697) target = $region48
      $region47: #{vit_forward.8} parent=43 // pred_region
        %p700 = scmp.lt.s32.totalorder %s16, 1
        %s701 = scalar_select %p700, %s16, 1
        %s702 = smul.addr %s701, 2
        %s703 = scalar_lea.vmem %s4, %s702
      $region48: #{vit_forward.8} parent=43 // pred_fallthru
        _
    $region44: #{vit_forward.8} parent=5 // pred_fallthru
      _
  $region6: #{vit_forward.8} parent=0 // loop_footer
    %s14 = sadd.s32 1, %s10
  $region7: #{vit_forward.8} parent=0 // loop_footer_branch
    %9 = sbr.rel target = $region3
  $region8: #{vit_forward.8} parent=0 // loop_exit
    _

// kernel: vit_forward.11
$region0: #{vit_forward.11}
  #allocation0 [shape = 'u32[]', space=smem, size = 0x4, offset = 0x4, fixed_abs, tag = 'smem constant byte address 0x4 - core index']
  #allocation1 [shape = 'u32[72,128]{1,0:T(1,128)}', space=vmem, size = 0x9000, scoped, tag = 'internal scratch']
  %s0 = inlined_call_operand.vmem [shape: bf16[2,5,128], index: 0, kind: input, shape index: {}]
  %s1 = inlined_call_operand.vmem [shape: f32[1,128], index: 1, kind: input, shape index: {}]
  %s2 = inlined_call_operand.vmem [shape: f32[1,128], index: 2, kind: input, shape index: {}]
  %s3 = inlined_call_operand.vmem [shape: bf16[128,256], index: 3, kind: input, shape index: {}]
  %s4 = inlined_call_operand.vmem [shape: f32[1,256], index: 4, kind: input, shape index: {}]
  %s5 = inlined_call_operand.vmem [shape: bf16[256,128], index: 5, kind: input, shape index: {}]
  %s6 = inlined_call_operand.vmem [shape: f32[1,128], index: 6, kind: input, shape index: {}]
  %s7 = inlined_call_operand.vmem [shape: bf16[2,5,128], index: 7, kind: output, shape index: {}]
  %s8 = sld [smem:[#allocation0]]
  $region61: #{vit_forward.11} parent=0
    _
  %s10 = ssub.s32 1, %s8
  %s11 = scalar_select 0, %s10, %s8
  loop: start=0, step=1, limit=4
  $region2: #{vit_forward.11} parent=0 // loop_pre_header
    _
  $region3: #{vit_forward.11} parent=0 // loop_header
    %s13 = sphi 0, %s17
    %p14 = scmp.ge.s32.totalorder %s13, 4
    %s23 = sphi 0, %s25
    %s26 = sphi 0, %s23
    %s27 = sphi 0, %s26
    %s43 = sphi 0, %s27
    %s47 = sphi 0, %s47
    %s49 = sphi 0, %s47
    %s50 = sphi 0, %s49
    %s64 = sphi 0, %s50
    %s68 = sphi 0, %s68
    %s70 = sphi 0, %s68
    %s71 = sphi 0, %s70
    %s85 = sphi 0, %s71
    %s89 = sphi 0, %s89
    %s91 = sphi 0, %s89
    %s92 = sphi 0, %s91
    %s106 = sphi 0, %s92
    %s110 = sphi 0, %s110
    %s112 = sphi 0, %s110
    %s113 = sphi 0, %s112
    %s127 = sphi 0, %s113
    %s131 = sphi 0, %s131
    %s133 = sphi 0, %s131
    %s134 = sphi 0, %s133
    %s148 = sphi 0, %s134
    %s152 = sphi 0, %s152
    %s154 = sphi 0, %s152
    %s155 = sphi 0, %s154
    %s169 = sphi 0, %s155
    %s175 = sphi 0, %s177
    %s178 = sphi 0, %s175
    %s179 = sphi 0, %s178
    %s195 = sphi 0, %s179
  $region4: #{vit_forward.11} parent=0 // loop_header_branch
    %16 = sbr.rel (%p14) target = $region8
  $region5: #{vit_forward.11} parent=0 // loop_body
    %s18 = ssub.s32 %s13, 1
    %s19 = ssub.s32 %s13, 2
    %s20 = sadd.s32 %s13, 1
    %s21 = ssub.s32 %s13, %s20
    %p22 = scmp.eq.s32.totalorder %s21, 0
    %s24 = sadd.s32 %s23, 1
    %s25 = scalar_select %p22, %s23, %s24
    %p28 = pneg %p22
    %p29 = scmp.eq.s32.totalorder %s13, 1
    %p30 = por %p28, %p29
    %p31 = scmp.ne.s32.totalorder %s23, %s26
    %p32 = scmp.eq.s32.totalorder %s13, 0
    %p33 = por %p31, %p32
    %p34 = scmp.ne.s32.totalorder %s23, %s26
    %p35 = scmp.eq.s32.totalorder %s18, 1
    %p36 = por %p34, %p35
    %p37 = scmp.ne.s32.totalorder %s26, %s27
    %p38 = scmp.eq.s32.totalorder %s18, 0
    %p39 = por %p37, %p38
    %p40 = scmp.ne.s32.totalorder %s26, %s27
    %p41 = scmp.eq.s32.totalorder %s19, 1
    %p42 = por %p40, %p41
    %p44 = scmp.ne.s32.totalorder %s27, %s43
    %p45 = scmp.eq.s32.totalorder %s19, 0
    %p46 = por %p44, %p45
    %s48 = sadd.s32 %s47, 1
    %p51 = scmp.eq.s32.totalorder %s13, 1
    %p52 = scmp.ne.s32.totalorder %s47, %s49
    %p53 = scmp.eq.s32.totalorder %s13, 0
    %p54 = por %p52, %p53
    %p55 = scmp.ne.s32.totalorder %s47, %s49
    %p56 = scmp.eq.s32.totalorder %s18, 1
    %p57 = por %p55, %p56
    %p58 = scmp.ne.s32.totalorder %s49, %s50
    %p59 = scmp.eq.s32.totalorder %s18, 0
    %p60 = por %p58, %p59
    %p61 = scmp.ne.s32.totalorder %s49, %s50
    %p62 = scmp.eq.s32.totalorder %s19, 1
    %p63 = por %p61, %p62
    %p65 = scmp.ne.s32.totalorder %s50, %s64
    %p66 = scmp.eq.s32.totalorder %s19, 0
    %p67 = por %p65, %p66
    %s69 = sadd.s32 %s68, 1
    %p72 = scmp.eq.s32.totalorder %s13, 1
    %p73 = scmp.ne.s32.totalorder %s68, %s70
    %p74 = scmp.eq.s32.totalorder %s13, 0
    %p75 = por %p73, %p74
    %p76 = scmp.ne.s32.totalorder %s68, %s70
    %p77 = scmp.eq.s32.totalorder %s18, 1
    %p78 = por %p76, %p77
    %p79 = scmp.ne.s32.totalorder %s70, %s71
    %p80 = scmp.eq.s32.totalorder %s18, 0
    %p81 = por %p79, %p80
    %p82 = scmp.ne.s32.totalorder %s70, %s71
    %p83 = scmp.eq.s32.totalorder %s19, 1
    %p84 = por %p82, %p83
    %p86 = scmp.ne.s32.totalorder %s71, %s85
    %p87 = scmp.eq.s32.totalorder %s19, 0
    %p88 = por %p86, %p87
    %s90 = sadd.s32 %s89, 1
    %p93 = scmp.eq.s32.totalorder %s13, 1
    %p94 = scmp.ne.s32.totalorder %s89, %s91
    %p95 = scmp.eq.s32.totalorder %s13, 0
    %p96 = por %p94, %p95
    %p97 = scmp.ne.s32.totalorder %s89, %s91
    %p98 = scmp.eq.s32.totalorder %s18, 1
    %p99 = por %p97, %p98
    %p100 = scmp.ne.s32.totalorder %s91, %s92
    %p101 = scmp.eq.s32.totalorder %s18, 0
    %p102 = por %p100, %p101
    %p103 = scmp.ne.s32.totalorder %s91, %s92
    %p104 = scmp.eq.s32.totalorder %s19, 1
    %p105 = por %p103, %p104
    %p107 = scmp.ne.s32.totalorder %s92, %s106
    %p108 = scmp.eq.s32.totalorder %s19, 0
    %p109 = por %p107, %p108
    %s111 = sadd.s32 %s110, 1
    %p114 = scmp.eq.s32.totalorder %s13, 1
    %p115 = scmp.ne.s32.totalorder %s110, %s112
    %p116 = scmp.eq.s32.totalorder %s13, 0
    %p117 = por %p115, %p116
    %p118 = scmp.ne.s32.totalorder %s110, %s112
    %p119 = scmp.eq.s32.totalorder %s18, 1
    %p120 = por %p118, %p119
    %p121 = scmp.ne.s32.totalorder %s112, %s113
    %p122 = scmp.eq.s32.totalorder %s18, 0
    %p123 = por %p121, %p122
    %p124 = scmp.ne.s32.totalorder %s112, %s113
    %p125 = scmp.eq.s32.totalorder %s19, 1
    %p126 = por %p124, %p125
    %p128 = scmp.ne.s32.totalorder %s113, %s127
    %p129 = scmp.eq.s32.totalorder %s19, 0
    %p130 = por %p128, %p129
    %s132 = sadd.s32 %s131, 1
    %p135 = scmp.eq.s32.totalorder %s13, 1
    %p136 = scmp.ne.s32.totalorder %s131, %s133
    %p137 = scmp.eq.s32.totalorder %s13, 0
    %p138 = por %p136, %p137
    %p139 = scmp.ne.s32.totalorder %s131, %s133
    %p140 = scmp.eq.s32.totalorder %s18, 1
    %p141 = por %p139, %p140
    %p142 = scmp.ne.s32.totalorder %s133, %s134
    %p143 = scmp.eq.s32.totalorder %s18, 0
    %p144 = por %p142, %p143
    %p145 = scmp.ne.s32.totalorder %s133, %s134
    %p146 = scmp.eq.s32.totalorder %s19, 1
    %p147 = por %p145, %p146
    %p149 = scmp.ne.s32.totalorder %s134, %s148
    %p150 = scmp.eq.s32.totalorder %s19, 0
    %p151 = por %p149, %p150
    %s153 = sadd.s32 %s152, 1
    %p156 = scmp.eq.s32.totalorder %s13, 1
    %p157 = scmp.ne.s32.totalorder %s152, %s154
    %p158 = scmp.eq.s32.totalorder %s13, 0
    %p159 = por %p157, %p158
    %p160 = scmp.ne.s32.totalorder %s152, %s154
    %p161 = scmp.eq.s32.totalorder %s18, 1
    %p162 = por %p160, %p161
    %p163 = scmp.ne.s32.totalorder %s154, %s155
    %p164 = scmp.eq.s32.totalorder %s18, 0
    %p165 = por %p163, %p164
    %p166 = scmp.ne.s32.totalorder %s154, %s155
    %p167 = scmp.eq.s32.totalorder %s19, 1
    %p168 = por %p166, %p167
    %p170 = scmp.ne.s32.totalorder %s155, %s169
    %p171 = scmp.eq.s32.totalorder %s19, 0
    %p172 = por %p170, %p171
    %s173 = ssub.s32 %s13, %s20
    %p174 = scmp.eq.s32.totalorder %s173, 0
    %s176 = sadd.s32 %s175, 1
    %s177 = scalar_select %p174, %s175, %s176
    %p180 = pneg %p174
    %p181 = scmp.eq.s32.totalorder %s13, 1
    %p182 = por %p180, %p181
    %p183 = scmp.ne.s32.totalorder %s175, %s178
    %p184 = scmp.eq.s32.totalorder %s13, 0
    %p185 = por %p183, %p184
    %p186 = scmp.ne.s32.totalorder %s175, %s178
    %p187 = scmp.eq.s32.totalorder %s18, 1
    %p188 = por %p186, %p187
    %p189 = scmp.ne.s32.totalorder %s178, %s179
    %p190 = scmp.eq.s32.totalorder %s18, 0
    %p191 = por %p189, %p190
    %p192 = scmp.ne.s32.totalorder %s178, %s179
    %p193 = scmp.eq.s32.totalorder %s19, 1
    %p194 = por %p192, %p193
    %p196 = scmp.ne.s32.totalorder %s179, %s195
    %p197 = scmp.eq.s32.totalorder %s19, 0
    %p198 = por %p196, %p197
    %p199 = scmp.le.s32.totalorder 1, %s13
    %p200 = scmp.lt.s32.totalorder %s13, 3
    %p201 = pnand %p199, %p200
    %p202 = pneg %p201
    // Predicated region
    $region9: #{vit_forward.11} parent=5 // pred_check
      _
    $region10: #{vit_forward.11} parent=5 // pred_check_branch
      %204 = sbr.rel (%p201) target = $region12
    $region11: #{vit_forward.11} parent=5 // pred_region
      %s205 = ssub.s32 %s13, 1
      // Predicated region
      $region13: #{vit_forward.11} parent=11 // pred_check
        %p206 = pneg %p60
      $region14: #{vit_forward.11} parent=11 // pred_check_branch
        %208 = sbr.rel (%p206) target = $region16
      $region15: #{vit_forward.11} parent=11 // pred_region
        _
      $region16: #{vit_forward.11} parent=11 // pred_fallthru
        _
      // Predicated region
      $region17: #{vit_forward.11} parent=11 // pred_check
        %p209 = pneg %p81
      $region18: #{vit_forward.11} parent=11 // pred_check_branch
        %211 = sbr.rel (%p209) target = $region20
      $region19: #{vit_forward.11} parent=11 // pred_region
        _
      $region20: #{vit_forward.11} parent=11 // pred_fallthru
        _
      // Predicated region
      $region21: #{vit_forward.11} parent=11 // pred_check
        %p212 = pneg %p102
      $region22: #{vit_forward.11} parent=11 // pred_check_branch
        %214 = sbr.rel (%p212) target = $region24
      $region23: #{vit_forward.11} parent=11 // pred_region
        _
      $region24: #{vit_forward.11} parent=11 // pred_fallthru
        _
      // Predicated region
      $region25: #{vit_forward.11} parent=11 // pred_check
        %p215 = pneg %p123
      $region26: #{vit_forward.11} parent=11 // pred_check_branch
        %217 = sbr.rel (%p215) target = $region28
      $region27: #{vit_forward.11} parent=11 // pred_region
        _
      $region28: #{vit_forward.11} parent=11 // pred_fallthru
        _
      // Predicated region
      $region29: #{vit_forward.11} parent=11 // pred_check
        %p218 = pneg %p144
      $region30: #{vit_forward.11} parent=11 // pred_check_branch
        %220 = sbr.rel (%p218) target = $region32
      $region31: #{vit_forward.11} parent=11 // pred_region
        _
      $region32: #{vit_forward.11} parent=11 // pred_fallthru
        _
      // Predicated region
      $region33: #{vit_forward.11} parent=11 // pred_check
        %p221 = pneg %p165
      $region34: #{vit_forward.11} parent=11 // pred_check_branch
        %223 = sbr.rel (%p221) target = $region36
      $region35: #{vit_forward.11} parent=11 // pred_region
        _
      $region36: #{vit_forward.11} parent=11 // pred_fallthru
        _
    $region12: #{vit_forward.11} parent=5 // pred_fallthru
      _
    %p224 = scmp.lt.s32.totalorder %s13, 2
    // Predicated region
    $region37: #{vit_forward.11} parent=5 // pred_check
      %p225 = pneg %p224
    $region38: #{vit_forward.11} parent=5 // pred_check_branch
      %227 = sbr.rel (%p225) target = $region40
    $region39: #{vit_forward.11} parent=5 // pred_region
      // Predicated region
      $region41: #{vit_forward.11} parent=39 // pred_check
        %p228 = pneg %p33
      $region42: #{vit_forward.11} parent=39 // pred_check_branch
        %230 = sbr.rel (%p228) target = $region44
      $region43: #{vit_forward.11} parent=39 // pred_region
        %p231 = scmp.lt.s32.totalorder %s13, 1
        %s232 = scalar_select %p231, %s13, 1
        %s233 = smul.addr %s232, 4
        %s234 = scalar_lea.vmem %s0, %s233
      $region44: #{vit_forward.11} parent=39 // pred_fallthru
        _
    $region40: #{vit_forward.11} parent=5 // pred_fallthru
      _
    %p235 = scmp.le.s32.totalorder 1, %s13
    %p236 = scmp.lt.s32.totalorder %s13, 3
    %p237 = pnand %p235, %p236
    %p238 = pneg %p237
    // Predicated region
    $region45: #{vit_forward.11} parent=5 // pred_check
      _
    $region46: #{vit_forward.11} parent=5 // pred_check_branch
      %240 = sbr.rel (%p237) target = $region48
    $region47: #{vit_forward.11} parent=5 // pred_region
      %s241 = ssub.s32 %s13, 1
      %p242 = scmp.lt.s32.totalorder %s18, 1
      %s243 = scalar_select %p242, %s18, 1
      %s244 = smul.addr %s243, 4
      %s245 = scalar_lea.vmem %s0, %s244
      %p246 = pneg %p39
      %p247 = pneg %p36
      %p248 = pneg %p60
      %p249 = pneg %p57
      %p250 = pneg %p81
      %p251 = pneg %p78
      %p252 = pneg %p102
      %p253 = pneg %p99
      %p254 = pneg %p123
      %p255 = pneg %p120
      %p256 = pneg %p144
      %p257 = pneg %p141
      %p258 = pneg %p165
      %p259 = pneg %p162
      %p260 = pneg %p191
      %p261 = pneg %p188
      %p262 = scmp.lt.s32.totalorder %s18, 1
      %s263 = scalar_select %p262, %s18, 1
      %s264 = smul.addr %s263, 4
      %s265 = scalar_lea.vmem %s7, %s264
      %p266 = scmp.lt.s32.totalorder %s18, 1
      %s267 = scalar_select %p266, %s18, 1
      %s268 = smul.addr %s267, 4
      %s269 = scalar_lea.vmem %s0, %s268
      %p270 = scmp.lt.s32.totalorder %s18, 1
      %s271 = scalar_select %p270, %s18, 1
      %s272 = smul.addr %s271, 4
      %s273 = scalar_lea.vmem %s7, %s272
      %v274 = vld [vmem:[%s269] sm:$0x7]
      %v275 = vunpack.c.l.bf16 %v274
      %vm276 = vcmask 1044480
      %v277 = vsel %vm276, %v275, 0.0
      %278 = vadd.xlane.f32.xlu0 %v277
      %v279 = vpop.xlane.xlu0 %278
      %v280 = vrcp.pop 128.0
      %v281 = vmul.f32 128.0, %v280
      %v282 = vsub.f32 1.0, %v281
      %v283 = vmul.f32 %v280, %v282
      %v284 = vadd.f32 %v280, %v283
      %vm285 = vweird.f32 %v280
      %v286 = vsel %vm285, %v280, %v284
      %v287 = vmul.f32 %v279, %v286
      %v288 = vsub.f32 %v275, %v287
      %v289 = vmul.f32 %v288, %v288
      %v290 = vsel %vm276, %v289, 0.0
      %291 = vadd.xlane.f32.xlu0 %v290
      %v292 = vpop.xlane.xlu0 %291
      %v293 = vmul.f32 %v292, %v286
      %v294 = vadd.f32 %v293, 1e-06
      %v295 = vrsqrt.pop %v294
      %v296 = vmul.f32 %v295, %v294
      %v297 = vmul.f32 %v296, %v295
      %v298 = vmul.f32 0.5, %v297
      %v299 = vsub.f32 1.5, %v298
      %v300 = vmul.f32 %v295, %v299
      %vm301 = vweird.f32 %v294
      %vm302 = vweird.f32 %v295
      %vm303 = vmor %vm301, %vm302
      %v304 = vsel %vm303, %v295, %v300
      %v305 = vmul.f32 %v288, %v304
      %v306 = vld [vmem:[%s1] sm:$0x1]
      %v308 = vperm.slane %v306, 0
      %v310 = vmul.f32 %v305, %v308
      %v311 = vld [vmem:[%s2] sm:$0x1]
      %v313 = vperm.slane %v311, 0
      %v315 = vadd.f32 %v310, %v313
      %v316 = vpack.c.bf16 %v315, %v315
      %v317 = vld [vmem:[%s3] sm:$0xff]
      %v318 = vld [vmem:[%s3 + $0x8] sm:$0xff]
      %v319 = vld [vmem:[%s3 + $0x10] sm:$0xff]
      %v320 = vld [vmem:[%s3 + $0x18] sm:$0xff]
      %v321 = vld [vmem:[%s3 + $0x20] sm:$0xff]
      %v322 = vld [vmem:[%s3 + $0x28] sm:$0xff]
      %v323 = vld [vmem:[%s3 + $0x30] sm:$0xff]
      %v324 = vld [vmem:[%s3 + $0x38] sm:$0xff]
      %v325 = vld [vmem:[%s3 + $0x40] sm:$0xff]
      %v326 = vld [vmem:[%s3 + $0x48] sm:$0xff]
      %v327 = vld [vmem:[%s3 + $0x50] sm:$0xff]
      %v328 = vld [vmem:[%s3 + $0x58] sm:$0xff]
      %v329 = vld [vmem:[%s3 + $0x60] sm:$0xff]
      %v330 = vld [vmem:[%s3 + $0x68] sm:$0xff]
      %v331 = vld [vmem:[%s3 + $0x70] sm:$0xff]
      %v332 = vld [vmem:[%s3 + $0x78] sm:$0xff]
      %v333 = vld [vmem:[%s4] sm:$0x3]
      %v335 = vperm.slane %v333, 0
      %v336 = vperm.slane %v333, 1
      %v355 = vunpack.c.l.b16 %v317
      %v356 = vunpack.c.h.b16 %v317
      %v357 = vunpack.c.l.b16 %v318
      %v358 = vunpack.c.h.b16 %v318
      %v359 = vunpack.c.l.b16 %v319
      %v360 = vunpack.c.h.b16 %v319
      %v361 = vunpack.c.l.b16 %v320
      %v362 = vunpack.c.h.b16 %v320
      %v363 = vunpack.c.l.b16 %v321
      %v364 = vunpack.c.h.b16 %v321
      %v365 = vunpack.c.l.b16 %v322
      %v366 = vunpack.c.h.b16 %v322
      %v367 = vunpack.c.l.b16 %v323
      %v368 = vunpack.c.h.b16 %v323
      %v369 = vunpack.c.l.b16 %v324
      %v370 = vunpack.c.h.b16 %v324
      %v371 = vunpack.c.l.b16 %v325
      %v372 = vunpack.c.h.b16 %v325
      %v373 = vunpack.c.l.b16 %v326
      %v374 = vunpack.c.h.b16 %v326
      %v375 = vunpack.c.l.b16 %v327
      %v376 = vunpack.c.h.b16 %v327
      %v377 = vunpack.c.l.b16 %v328
      %v378 = vunpack.c.h.b16 %v328
      %v379 = vunpack.c.l.b16 %v329
      %v380 = vunpack.c.h.b16 %v329
      %v381 = vunpack.c.l.b16 %v330
      %v382 = vunpack.c.h.b16 %v330
      %v383 = vunpack.c.l.b16 %v331
      %v384 = vunpack.c.h.b16 %v331
      %v385 = vunpack.c.l.b16 %v332
      %v386 = vunpack.c.h.b16 %v332
      %v387 = vpack.c.b16 %v357, %v355
      %v388 = vpack.c.b16 %v358, %v356
      %v389 = vpack.c.b16 %v361, %v359
      %v390 = vpack.c.b16 %v362, %v360
      %v391 = vpack.c.b16 %v365, %v363
      %v392 = vpack.c.b16 %v366, %v364
      %v393 = vpack.c.b16 %v369, %v367
      %v394 = vpack.c.b16 %v370, %v368
      %v395 = vpack.c.b16 %v373, %v371
      %v396 = vpack.c.b16 %v374, %v372
      %v397 = vpack.c.b16 %v377, %v375
      %v398 = vpack.c.b16 %v378, %v376
      %v399 = vpack.c.b16 %v381, %v379
      %v400 = vpack.c.b16 %v382, %v380
      %v401 = vpack.c.b16 %v385, %v383
      %v402 = vpack.c.b16 %v386, %v384
      %419 = vmatpush.bf16.msra.mxu0 %v401
      %420 = vmatpush.bf16.msra.mxu0 %v399
      %421 = vmatpush.bf16.msra.mxu0 %v397
      %422 = vmatpush.bf16.msra.mxu0 %v395
      %423 = vmatpush.bf16.msra.mxu0 %v393
      %424 = vmatpush.bf16.msra.mxu0 %v391
      %425 = vmatpush.bf16.msra.mxu0 %v389
      %426 = vmatpush.bf16.msra.mxu0 %v387
      %427 = vmatmul.bf16.gmra.mxu0 %v316
      %v428 = vpop.f32.mrf.mxu0
      %v429 = vadd.f32 %v335, %v428
      %v430 = vpop.f32.mrf.mxu0
      %431 = vdwg.mxu0
      %432 = vmatpush.bf16.msra.mxu0 %v402
      %433 = vmatpush.bf16.msra.mxu0 %v400
      %434 = vmatpush.bf16.msra.mxu0 %v398
      %435 = vmatpush.bf16.msra.mxu0 %v396
      %436 = vmatpush.bf16.msra.mxu0 %v394
      %437 = vmatpush.bf16.msra.mxu0 %v392
      %438 = vmatpush.bf16.msra.mxu0 %v390
      %439 = vmatpush.bf16.msra.mxu0 %v388
      %440 = vmatmul.bf16.gmra.mxu0 %v316
      %v441 = vpop.f32.mrf.mxu0
      %v442 = vadd.f32 %v336, %v441
      %v443 = vpop.f32.mrf.mxu0
      %444 = vdwg.mxu0
      %v445 = vmul.f32 %v429, 0.5
      %v446 = vmul.f32 %v442, 0.5
      %v447 = vmul.f32 %v429, 0.044715
      %v448 = vmul.f32 %v442, 0.044715
      %v449 = vmul.f32 %v447, %v429
      %v450 = vmul.f32 %v448, %v442
      %v451 = vmul.f32 %v449, %v429
      %v452 = vmul.f32 %v450, %v442
      %v453 = vadd.f32 %v429, %v451
      %v454 = vadd.f32 %v442, %v452
      %v455 = vmul.f32 %v453, 0.7978846
      %v456 = vmul.f32 %v454, 0.7978846
      %v457 = vtanh.pop %v455
      %v458 = vtanh.pop %v456
      %v459 = vadd.f32 %v457, 1.0
      %v460 = vadd.f32 %v458, 1.0
      %v461 = vmul.f32 %v445, %v459
      %v462 = vmul.f32 %v446, %v460
      %v463 = vpack.c.bf16 %v461, %v461
      %v464 = vpack.c.bf16 %v462, %v462
      %v465 = vld [vmem:[%s5] sm:$0xf]
      %v466 = vld [vmem:[%s5 + $0x4] sm:$0xf]
      %v467 = vld [vmem:[%s5 + $0x8] sm:$0xf]
      %v468 = vld [vmem:[%s5 + $0xc] sm:$0xf]
      %v469 = vld [vmem:[%s5 + $0x10] sm:$0xf]
      %v470 = vld [vmem:[%s5 + $0x14] sm:$0xf]
      %v471 = vld [vmem:[%s5 + $0x18] sm:$0xf]
      %v472 = vld [vmem:[%s5 + $0x1c] sm:$0xf]
      %v473 = vld [vmem:[%s5 + $0x20] sm:$0xf]
      %v474 = vld [vmem:[%s5 + $0x24] sm:$0xf]
      %v475 = vld [vmem:[%s5 + $0x28] sm:$0xf]
      %v476 = vld [vmem:[%s5 + $0x2c] sm:$0xf]
      %v477 = vld [vmem:[%s5 + $0x30] sm:$0xf]
      %v478 = vld [vmem:[%s5 + $0x34] sm:$0xf]
      %v479 = vld [vmem:[%s5 + $0x38] sm:$0xf]
      %v480 = vld [vmem:[%s5 + $0x3c] sm:$0xf]
      %v481 = vld [vmem:[%s5 + $0x40] sm:$0xf]
      %v482 = vld [vmem:[%s5 + $0x44] sm:$0xf]
      %v483 = vld [vmem:[%s5 + $0x48] sm:$0xf]
      %v484 = vld [vmem:[%s5 + $0x4c] sm:$0xf]
      %v485 = vld [vmem:[%s5 + $0x50] sm:$0xf]
      %v486 = vld [vmem:[%s5 + $0x54] sm:$0xf]
      %v487 = vld [vmem:[%s5 + $0x58] sm:$0xf]
      %v488 = vld [vmem:[%s5 + $0x5c] sm:$0xf]
      %v489 = vld [vmem:[%s5 + $0x60] sm:$0xf]
      %v490 = vld [vmem:[%s5 + $0x64] sm:$0xf]
      %v491 = vld [vmem:[%s5 + $0x68] sm:$0xf]
      %v492 = vld [vmem:[%s5 + $0x6c] sm:$0xf]
      %v493 = vld [vmem:[%s5 + $0x70] sm:$0xf]
      %v494 = vld [vmem:[%s5 + $0x74] sm:$0xf]
      %v495 = vld [vmem:[%s5 + $0x78] sm:$0xf]
      %v496 = vld [vmem:[%s5 + $0x7c] sm:$0xf]
      %v497 = vld [vmem:[%s6] sm:$0x1]
      %v499 = vperm.slane %v497, 0
      %v533 = vunpack.c.l.b16 %v465
      %v534 = vunpack.c.l.b16 %v466
      %v535 = vunpack.c.l.b16 %v467
      %v536 = vunpack.c.l.b16 %v468
      %v537 = vunpack.c.l.b16 %v469
      %v538 = vunpack.c.l.b16 %v470
      %v539 = vunpack.c.l.b16 %v471
      %v540 = vunpack.c.l.b16 %v472
      %v541 = vunpack.c.l.b16 %v473
      %v542 = vunpack.c.l.b16 %v474
      %v543 = vunpack.c.l.b16 %v475
      %v544 = vunpack.c.l.b16 %v476
      %v545 = vunpack.c.l.b16 %v477
      %v546 = vunpack.c.l.b16 %v478
      %v547 = vunpack.c.l.b16 %v479
      %v548 = vunpack.c.l.b16 %v480
      %v549 = vunpack.c.l.b16 %v481
      %v550 = vunpack.c.l.b16 %v482
      %v551 = vunpack.c.l.b16 %v483
      %v552 = vunpack.c.l.b16 %v484
      %v553 = vunpack.c.l.b16 %v485
      %v554 = vunpack.c.l.b16 %v486
      %v555 = vunpack.c.l.b16 %v487
      %v556 = vunpack.c.l.b16 %v488
      %v557 = vunpack.c.l.b16 %v489
      %v558 = vunpack.c.l.b16 %v490
      %v559 = vunpack.c.l.b16 %v491
      %v560 = vunpack.c.l.b16 %v492
      %v561 = vunpack.c.l.b16 %v493
      %v562 = vunpack.c.l.b16 %v494
      %v563 = vunpack.c.l.b16 %v495
      %v564 = vunpack.c.l.b16 %v496
      %v565 = vpack.c.b16 %v534, %v533
      %v566 = vpack.c.b16 %v536, %v535
      %v567 = vpack.c.b16 %v538, %v537
      %v568 = vpack.c.b16 %v540, %v539
      %v569 = vpack.c.b16 %v542, %v541
      %v570 = vpack.c.b16 %v544, %v543
      %v571 = vpack.c.b16 %v546, %v545
      %v572 = vpack.c.b16 %v548, %v547
      %v573 = vpack.c.b16 %v550, %v549
      %v574 = vpack.c.b16 %v552, %v551
      %v575 = vpack.c.b16 %v554, %v553
      %v576 = vpack.c.b16 %v556, %v555
      %v577 = vpack.c.b16 %v558, %v557
      %v578 = vpack.c.b16 %v560, %v559
      %v579 = vpack.c.b16 %v562, %v561
      %v580 = vpack.c.b16 %v564, %v563
      %597 = vmatpush.bf16.msra.mxu0 %v572
      %598 = vmatpush.bf16.msra.mxu0 %v571
      %599 = vmatpush.bf16.msra.mxu0 %v570
      %600 = vmatpush.bf16.msra.mxu0 %v569
      %601 = vmatpush.bf16.msra.mxu0 %v568
      %602 = vmatpush.bf16.msra.mxu0 %v567
      %603 = vmatpush.bf16.msra.mxu0 %v566
      %604 = vmatpush.bf16.msra.mxu0 %v565
      %605 = vmatmul.bf16.gmra.mxu0 %v463
      %v606 = vpop.f32.mrf.mxu0
      %v607 = vadd.f32 %v499, %v606
      %v608 = vpop.f32.mrf.mxu0
      %609 = vdwg.mxu0
      %610 = vmatpush.bf16.msra.mxu0 %v580
      %611 = vmatpush.bf16.msra.mxu0 %v579
      %612 = vmatpush.bf16.msra.mxu0 %v578
      %613 = vmatpush.bf16.msra.mxu0 %v577
      %614 = vmatpush.bf16.msra.mxu0 %v576
      %615 = vmatpush.bf16.msra.mxu0 %v575
      %616 = vmatpush.bf16.msra.mxu0 %v574
      %617 = vmatpush.bf16.msra.mxu0 %v573
      %618 = vmatmul.bf16.gmra.mxu0 %v464
      %v619 = vpop.f32.mrf.mxu0
      %v620 = vadd.f32 %v607, %v619
      %v621 = vpop.f32.mrf.mxu0
      %622 = vdwg.mxu0
      %v623 = vadd.f32 %v275, %v620
      %v624 = vpack.c.bf16 %v623, %v623
      %vm625 = vcmask 1042432
      %vm626 = vsmask.f32 2304
      %vm627 = vmand %vm625, %vm626
      %v628 = vld [vmem:[%s273] sm:$0x7]
      %v629 = vsel %vm627, %v624, %v628
      %630 = vst [vmem:[%s273] sm:$0x7] %v629
      %p631 = scmp.lt.s32.totalorder %s18, 1
      %s632 = scalar_select %p631, %s18, 1
      %s633 = smul.addr %s632, 4
      %s634 = scalar_lea.vmem %s7, %s633
      // Predicated region
      $region49: #{vit_forward.11} parent=47 // pred_check
        %p635 = pneg %p188
      $region50: #{vit_forward.11} parent=47 // pred_check_branch
        %637 = sbr.rel (%p635) target = $region52
      $region51: #{vit_forward.11} parent=47 // pred_region
        _
      $region52: #{vit_forward.11} parent=47 // pred_fallthru
        _
    $region48: #{vit_forward.11} parent=5 // pred_fallthru
      _
    %p638 = scmp.le.s32.totalorder 2, %s13
    // Predicated region
    $region53: #{vit_forward.11} parent=5 // pred_check
      %p639 = pneg %p638
    $region54: #{vit_forward.11} parent=5 // pred_check_branch
      %641 = sbr.rel (%p639) target = $region56
    $region55: #{vit_forward.11} parent=5 // pred_region
      %s642 = ssub.s32 %s13, 2
      // Predicated region
      $region57: #{vit_forward.11} parent=55 // pred_check
        %p643 = pneg %p194
      $region58: #{vit_forward.11} parent=55 // pred_check_branch
        %645 = sbr.rel (%p643) target = $region60
      $region59: #{vit_forward.11} parent=55 // pred_region
        %p646 = scmp.lt.s32.totalorder %s19, 1
        %s647 = scalar_select %p646, %s19, 1
        %s648 = smul.addr %s647, 4
        %s649 = scalar_lea.vmem %s7, %s648
      $region60: #{vit_forward.11} parent=55 // pred_fallthru
        _
    $region56: #{vit_forward.11} parent=5 // pred_fallthru
      _
  $region6: #{vit_forward.11} parent=0 // loop_footer
    %s17 = sadd.s32 1, %s13
  $region7: #{vit_forward.11} parent=0 // loop_footer_branch
    %12 = sbr.rel target = $region3
  $region8: #{vit_forward.11} parent=0 // loop_exit
    _

// kernel: vit_forward.15
$region0: #{vit_forward.15}
  #allocation0 [shape = 'u32[]', space=smem, size = 0x4, offset = 0x4, fixed_abs, tag = 'smem constant byte address 0x4 - core index']
  #allocation1 [shape = 'u32[72,128]{1,0:T(1,128)}', space=vmem, size = 0x9000, scoped, tag = 'internal scratch']
  %s0 = inlined_call_operand.vmem [shape: bf16[2,128], index: 0, kind: input, shape index: {}]
  %s1 = inlined_call_operand.vmem [shape: f32[1,128], index: 1, kind: input, shape index: {}]
  %s2 = inlined_call_operand.vmem [shape: f32[1,128], index: 2, kind: input, shape index: {}]
  %s3 = inlined_call_operand.hbm [shape: bf16[128,128], index: 3, kind: input, shape index: {}]
  %s4 = inlined_call_operand.vmem [shape: f32[1,128], index: 4, kind: input, shape index: {}]
  %s5 = inlined_call_operand.hbm [shape: f32[2,128], index: 5, kind: output, shape index: {}]
  %s6 = sld [smem:[#allocation0]]
  $region34: #{vit_forward.15} parent=0
    _
  %s8 = ssub.s32 1, %s6
  %s9 = scalar_select 0, %s8, %s6
  $region1: #{vit_forward.15} parent=0
    #allocation2 [shape = 'u8[32768]{0}', space=vmem, size = 0x8000, scoped, tag = 'input window, operand 3, single buffered']
    #allocation3 [shape = 's32[1]{0}', space=sflag, size = 0x4, scoped, tag = 'scoped memory for vit_forward.15']
    #allocation4 [shape = 's32[1]{0}', space=sflag, size = 0x4, scoped, tag = 'scoped memory for vit_forward.15']
    #allocation5 [shape = 'u8[1024]{0}', space=vmem, size = 0x400, scoped, tag = 'output window, operand 0, single buffered']
    %10 = vsyncpa [#allocation3], 0
    %11 = vsyncpa [#allocation4], 0
    // Predicated region
    $region2: #{vit_forward.15} parent=1 // pred_check
      _
    $region3: #{vit_forward.15} parent=1 // pred_check_branch
      %13 = sbr.rel (0) target = $region5
    $region4: #{vit_forward.15} parent=1 // pred_region
      _
    $region5: #{vit_forward.15} parent=1 // pred_fallthru
      _
    // Predicated region
    $region6: #{vit_forward.15} parent=1 // pred_check
      _
    $region7: #{vit_forward.15} parent=1 // pred_check_branch
      %15 = sbr.rel (0) target = $region9
    $region8: #{vit_forward.15} parent=1 // pred_region
      _
    $region9: #{vit_forward.15} parent=1 // pred_fallthru
      _
    // Predicated region
    $region10: #{vit_forward.15} parent=1 // pred_check
      _
    $region11: #{vit_forward.15} parent=1 // pred_check_branch
      %17 = sbr.rel (0) target = $region13
    $region12: #{vit_forward.15} parent=1 // pred_region
      _
    $region13: #{vit_forward.15} parent=1 // pred_fallthru
      _
    // Predicated region
    $region14: #{vit_forward.15} parent=1 // pred_check
      _
    $region15: #{vit_forward.15} parent=1 // pred_check_branch
      %19 = sbr.rel (0) target = $region17
    $region16: #{vit_forward.15} parent=1 // pred_region
      %21 = vsyncadd [#allocation3], 0
      %s22 = sshll.u32 %s3, 4
      %s23 = int_to_ptr.hbm [resolvable:$true] %s22
      %s24 = sshll.u32 [#allocation2], 4
      %s25 = int_to_ptr.vmem [resolvable:$true] %s24
      %30 = dma.hbm_to_vmem [thread:$0]  %s23, 1024, %s25, [#allocation3], 64, 64, 4
    $region17: #{vit_forward.15} parent=1 // pred_fallthru
      _
    // Predicated region
    $region18: #{vit_forward.15} parent=1 // pred_check
      _
    $region19: #{vit_forward.15} parent=1 // pred_check_branch
      %32 = sbr.rel (0) target = $region21
    $region20: #{vit_forward.15} parent=1 // pred_region
      _
    $region21: #{vit_forward.15} parent=1 // pred_fallthru
      _
    // Predicated region
    $region22: #{vit_forward.15} parent=1 // pred_check
      _
    $region23: #{vit_forward.15} parent=1 // pred_check_branch
      %34 = sbr.rel (0) target = $region25
    $region24: #{vit_forward.15} parent=1 // pred_region
      %36 = dma.done [#allocation3], 1024
    $region25: #{vit_forward.15} parent=1 // pred_fallthru
      _
    %v37 = vld [vmem:[%s0] sm:$0x1]
    %v38 = vunpack.c.l.bf16 %v37
    %vm39 = vcmask 1041408
    %v40 = vsel %vm39, %v38, 0.0
    %41 = vadd.xlane.f32.xlu0 %v40
    %v42 = vpop.xlane.xlu0 %41
    %v43 = vrcp.pop 128.0
    %v44 = vmul.f32 128.0, %v43
    %v45 = vsub.f32 1.0, %v44
    %v46 = vmul.f32 %v43, %v45
    %v47 = vadd.f32 %v43, %v46
    %vm48 = vweird.f32 %v43
    %v49 = vsel %vm48, %v43, %v47
    %v50 = vmul.f32 %v42, %v49
    %v51 = vsub.f32 %v38, %v50
    %v52 = vmul.f32 %v51, %v51
    %v53 = vsel %vm39, %v52, 0.0
    %54 = vadd.xlane.f32.xlu0 %v53
    %v55 = vpop.xlane.xlu0 %54
    %v56 = vmul.f32 %v55, %v49
    %v57 = vadd.f32 %v56, 1e-06
    %v58 = vrsqrt.pop %v57
    %v59 = vmul.f32 %v58, %v57
    %v60 = vmul.f32 %v59, %v58
    %v61 = vmul.f32 0.5, %v60
    %v62 = vsub.f32 1.5, %v61
    %v63 = vmul.f32 %v58, %v62
    %vm64 = vweird.f32 %v57
    %vm65 = vweird.f32 %v58
    %vm66 = vmor %vm64, %vm65
    %v67 = vsel %vm66, %v58, %v63
    %v68 = vmul.f32 %v51, %v67
    %v69 = vld [vmem:[%s1] sm:$0x1]
    %v71 = vperm.slane %v69, 0
    %v73 = vmul.f32 %v68, %v71
    %v74 = vld [vmem:[%s2] sm:$0x1]
    %v76 = vperm.slane %v74, 0
    %v78 = vadd.f32 %v73, %v76
    %v79 = vpack.c.bf16 %v78, %v78
    %v80 = vld [vmem:[#allocation2] sm:$0xf]
    %v81 = vld [vmem:[#allocation2 + $0x4] sm:$0xf]
    %v82 = vld [vmem:[#allocation2 + $0x8] sm:$0xf]
    %v83 = vld [vmem:[#allocation2 + $0xc] sm:$0xf]
    %v84 = vld [vmem:[#allocation2 + $0x10] sm:$0xf]
    %v85 = vld [vmem:[#allocation2 + $0x14] sm:$0xf]
    %v86 = vld [vmem:[#allocation2 + $0x18] sm:$0xf]
    %v87 = vld [vmem:[#allocation2 + $0x1c] sm:$0xf]
    %v88 = vld [vmem:[#allocation2 + $0x20] sm:$0xf]
    %v89 = vld [vmem:[#allocation2 + $0x24] sm:$0xf]
    %v90 = vld [vmem:[#allocation2 + $0x28] sm:$0xf]
    %v91 = vld [vmem:[#allocation2 + $0x2c] sm:$0xf]
    %v92 = vld [vmem:[#allocation2 + $0x30] sm:$0xf]
    %v93 = vld [vmem:[#allocation2 + $0x34] sm:$0xf]
    %v94 = vld [vmem:[#allocation2 + $0x38] sm:$0xf]
    %v95 = vld [vmem:[#allocation2 + $0x3c] sm:$0xf]
    %v96 = vld [vmem:[%s4] sm:$0x1]
    %v98 = vperm.slane %v96, 0
    %v116 = vunpack.c.l.b16 %v80
    %v117 = vunpack.c.l.b16 %v81
    %v118 = vunpack.c.l.b16 %v82
    %v119 = vunpack.c.l.b16 %v83
    %v120 = vunpack.c.l.b16 %v84
    %v121 = vunpack.c.l.b16 %v85
    %v122 = vunpack.c.l.b16 %v86
    %v123 = vunpack.c.l.b16 %v87
    %v124 = vunpack.c.l.b16 %v88
    %v125 = vunpack.c.l.b16 %v89
    %v126 = vunpack.c.l.b16 %v90
    %v127 = vunpack.c.l.b16 %v91
    %v128 = vunpack.c.l.b16 %v92
    %v129 = vunpack.c.l.b16 %v93
    %v130 = vunpack.c.l.b16 %v94
    %v131 = vunpack.c.l.b16 %v95
    %v132 = vpack.c.b16 %v117, %v116
    %v133 = vpack.c.b16 %v119, %v118
    %v134 = vpack.c.b16 %v121, %v120
    %v135 = vpack.c.b16 %v123, %v122
    %v136 = vpack.c.b16 %v125, %v124
    %v137 = vpack.c.b16 %v127, %v126
    %v138 = vpack.c.b16 %v129, %v128
    %v139 = vpack.c.b16 %v131, %v130
    %148 = vmatpush.bf16.msra.mxu0 %v139
    %149 = vmatpush.bf16.msra.mxu0 %v138
    %150 = vmatpush.bf16.msra.mxu0 %v137
    %151 = vmatpush.bf16.msra.mxu0 %v136
    %152 = vmatpush.bf16.msra.mxu0 %v135
    %153 = vmatpush.bf16.msra.mxu0 %v134
    %154 = vmatpush.bf16.msra.mxu0 %v133
    %155 = vmatpush.bf16.msra.mxu0 %v132
    %156 = vmatmul.bf16.gmra.mxu0 %v79
    %v157 = vpop.f32.mrf.mxu0
    %v158 = vadd.f32 %v98, %v157
    %v159 = vpop.f32.mrf.mxu0
    %160 = vdwg.mxu0
    %161 = vst [vmem:[#allocation5] sm:$0x3] %v158
    // Predicated region
    $region26: #{vit_forward.15} parent=1 // pred_check
      _
    $region27: #{vit_forward.15} parent=1 // pred_check_branch
      %163 = sbr.rel (0) target = $region29
    $region28: #{vit_forward.15} parent=1 // pred_region
      %165 = vsyncadd [#allocation4], 0
      %s167 = sshll.u32 [#allocation5], 4
      %s168 = int_to_ptr.vmem [resolvable:$true] %s167
      %s169 = sshll.u32 %s5, 4
      %s170 = int_to_ptr.hbm [resolvable:$true] %s169
      %172 = dma.vmem_to_hbm [thread:$0]  %s168, 32, %s170, [#allocation4]
    $region29: #{vit_forward.15} parent=1 // pred_fallthru
      _
    // Predicated region
    $region30: #{vit_forward.15} parent=1 // pred_check
      _
    $region31: #{vit_forward.15} parent=1 // pred_check_branch
      %174 = sbr.rel (0) target = $region33
    $region32: #{vit_forward.15} parent=1 // pred_region
      %176 = dma.done [#allocation4], 32
    $region33: #{vit_forward.15} parent=1 // pred_fallthru
      _
    %177 = vsyncpa [#allocation3], 1
    %178 = vsyncpa [#allocation4], 1

// kernel: vit_forward.14
$region0: #{vit_forward.14}
  #allocation0 [shape = 'u32[]', space=smem, size = 0x4, offset = 0x4, fixed_abs, tag = 'smem constant byte address 0x4 - core index']
  #allocation1 [shape = 'u32[72,128]{1,0:T(1,128)}', space=vmem, size = 0x9000, scoped, tag = 'internal scratch']
  %s0 = inlined_call_operand.vmem [shape: bf16[2,5,128], index: 0, kind: input, shape index: {}]
  %s1 = inlined_call_operand.vmem [shape: f32[1,128], index: 1, kind: input, shape index: {}]
  %s2 = inlined_call_operand.vmem [shape: f32[1,128], index: 2, kind: input, shape index: {}]
  %s3 = inlined_call_operand.vmem [shape: bf16[128,256], index: 3, kind: input, shape index: {}]
  %s4 = inlined_call_operand.vmem [shape: f32[1,256], index: 4, kind: input, shape index: {}]
  %s5 = inlined_call_operand.hbm [shape: bf16[256,128], index: 5, kind: input, shape index: {}]
  %s6 = inlined_call_operand.vmem [shape: f32[1,128], index: 6, kind: input, shape index: {}]
  %s7 = inlined_call_operand.vmem [shape: bf16[2,5,128], index: 7, kind: output, shape index: {}]
  %s8 = sld [smem:[#allocation0]]
  $region65: #{vit_forward.14} parent=0
    _
  %s10 = ssub.s32 1, %s8
  %s11 = scalar_select 0, %s10, %s8
  $region1: #{vit_forward.14} parent=0
    #allocation2 [shape = 'u8[65536]{0}', space=vmem, size = 0x10000, scoped, tag = 'input window, operand 5, single buffered']
    #allocation3 [shape = 's32[2]{0}', space=sflag, size = 0x8, scoped, tag = 'scoped memory for vit_forward.14']
    %12 = vsyncpa [#allocation3], 0
    loop: start=0, step=1, limit=4
    $region2: #{vit_forward.14} parent=1 // loop_pre_header
      _
    $region3: #{vit_forward.14} parent=1 // loop_header
      %s14 = sphi 0, %s18
      %p15 = scmp.ge.s32.totalorder %s14, 4
      %s24 = sphi 0, %s26
      %s27 = sphi 0, %s24
      %s28 = sphi 0, %s27
      %s44 = sphi 0, %s28
      %s48 = sphi 0, %s48
      %s50 = sphi 0, %s48
      %s51 = sphi 0, %s50
      %s65 = sphi 0, %s51
      %s69 = sphi 0, %s69
      %s71 = sphi 0, %s69
      %s72 = sphi 0, %s71
      %s86 = sphi 0, %s72
      %s90 = sphi 0, %s90
      %s92 = sphi 0, %s90
      %s93 = sphi 0, %s92
      %s107 = sphi 0, %s93
      %s111 = sphi 0, %s111
      %s113 = sphi 0, %s111
      %s114 = sphi 0, %s113
      %s128 = sphi 0, %s114
      %s132 = sphi 0, %s132
      %s134 = sphi 0, %s132
      %s135 = sphi 0, %s134
      %s149 = sphi 0, %s135
      %s153 = sphi 0, %s153
      %s155 = sphi 0, %s153
      %s156 = sphi 0, %s155
      %s170 = sphi 0, %s156
      %s176 = sphi 0, %s178
      %s179 = sphi 0, %s176
      %s180 = sphi 0, %s179
      %s196 = sphi 0, %s180
    $region4: #{vit_forward.14} parent=1 // loop_header_branch
      %17 = sbr.rel (%p15) target = $region8
    $region5: #{vit_forward.14} parent=1 // loop_body
      %s19 = ssub.s32 %s14, 1
      %s20 = ssub.s32 %s14, 2
      %s21 = sadd.s32 %s14, 1
      %s22 = ssub.s32 %s14, %s21
      %p23 = scmp.eq.s32.totalorder %s22, 0
      %s25 = sadd.s32 %s24, 1
      %s26 = scalar_select %p23, %s24, %s25
      %p29 = pneg %p23
      %p30 = scmp.eq.s32.totalorder %s14, 1
      %p31 = por %p29, %p30
      %p32 = scmp.ne.s32.totalorder %s24, %s27
      %p33 = scmp.eq.s32.totalorder %s14, 0
      %p34 = por %p32, %p33
      %p35 = scmp.ne.s32.totalorder %s24, %s27
      %p36 = scmp.eq.s32.totalorder %s19, 1
      %p37 = por %p35, %p36
      %p38 = scmp.ne.s32.totalorder %s27, %s28
      %p39 = scmp.eq.s32.totalorder %s19, 0
      %p40 = por %p38, %p39
      %p41 = scmp.ne.s32.totalorder %s27, %s28
      %p42 = scmp.eq.s32.totalorder %s20, 1
      %p43 = por %p41, %p42
      %p45 = scmp.ne.s32.totalorder %s28, %s44
      %p46 = scmp.eq.s32.totalorder %s20, 0
      %p47 = por %p45, %p46
      %s49 = sadd.s32 %s48, 1
      %p52 = scmp.eq.s32.totalorder %s14, 1
      %p53 = scmp.ne.s32.totalorder %s48, %s50
      %p54 = scmp.eq.s32.totalorder %s14, 0
      %p55 = por %p53, %p54
      %p56 = scmp.ne.s32.totalorder %s48, %s50
      %p57 = scmp.eq.s32.totalorder %s19, 1
      %p58 = por %p56, %p57
      %p59 = scmp.ne.s32.totalorder %s50, %s51
      %p60 = scmp.eq.s32.totalorder %s19, 0
      %p61 = por %p59, %p60
      %p62 = scmp.ne.s32.totalorder %s50, %s51
      %p63 = scmp.eq.s32.totalorder %s20, 1
      %p64 = por %p62, %p63
      %p66 = scmp.ne.s32.totalorder %s51, %s65
      %p67 = scmp.eq.s32.totalorder %s20, 0
      %p68 = por %p66, %p67
      %s70 = sadd.s32 %s69, 1
      %p73 = scmp.eq.s32.totalorder %s14, 1
      %p74 = scmp.ne.s32.totalorder %s69, %s71
      %p75 = scmp.eq.s32.totalorder %s14, 0
      %p76 = por %p74, %p75
      %p77 = scmp.ne.s32.totalorder %s69, %s71
      %p78 = scmp.eq.s32.totalorder %s19, 1
      %p79 = por %p77, %p78
      %p80 = scmp.ne.s32.totalorder %s71, %s72
      %p81 = scmp.eq.s32.totalorder %s19, 0
      %p82 = por %p80, %p81
      %p83 = scmp.ne.s32.totalorder %s71, %s72
      %p84 = scmp.eq.s32.totalorder %s20, 1
      %p85 = por %p83, %p84
      %p87 = scmp.ne.s32.totalorder %s72, %s86
      %p88 = scmp.eq.s32.totalorder %s20, 0
      %p89 = por %p87, %p88
      %s91 = sadd.s32 %s90, 1
      %p94 = scmp.eq.s32.totalorder %s14, 1
      %p95 = scmp.ne.s32.totalorder %s90, %s92
      %p96 = scmp.eq.s32.totalorder %s14, 0
      %p97 = por %p95, %p96
      %p98 = scmp.ne.s32.totalorder %s90, %s92
      %p99 = scmp.eq.s32.totalorder %s19, 1
      %p100 = por %p98, %p99
      %p101 = scmp.ne.s32.totalorder %s92, %s93
      %p102 = scmp.eq.s32.totalorder %s19, 0
      %p103 = por %p101, %p102
      %p104 = scmp.ne.s32.totalorder %s92, %s93
      %p105 = scmp.eq.s32.totalorder %s20, 1
      %p106 = por %p104, %p105
      %p108 = scmp.ne.s32.totalorder %s93, %s107
      %p109 = scmp.eq.s32.totalorder %s20, 0
      %p110 = por %p108, %p109
      %s112 = sadd.s32 %s111, 1
      %p115 = scmp.eq.s32.totalorder %s14, 1
      %p116 = scmp.ne.s32.totalorder %s111, %s113
      %p117 = scmp.eq.s32.totalorder %s14, 0
      %p118 = por %p116, %p117
      %p119 = scmp.ne.s32.totalorder %s111, %s113
      %p120 = scmp.eq.s32.totalorder %s19, 1
      %p121 = por %p119, %p120
      %p122 = scmp.ne.s32.totalorder %s113, %s114
      %p123 = scmp.eq.s32.totalorder %s19, 0
      %p124 = por %p122, %p123
      %p125 = scmp.ne.s32.totalorder %s113, %s114
      %p126 = scmp.eq.s32.totalorder %s20, 1
      %p127 = por %p125, %p126
      %p129 = scmp.ne.s32.totalorder %s114, %s128
      %p130 = scmp.eq.s32.totalorder %s20, 0
      %p131 = por %p129, %p130
      %s133 = sadd.s32 %s132, 1
      %p136 = scmp.eq.s32.totalorder %s14, 1
      %p137 = scmp.ne.s32.totalorder %s132, %s134
      %p138 = scmp.eq.s32.totalorder %s14, 0
      %p139 = por %p137, %p138
      %p140 = scmp.ne.s32.totalorder %s132, %s134
      %p141 = scmp.eq.s32.totalorder %s19, 1
      %p142 = por %p140, %p141
      %p143 = scmp.ne.s32.totalorder %s134, %s135
      %p144 = scmp.eq.s32.totalorder %s19, 0
      %p145 = por %p143, %p144
      %p146 = scmp.ne.s32.totalorder %s134, %s135
      %p147 = scmp.eq.s32.totalorder %s20, 1
      %p148 = por %p146, %p147
      %p150 = scmp.ne.s32.totalorder %s135, %s149
      %p151 = scmp.eq.s32.totalorder %s20, 0
      %p152 = por %p150, %p151
      %s154 = sadd.s32 %s153, 1
      %p157 = scmp.eq.s32.totalorder %s14, 1
      %p158 = scmp.ne.s32.totalorder %s153, %s155
      %p159 = scmp.eq.s32.totalorder %s14, 0
      %p160 = por %p158, %p159
      %p161 = scmp.ne.s32.totalorder %s153, %s155
      %p162 = scmp.eq.s32.totalorder %s19, 1
      %p163 = por %p161, %p162
      %p164 = scmp.ne.s32.totalorder %s155, %s156
      %p165 = scmp.eq.s32.totalorder %s19, 0
      %p166 = por %p164, %p165
      %p167 = scmp.ne.s32.totalorder %s155, %s156
      %p168 = scmp.eq.s32.totalorder %s20, 1
      %p169 = por %p167, %p168
      %p171 = scmp.ne.s32.totalorder %s156, %s170
      %p172 = scmp.eq.s32.totalorder %s20, 0
      %p173 = por %p171, %p172
      %s174 = ssub.s32 %s14, %s21
      %p175 = scmp.eq.s32.totalorder %s174, 0
      %s177 = sadd.s32 %s176, 1
      %s178 = scalar_select %p175, %s176, %s177
      %p181 = pneg %p175
      %p182 = scmp.eq.s32.totalorder %s14, 1
      %p183 = por %p181, %p182
      %p184 = scmp.ne.s32.totalorder %s176, %s179
      %p185 = scmp.eq.s32.totalorder %s14, 0
      %p186 = por %p184, %p185
      %p187 = scmp.ne.s32.totalorder %s176, %s179
      %p188 = scmp.eq.s32.totalorder %s19, 1
      %p189 = por %p187, %p188
      %p190 = scmp.ne.s32.totalorder %s179, %s180
      %p191 = scmp.eq.s32.totalorder %s19, 0
      %p192 = por %p190, %p191
      %p193 = scmp.ne.s32.totalorder %s179, %s180
      %p194 = scmp.eq.s32.totalorder %s20, 1
      %p195 = por %p193, %p194
      %p197 = scmp.ne.s32.totalorder %s180, %s196
      %p198 = scmp.eq.s32.totalorder %s20, 0
      %p199 = por %p197, %p198
      %p200 = scmp.le.s32.totalorder 1, %s14
      %p201 = scmp.lt.s32.totalorder %s14, 3
      %p202 = pnand %p200, %p201
      %p203 = pneg %p202
      // Predicated region
      $region9: #{vit_forward.14} parent=5 // pred_check
        _
      $region10: #{vit_forward.14} parent=5 // pred_check_branch
        %205 = sbr.rel (%p202) target = $region12
      $region11: #{vit_forward.14} parent=5 // pred_region
        %s206 = ssub.s32 %s14, 1
        // Predicated region
        $region13: #{vit_forward.14} parent=11 // pred_check
          %p207 = pneg %p61
        $region14: #{vit_forward.14} parent=11 // pred_check_branch
          %209 = sbr.rel (%p207) target = $region16
        $region15: #{vit_forward.14} parent=11 // pred_region
          _
        $region16: #{vit_forward.14} parent=11 // pred_fallthru
          _
        // Predicated region
        $region17: #{vit_forward.14} parent=11 // pred_check
          %p210 = pneg %p82
        $region18: #{vit_forward.14} parent=11 // pred_check_branch
          %212 = sbr.rel (%p210) target = $region20
        $region19: #{vit_forward.14} parent=11 // pred_region
          _
        $region20: #{vit_forward.14} parent=11 // pred_fallthru
          _
        // Predicated region
        $region21: #{vit_forward.14} parent=11 // pred_check
          %p213 = pneg %p103
        $region22: #{vit_forward.14} parent=11 // pred_check_branch
          %215 = sbr.rel (%p213) target = $region24
        $region23: #{vit_forward.14} parent=11 // pred_region
          _
        $region24: #{vit_forward.14} parent=11 // pred_fallthru
          _
        // Predicated region
        $region25: #{vit_forward.14} parent=11 // pred_check
          %p216 = pneg %p124
        $region26: #{vit_forward.14} parent=11 // pred_check_branch
          %218 = sbr.rel (%p216) target = $region28
        $region27: #{vit_forward.14} parent=11 // pred_region
          _
        $region28: #{vit_forward.14} parent=11 // pred_fallthru
          _
        // Predicated region
        $region29: #{vit_forward.14} parent=11 // pred_check
          %p219 = pneg %p145
        $region30: #{vit_forward.14} parent=11 // pred_check_branch
          %221 = sbr.rel (%p219) target = $region32
        $region31: #{vit_forward.14} parent=11 // pred_region
          %223 = vsyncadd [#allocation3], 0
          %s224 = sshll.u32 %s5, 4
          %s225 = int_to_ptr.hbm [resolvable:$true] %s224
          %s226 = sshll.u32 [#allocation2], 4
          %s227 = int_to_ptr.vmem [resolvable:$true] %s226
          %232 = dma.hbm_to_vmem [thread:$0]  %s225, 2048, %s227, [#allocation3], 64, 64, 4
        $region32: #{vit_forward.14} parent=11 // pred_fallthru
          _
        // Predicated region
        $region33: #{vit_forward.14} parent=11 // pred_check
          %p233 = pneg %p166
        $region34: #{vit_forward.14} parent=11 // pred_check_branch
          %235 = sbr.rel (%p233) target = $region36
        $region35: #{vit_forward.14} parent=11 // pred_region
          _
        $region36: #{vit_forward.14} parent=11 // pred_fallthru
          _
      $region12: #{vit_forward.14} parent=5 // pred_fallthru
        _
      %p236 = scmp.lt.s32.totalorder %s14, 2
      // Predicated region
      $region37: #{vit_forward.14} parent=5 // pred_check
        %p237 = pneg %p236
      $region38: #{vit_forward.14} parent=5 // pred_check_branch
        %239 = sbr.rel (%p237) target = $region40
      $region39: #{vit_forward.14} parent=5 // pred_region
        // Predicated region
        $region41: #{vit_forward.14} parent=39 // pred_check
          %p240 = pneg %p34
        $region42: #{vit_forward.14} parent=39 // pred_check_branch
          %242 = sbr.rel (%p240) target = $region44
        $region43: #{vit_forward.14} parent=39 // pred_region
          %p243 = scmp.lt.s32.totalorder %s14, 1
          %s244 = scalar_select %p243, %s14, 1
          %s245 = smul.addr %s244, 4
          %s246 = scalar_lea.vmem %s0, %s245
        $region44: #{vit_forward.14} parent=39 // pred_fallthru
          _
      $region40: #{vit_forward.14} parent=5 // pred_fallthru
        _
      %p247 = scmp.le.s32.totalorder 1, %s14
      %p248 = scmp.lt.s32.totalorder %s14, 3
      %p249 = pnand %p247, %p248
      %p250 = pneg %p249
      // Predicated region
      $region45: #{vit_forward.14} parent=5 // pred_check
        _
      $region46: #{vit_forward.14} parent=5 // pred_check_branch
        %252 = sbr.rel (%p249) target = $region48
      $region47: #{vit_forward.14} parent=5 // pred_region
        %s253 = ssub.s32 %s14, 1
        // Predicated region
        $region49: #{vit_forward.14} parent=47 // pred_check
          %p254 = pneg %p145
        $region50: #{vit_forward.14} parent=47 // pred_check_branch
          %256 = sbr.rel (%p254) target = $region52
        $region51: #{vit_forward.14} parent=47 // pred_region
          %258 = dma.done [#allocation3], 2048
        $region52: #{vit_forward.14} parent=47 // pred_fallthru
          _
        %p259 = scmp.lt.s32.totalorder %s19, 1
        %s260 = scalar_select %p259, %s19, 1
        %s261 = smul.addr %s260, 4
        %s262 = scalar_lea.vmem %s0, %s261
        %p263 = pneg %p40
        %p264 = pneg %p37
        %p265 = pneg %p61
        %p266 = pneg %p58
        %p267 = pneg %p82
        %p268 = pneg %p79
        %p269 = pneg %p103
        %p270 = pneg %p100
        %p271 = pneg %p124
        %p272 = pneg %p121
        %p273 = pneg %p145
        %p274 = pneg %p142
        %p275 = pneg %p166
        %p276 = pneg %p163
        %p277 = pneg %p192
        %p278 = pneg %p189
        %p279 = scmp.lt.s32.totalorder %s19, 1
        %s280 = scalar_select %p279, %s19, 1
        %s281 = smul.addr %s280, 4
        %s282 = scalar_lea.vmem %s7, %s281
        %p283 = scmp.lt.s32.totalorder %s19, 1
        %s284 = scalar_select %p283, %s19, 1
        %s285 = smul.addr %s284, 4
        %s286 = scalar_lea.vmem %s0, %s285
        %p287 = scmp.lt.s32.totalorder %s19, 1
        %s288 = scalar_select %p287, %s19, 1
        %s289 = smul.addr %s288, 4
        %s290 = scalar_lea.vmem %s7, %s289
        %v291 = vld [vmem:[%s286] sm:$0x7]
        %v292 = vunpack.c.l.bf16 %v291
        %vm293 = vcmask 1044480
        %v294 = vsel %vm293, %v292, 0.0
        %295 = vadd.xlane.f32.xlu0 %v294
        %v296 = vpop.xlane.xlu0 %295
        %v297 = vrcp.pop 128.0
        %v298 = vmul.f32 128.0, %v297
        %v299 = vsub.f32 1.0, %v298
        %v300 = vmul.f32 %v297, %v299
        %v301 = vadd.f32 %v297, %v300
        %vm302 = vweird.f32 %v297
        %v303 = vsel %vm302, %v297, %v301
        %v304 = vmul.f32 %v296, %v303
        %v305 = vsub.f32 %v292, %v304
        %v306 = vmul.f32 %v305, %v305
        %v307 = vsel %vm293, %v306, 0.0
        %308 = vadd.xlane.f32.xlu0 %v307
        %v309 = vpop.xlane.xlu0 %308
        %v310 = vmul.f32 %v309, %v303
        %v311 = vadd.f32 %v310, 1e-06
        %v312 = vrsqrt.pop %v311
        %v313 = vmul.f32 %v312, %v311
        %v314 = vmul.f32 %v313, %v312
        %v315 = vmul.f32 0.5, %v314
        %v316 = vsub.f32 1.5, %v315
        %v317 = vmul.f32 %v312, %v316
        %vm318 = vweird.f32 %v311
        %vm319 = vweird.f32 %v312
        %vm320 = vmor %vm318, %vm319
        %v321 = vsel %vm320, %v312, %v317
        %v322 = vmul.f32 %v305, %v321
        %v323 = vld [vmem:[%s1] sm:$0x1]
        %v325 = vperm.slane %v323, 0
        %v327 = vmul.f32 %v322, %v325
        %v328 = vld [vmem:[%s2] sm:$0x1]
        %v330 = vperm.slane %v328, 0
        %v332 = vadd.f32 %v327, %v330
        %v333 = vpack.c.bf16 %v332, %v332
        %v334 = vld [vmem:[%s3] sm:$0xff]
        %v335 = vld [vmem:[%s3 + $0x8] sm:$0xff]
        %v336 = vld [vmem:[%s3 + $0x10] sm:$0xff]
        %v337 = vld [vmem:[%s3 + $0x18] sm:$0xff]
        %v338 = vld [vmem:[%s3 + $0x20] sm:$0xff]
        %v339 = vld [vmem:[%s3 + $0x28] sm:$0xff]
        %v340 = vld [vmem:[%s3 + $0x30] sm:$0xff]
        %v341 = vld [vmem:[%s3 + $0x38] sm:$0xff]
        %v342 = vld [vmem:[%s3 + $0x40] sm:$0xff]
        %v343 = vld [vmem:[%s3 + $0x48] sm:$0xff]
        %v344 = vld [vmem:[%s3 + $0x50] sm:$0xff]
        %v345 = vld [vmem:[%s3 + $0x58] sm:$0xff]
        %v346 = vld [vmem:[%s3 + $0x60] sm:$0xff]
        %v347 = vld [vmem:[%s3 + $0x68] sm:$0xff]
        %v348 = vld [vmem:[%s3 + $0x70] sm:$0xff]
        %v349 = vld [vmem:[%s3 + $0x78] sm:$0xff]
        %v350 = vld [vmem:[%s4] sm:$0x3]
        %v352 = vperm.slane %v350, 0
        %v353 = vperm.slane %v350, 1
        %v372 = vunpack.c.l.b16 %v334
        %v373 = vunpack.c.h.b16 %v334
        %v374 = vunpack.c.l.b16 %v335
        %v375 = vunpack.c.h.b16 %v335
        %v376 = vunpack.c.l.b16 %v336
        %v377 = vunpack.c.h.b16 %v336
        %v378 = vunpack.c.l.b16 %v337
        %v379 = vunpack.c.h.b16 %v337
        %v380 = vunpack.c.l.b16 %v338
        %v381 = vunpack.c.h.b16 %v338
        %v382 = vunpack.c.l.b16 %v339
        %v383 = vunpack.c.h.b16 %v339
        %v384 = vunpack.c.l.b16 %v340
        %v385 = vunpack.c.h.b16 %v340
        %v386 = vunpack.c.l.b16 %v341
        %v387 = vunpack.c.h.b16 %v341
        %v388 = vunpack.c.l.b16 %v342
        %v389 = vunpack.c.h.b16 %v342
        %v390 = vunpack.c.l.b16 %v343
        %v391 = vunpack.c.h.b16 %v343
        %v392 = vunpack.c.l.b16 %v344
        %v393 = vunpack.c.h.b16 %v344
        %v394 = vunpack.c.l.b16 %v345
        %v395 = vunpack.c.h.b16 %v345
        %v396 = vunpack.c.l.b16 %v346
        %v397 = vunpack.c.h.b16 %v346
        %v398 = vunpack.c.l.b16 %v347
        %v399 = vunpack.c.h.b16 %v347
        %v400 = vunpack.c.l.b16 %v348
        %v401 = vunpack.c.h.b16 %v348
        %v402 = vunpack.c.l.b16 %v349
        %v403 = vunpack.c.h.b16 %v349
        %v404 = vpack.c.b16 %v374, %v372
        %v405 = vpack.c.b16 %v375, %v373
        %v406 = vpack.c.b16 %v378, %v376
        %v407 = vpack.c.b16 %v379, %v377
        %v408 = vpack.c.b16 %v382, %v380
        %v409 = vpack.c.b16 %v383, %v381
        %v410 = vpack.c.b16 %v386, %v384
        %v411 = vpack.c.b16 %v387, %v385
        %v412 = vpack.c.b16 %v390, %v388
        %v413 = vpack.c.b16 %v391, %v389
        %v414 = vpack.c.b16 %v394, %v392
        %v415 = vpack.c.b16 %v395, %v393
        %v416 = vpack.c.b16 %v398, %v396
        %v417 = vpack.c.b16 %v399, %v397
        %v418 = vpack.c.b16 %v402, %v400
        %v419 = vpack.c.b16 %v403, %v401
        %436 = vmatpush.bf16.msra.mxu0 %v418
        %437 = vmatpush.bf16.msra.mxu0 %v416
        %438 = vmatpush.bf16.msra.mxu0 %v414
        %439 = vmatpush.bf16.msra.mxu0 %v412
        %440 = vmatpush.bf16.msra.mxu0 %v410
        %441 = vmatpush.bf16.msra.mxu0 %v408
        %442 = vmatpush.bf16.msra.mxu0 %v406
        %443 = vmatpush.bf16.msra.mxu0 %v404
        %444 = vmatmul.bf16.gmra.mxu0 %v333
        %v445 = vpop.f32.mrf.mxu0
        %v446 = vadd.f32 %v352, %v445
        %v447 = vpop.f32.mrf.mxu0
        %448 = vdwg.mxu0
        %449 = vmatpush.bf16.msra.mxu0 %v419
        %450 = vmatpush.bf16.msra.mxu0 %v417
        %451 = vmatpush.bf16.msra.mxu0 %v415
        %452 = vmatpush.bf16.msra.mxu0 %v413
        %453 = vmatpush.bf16.msra.mxu0 %v411
        %454 = vmatpush.bf16.msra.mxu0 %v409
        %455 = vmatpush.bf16.msra.mxu0 %v407
        %456 = vmatpush.bf16.msra.mxu0 %v405
        %457 = vmatmul.bf16.gmra.mxu0 %v333
        %v458 = vpop.f32.mrf.mxu0
        %v459 = vadd.f32 %v353, %v458
        %v460 = vpop.f32.mrf.mxu0
        %461 = vdwg.mxu0
        %v462 = vmul.f32 %v446, 0.5
        %v463 = vmul.f32 %v459, 0.5
        %v464 = vmul.f32 %v446, 0.044715
        %v465 = vmul.f32 %v459, 0.044715
        %v466 = vmul.f32 %v464, %v446
        %v467 = vmul.f32 %v465, %v459
        %v468 = vmul.f32 %v466, %v446
        %v469 = vmul.f32 %v467, %v459
        %v470 = vadd.f32 %v446, %v468
        %v471 = vadd.f32 %v459, %v469
        %v472 = vmul.f32 %v470, 0.7978846
        %v473 = vmul.f32 %v471, 0.7978846
        %v474 = vtanh.pop %v472
        %v475 = vtanh.pop %v473
        %v476 = vadd.f32 %v474, 1.0
        %v477 = vadd.f32 %v475, 1.0
        %v478 = vmul.f32 %v462, %v476
        %v479 = vmul.f32 %v463, %v477
        %v480 = vpack.c.bf16 %v478, %v478
        %v481 = vpack.c.bf16 %v479, %v479
        %v482 = vld [vmem:[#allocation2] sm:$0xf]
        %v483 = vld [vmem:[#allocation2 + $0x4] sm:$0xf]
        %v484 = vld [vmem:[#allocation2 + $0x8] sm:$0xf]
        %v485 = vld [vmem:[#allocation2 + $0xc] sm:$0xf]
        %v486 = vld [vmem:[#allocation2 + $0x10] sm:$0xf]
        %v487 = vld [vmem:[#allocation2 + $0x14] sm:$0xf]
        %v488 = vld [vmem:[#allocation2 + $0x18] sm:$0xf]
        %v489 = vld [vmem:[#allocation2 + $0x1c] sm:$0xf]
        %v490 = vld [vmem:[#allocation2 + $0x20] sm:$0xf]
        %v491 = vld [vmem:[#allocation2 + $0x24] sm:$0xf]
        %v492 = vld [vmem:[#allocation2 + $0x28] sm:$0xf]
        %v493 = vld [vmem:[#allocation2 + $0x2c] sm:$0xf]
        %v494 = vld [vmem:[#allocation2 + $0x30] sm:$0xf]
        %v495 = vld [vmem:[#allocation2 + $0x34] sm:$0xf]
        %v496 = vld [vmem:[#allocation2 + $0x38] sm:$0xf]
        %v497 = vld [vmem:[#allocation2 + $0x3c] sm:$0xf]
        %v498 = vld [vmem:[#allocation2 + $0x40] sm:$0xf]
        %v499 = vld [vmem:[#allocation2 + $0x44] sm:$0xf]
        %v500 = vld [vmem:[#allocation2 + $0x48] sm:$0xf]
        %v501 = vld [vmem:[#allocation2 + $0x4c] sm:$0xf]
        %v502 = vld [vmem:[#allocation2 + $0x50] sm:$0xf]
        %v503 = vld [vmem:[#allocation2 + $0x54] sm:$0xf]
        %v504 = vld [vmem:[#allocation2 + $0x58] sm:$0xf]
        %v505 = vld [vmem:[#allocation2 + $0x5c] sm:$0xf]
        %v506 = vld [vmem:[#allocation2 + $0x60] sm:$0xf]
        %v507 = vld [vmem:[#allocation2 + $0x64] sm:$0xf]
        %v508 = vld [vmem:[#allocation2 + $0x68] sm:$0xf]
        %v509 = vld [vmem:[#allocation2 + $0x6c] sm:$0xf]
        %v510 = vld [vmem:[#allocation2 + $0x70] sm:$0xf]
        %v511 = vld [vmem:[#allocation2 + $0x74] sm:$0xf]
        %v512 = vld [vmem:[#allocation2 + $0x78] sm:$0xf]
        %v513 = vld [vmem:[#allocation2 + $0x7c] sm:$0xf]
        %v514 = vld [vmem:[%s6] sm:$0x1]
        %v516 = vperm.slane %v514, 0
        %v550 = vunpack.c.l.b16 %v482
        %v551 = vunpack.c.l.b16 %v483
        %v552 = vunpack.c.l.b16 %v484
        %v553 = vunpack.c.l.b16 %v485
        %v554 = vunpack.c.l.b16 %v486
        %v555 = vunpack.c.l.b16 %v487
        %v556 = vunpack.c.l.b16 %v488
        %v557 = vunpack.c.l.b16 %v489
        %v558 = vunpack.c.l.b16 %v490
        %v559 = vunpack.c.l.b16 %v491
        %v560 = vunpack.c.l.b16 %v492
        %v561 = vunpack.c.l.b16 %v493
        %v562 = vunpack.c.l.b16 %v494
        %v563 = vunpack.c.l.b16 %v495
        %v564 = vunpack.c.l.b16 %v496
        %v565 = vunpack.c.l.b16 %v497
        %v566 = vunpack.c.l.b16 %v498
        %v567 = vunpack.c.l.b16 %v499
        %v568 = vunpack.c.l.b16 %v500
        %v569 = vunpack.c.l.b16 %v501
        %v570 = vunpack.c.l.b16 %v502
        %v571 = vunpack.c.l.b16 %v503
        %v572 = vunpack.c.l.b16 %v504
        %v573 = vunpack.c.l.b16 %v505
        %v574 = vunpack.c.l.b16 %v506
        %v575 = vunpack.c.l.b16 %v507
        %v576 = vunpack.c.l.b16 %v508
        %v577 = vunpack.c.l.b16 %v509
        %v578 = vunpack.c.l.b16 %v510
        %v579 = vunpack.c.l.b16 %v511
        %v580 = vunpack.c.l.b16 %v512
        %v581 = vunpack.c.l.b16 %v513
        %v582 = vpack.c.b16 %v551, %v550
        %v583 = vpack.c.b16 %v553, %v552
        %v584 = vpack.c.b16 %v555, %v554
        %v585 = vpack.c.b16 %v557, %v556
        %v586 = vpack.c.b16 %v559, %v558
        %v587 = vpack.c.b16 %v561, %v560
        %v588 = vpack.c.b16 %v563, %v562
        %v589 = vpack.c.b16 %v565, %v564
        %v590 = vpack.c.b16 %v567, %v566
        %v591 = vpack.c.b16 %v569, %v568
        %v592 = vpack.c.b16 %v571, %v570
        %v593 = vpack.c.b16 %v573, %v572
        %v594 = vpack.c.b16 %v575, %v574
        %v595 = vpack.c.b16 %v577, %v576
        %v596 = vpack.c.b16 %v579, %v578
        %v597 = vpack.c.b16 %v581, %v580
        %614 = vmatpush.bf16.msra.mxu0 %v589
        %615 = vmatpush.bf16.msra.mxu0 %v588
        %616 = vmatpush.bf16.msra.mxu0 %v587
        %617 = vmatpush.bf16.msra.mxu0 %v586
        %618 = vmatpush.bf16.msra.mxu0 %v585
        %619 = vmatpush.bf16.msra.mxu0 %v584
        %620 = vmatpush.bf16.msra.mxu0 %v583
        %621 = vmatpush.bf16.msra.mxu0 %v582
        %622 = vmatmul.bf16.gmra.mxu0 %v480
        %v623 = vpop.f32.mrf.mxu0
        %v624 = vadd.f32 %v516, %v623
        %v625 = vpop.f32.mrf.mxu0
        %626 = vdwg.mxu0
        %627 = vmatpush.bf16.msra.mxu0 %v597
        %628 = vmatpush.bf16.msra.mxu0 %v596
        %629 = vmatpush.bf16.msra.mxu0 %v595
        %630 = vmatpush.bf16.msra.mxu0 %v594
        %631 = vmatpush.bf16.msra.mxu0 %v593
        %632 = vmatpush.bf16.msra.mxu0 %v592
        %633 = vmatpush.bf16.msra.mxu0 %v591
        %634 = vmatpush.bf16.msra.mxu0 %v590
        %635 = vmatmul.bf16.gmra.mxu0 %v481
        %v636 = vpop.f32.mrf.mxu0
        %v637 = vadd.f32 %v624, %v636
        %v638 = vpop.f32.mrf.mxu0
        %639 = vdwg.mxu0
        %v640 = vadd.f32 %v292, %v637
        %v641 = vpack.c.bf16 %v640, %v640
        %vm642 = vcmask 1042432
        %vm643 = vsmask.f32 2304
        %vm644 = vmand %vm642, %vm643
        %v645 = vld [vmem:[%s290] sm:$0x7]
        %v646 = vsel %vm644, %v641, %v645
        %647 = vst [vmem:[%s290] sm:$0x7] %v646
        %p648 = scmp.lt.s32.totalorder %s19, 1
        %s649 = scalar_select %p648, %s19, 1
        %s650 = smul.addr %s649, 4
        %s651 = scalar_lea.vmem %s7, %s650
        // Predicated region
        $region53: #{vit_forward.14} parent=47 // pred_check
          %p652 = pneg %p189
        $region54: #{vit_forward.14} parent=47 // pred_check_branch
          %654 = sbr.rel (%p652) target = $region56
        $region55: #{vit_forward.14} parent=47 // pred_region
          _
        $region56: #{vit_forward.14} parent=47 // pred_fallthru
          _
      $region48: #{vit_forward.14} parent=5 // pred_fallthru
        _
      %p655 = scmp.le.s32.totalorder 2, %s14
      // Predicated region
      $region57: #{vit_forward.14} parent=5 // pred_check
        %p656 = pneg %p655
      $region58: #{vit_forward.14} parent=5 // pred_check_branch
        %658 = sbr.rel (%p656) target = $region60
      $region59: #{vit_forward.14} parent=5 // pred_region
        %s659 = ssub.s32 %s14, 2
        // Predicated region
        $region61: #{vit_forward.14} parent=59 // pred_check
          %p660 = pneg %p195
        $region62: #{vit_forward.14} parent=59 // pred_check_branch
          %662 = sbr.rel (%p660) target = $region64
        $region63: #{vit_forward.14} parent=59 // pred_region
          %p663 = scmp.lt.s32.totalorder %s20, 1
          %s664 = scalar_select %p663, %s20, 1
          %s665 = smul.addr %s664, 4
          %s666 = scalar_lea.vmem %s7, %s665
        $region64: #{vit_forward.14} parent=59 // pred_fallthru
          _
      $region60: #{vit_forward.14} parent=5 // pred_fallthru
        _
    $region6: #{vit_forward.14} parent=1 // loop_footer
      %s18 = sadd.s32 1, %s14
    $region7: #{vit_forward.14} parent=1 // loop_footer_branch
      %13 = sbr.rel target = $region3
    $region8: #{vit_forward.14} parent=1 // loop_exit
      _
    %667 = vsyncpa [#allocation3], 1
    %s668 = scalar_lea.sflag [#allocation3], 1
    %669 = vsyncpa %s668, 1

</llo_original>
